<compile_context>
chip_gen: v6e
topology: v6e:2x2x1
jax: 0.10.0
libtpu: 0.0.40
codegen_flags: <defaults>
</compile_context>

<pallas_src>
import jax
import jax.numpy as jnp
from jax.experimental import pallas as pl
from jax.experimental.pallas import tpu as pltpu


def _round_up(x, m):
    return (x + m - 1) // m * m


def mlp_kernel(x_ref,
               w10, b10, w11, b11, w12, b12, w13, b13,
               w20, b20, w21, b21, w22, b22, w23, b23,
               o_ref):
    def layer_f32(a_bf16, w_ref, b_ref):
        acc = jnp.dot(a_bf16, w_ref[...], preferred_element_type=jnp.float32)
        return jnp.maximum(acc + b_ref[...], 0.0)          # f32 bias-add/ReLU (VPU)

    def layer(a_bf16, w_ref, b_ref):
        return layer_f32(a_bf16, w_ref, b_ref).astype(jnp.bfloat16)

    # Stage one: bf16 activations between layers (x_ref is already bf16).
    h = layer(x_ref[...], w10, b10)
    h = layer(h, w11, b11)
    h = layer(h, w12, b12)
    h = layer(h, w13, b13)

    # Residual: re-read x from VMEM here (short live range, no f32 copy held across
    # stage one); add in f32, round once to bf16 for the next MXU op.
    y = (x_ref[...].astype(jnp.float32) + h.astype(jnp.float32)).astype(jnp.bfloat16)

    # Stage two; final layer stays f32 straight into the output store.
    y = layer(y, w20, b20)
    y = layer(y, w21, b21)
    y = layer(y, w22, b22)
    o_ref[...] = layer_f32(y, w23, b23)


def _call_kernel(x_pad, flat, *, tm, n_pad, f_pad, o_pad, single_buffer_weights):
    # Weights/biases use a constant index_map -> DMA'd once, VMEM-resident; optionally
    # single-buffered (no benefit from double-buffering a never-changing block).
    wkw = {"pipeline_mode": pl.Buffered(1)} if single_buffer_weights else {}
    in_specs = [pl.BlockSpec((tm, f_pad), lambda i: (i, 0))]               # x: tiled
    in_specs += [pl.BlockSpec(a.shape, lambda i: (0, 0), **wkw) for a in flat]
    out_spec = pl.BlockSpec((tm, o_pad), lambda i: (i, 0))

    return pl.pallas_call(
        mlp_kernel,
        out_shape=jax.ShapeDtypeStruct((n_pad, o_pad), jnp.float32),
        grid_spec=pltpu.PrefetchScalarGridSpec(
            num_scalar_prefetch=0,
            grid=(pl.cdiv(n_pad, tm),),
            in_specs=in_specs,
            out_specs=out_spec,
        ),
        compiler_params=pltpu.CompilerParams(
            dimension_semantics=("parallel",),   # shard batch tiles across TCs (v7x)
            vmem_limit_bytes=16 * 1024 * 1024,   # ~1 MiB bf16 weights + tiles + scratch
        ),
    )(x_pad, *flat)


def mlp_forward(x, params, *, tm=512):
    """x: (N, in_features) float32.
    params: flat list of 8 (w, b) pairs [stage_one x4, stage_two x4],
            w: (fan_in, fan_out) f32, b: (1, fan_out) f32."""
    n, f_in = x.shape
    out_features = params[-1][0].shape[1]

    f_pad = _round_up(f_in, 128)
    o_pad = _round_up(out_features, 128)

    # Batch tile: multiple of 16 (bf16 sublane packing), clamped for tiny batches;
    # for mid/large batches cap so there are >=2 grid tiles (both v7x TensorCores work).
    tm = _round_up(max(16, min(tm, n)), 16)
    if n >= 256:
        tm = min(tm, _round_up(-(-n // 2), 16))
    n_pad = _round_up(n, tm)

    # Activations DMA'd as bf16 (zero padding is exact in bf16 too).
    x_pad = (jnp.zeros((n_pad, f_pad), jnp.float32)
             .at[:n, :f_in].set(x)).astype(jnp.bfloat16)

    # Pad every layer's fan_in/fan_out to multiples of 128; zero rows/cols + zero bias
    # + ReLU keep padded activation lanes exactly 0 through the whole chain.
    flat = []
    for w, b in params:
        fi_p = _round_up(w.shape[0], 128)
        fo_p = _round_up(w.shape[1], 128)
        w_p = jnp.zeros((fi_p, fo_p), jnp.float32).at[:w.shape[0], :w.shape[1]].set(w)
        b_p = jnp.zeros((1, fo_p), jnp.float32).at[:, :b.shape[1]].set(b)
        flat.append(w_p.astype(jnp.bfloat16))   # weights resident in VMEM as bf16
        flat.append(b_p)                        # biases stay f32 (f32 VPU add)

    try:
        out_pad = _call_kernel(x_pad, flat, tm=tm, n_pad=n_pad, f_pad=f_pad,
                               o_pad=o_pad, single_buffer_weights=True)
    except Exception:
        # Fallback if this JAX build rejects Buffered(1) for constant-index blocks
        # (only costs ~1 MiB of extra VMEM for the double-buffered weights).
        out_pad = _call_kernel(x_pad, flat, tm=tm, n_pad=n_pad, f_pad=f_pad,
                               o_pad=o_pad, single_buffer_weights=False)

    return out_pad[:n, :out_features]


def init_params(key, in_features, hidden_features, out_features, hidden_layers):
    """PyTorch-style uniform(-1/sqrt(fan_in), 1/sqrt(fan_in)) init."""
    def linear(key, fan_in, fan_out):
        kw, kb = jax.random.split(key)
        bound = 1.0 / jnp.sqrt(jnp.float32(fan_in))
        w = jax.random.uniform(kw, (fan_in, fan_out), jnp.float32, -bound, bound)
        b = jax.random.uniform(kb, (1, fan_out), jnp.float32, -bound, bound)
        return w, b

    dims_one, dims_two = [], []
    for i in range(hidden_layers):
        if i == 0:
            dims_one.append((in_features, hidden_features))
            dims_two.append((in_features, hidden_features))
        elif i == hidden_layers - 1:
            dims_one.append((hidden_features, in_features))
            dims_two.append((hidden_features, out_features))
        else:
            dims_one.append((hidden_features, hidden_features))
            dims_two.append((hidden_features, hidden_features))

    keys = jax.random.split(key, 2 * hidden_layers)
    params = []
    for i, (fi, fo) in enumerate(dims_one):
        params.append(linear(keys[i], fi, fo))
    for i, (fi, fo) in enumerate(dims_two):
        params.append(linear(keys[hidden_layers + i], fi, fo))
    return params


def mlp_reference_f32(x, params, hidden_layers):
    """Pure-f32 pure-JAX reference of the module semantics."""
    h = x
    for w, b in params[:hidden_layers]:
        h = jnp.maximum(h @ w + b, 0.0)
    y = x + h
    for w, b in params[hidden_layers:]:
        y = jnp.maximum(y @ w + b, 0.0)
    return y


def mlp_reference_bf16(x, params, hidden_layers):
    """Reference mirroring the kernel numerics exactly: bf16 inputs/weights to each
    dot, f32 accumulate + bias + ReLU, bf16 activations between layers, bf16 x for the
    residual, f32 final layer output."""
    def layer_f32(a_bf16, w, b):
        acc = jnp.dot(a_bf16, w.astype(jnp.bfloat16),
                      preferred_element_type=jnp.float32)
        return jnp.maximum(acc + b, 0.0)

    def layer(a_bf16, w, b):
        return layer_f32(a_bf16, w, b).astype(jnp.bfloat16)

    x_bf = x.astype(jnp.bfloat16)
    h = x_bf
    for w, b in params[:hidden_layers]:
        h = layer(h, w, b)
    y = (x_bf.astype(jnp.float32) + h.astype(jnp.float32)).astype(jnp.bfloat16)
    for w, b in params[hidden_layers:-1]:
        y = layer(y, w, b)
    w, b = params[-1]
    return layer_f32(y, w, b)


if __name__ == "__main__":
    IN_FEATURES = 128 + 3
    HIDDEN_FEATURES = 256
    HIDDEN_LAYERS = 4

    key = jax.random.PRNGKey(0)
    k1, k2, k3, k4 = jax.random.split(key, 4)

    # Test 1: module defaults (out_features=1), tiny batch -> single grid tile.
    x1 = jax.random.normal(k1, (8, IN_FEATURES), jnp.float32)
    p1 = init_params(k2, IN_FEATURES, HIDDEN_FEATURES, 1, HIDDEN_LAYERS)
    out1 = jax.block_until_ready(mlp_forward(x1, p1))
    assert out1.shape == (8, 1), out1.shape
    assert jnp.allclose(out1, mlp_reference_bf16(x1, p1, HIDDEN_LAYERS),
                        atol=5e-3, rtol=5e-3), "mismatch vs bf16-mirrored reference"
    assert jnp.allclose(out1, mlp_reference_f32(x1, p1, HIDDEN_LAYERS),
                        atol=1e-1, rtol=1e-1), "mismatch vs f32 reference"

    # Test 2: wider output + more rows (stronger numerics check; exercises grid>1,
    # row padding and the two-tile split for the parallel batch axis).
    x2 = jax.random.normal(k3, (300, IN_FEATURES), jnp.float32)
    p2 = init_params(k4, IN_FEATURES, HIDDEN_FEATURES, 16, HIDDEN_LAYERS)
    out2 = jax.block_until_ready(mlp_forward(x2, p2))
    assert out2.shape == (300, 16), out2.shape
    assert jnp.allclose(out2, mlp_reference_bf16(x2, p2, HIDDEN_LAYERS),
                        atol=5e-3, rtol=5e-3), "mismatch vs bf16-mirrored reference"
    assert jnp.allclose(out2, mlp_reference_f32(x2, p2, HIDDEN_LAYERS),
                        atol=1e-1, rtol=1e-1), "mismatch vs f32 reference"

    print("KERNEL_OK")
</pallas_src>

<mosaic_0001>
module attributes {stable_mosaic.version = 11 : i64} {
  func.func @mlp_kernel(%arg0: i32, %arg1: memref<16x256xbf16, #tpu.memory_space<vmem>>, %arg2: memref<256x256xbf16, #tpu.memory_space<vmem>>, %arg3: memref<1x256xf32, #tpu.memory_space<vmem>>, %arg4: memref<256x256xbf16, #tpu.memory_space<vmem>>, %arg5: memref<1x256xf32, #tpu.memory_space<vmem>>, %arg6: memref<256x256xbf16, #tpu.memory_space<vmem>>, %arg7: memref<1x256xf32, #tpu.memory_space<vmem>>, %arg8: memref<256x256xbf16, #tpu.memory_space<vmem>>, %arg9: memref<1x256xf32, #tpu.memory_space<vmem>>, %arg10: memref<256x256xbf16, #tpu.memory_space<vmem>>, %arg11: memref<1x256xf32, #tpu.memory_space<vmem>>, %arg12: memref<256x256xbf16, #tpu.memory_space<vmem>>, %arg13: memref<1x256xf32, #tpu.memory_space<vmem>>, %arg14: memref<256x256xbf16, #tpu.memory_space<vmem>>, %arg15: memref<1x256xf32, #tpu.memory_space<vmem>>, %arg16: memref<256x128xbf16, #tpu.memory_space<vmem>>, %arg17: memref<1x128xf32, #tpu.memory_space<vmem>>, %arg18: memref<16x128xf32, #tpu.memory_space<vmem>>) attributes {dimension_semantics = [#tpu.dimension_semantics<parallel>], iteration_bounds = array<i64: 1>, scalar_prefetch = 0 : i64, scratch_operands = 0 : i64, tpu.core_type = #tpu.core_type<tc>, window_params = [{transform_indices = @transform_0, window_bounds = array<i64: 16, 256>}, {pipeline_mode = #tpu.pipeline_mode<synchronous>, transform_indices = @transform_1, window_bounds = array<i64: 256, 256>}, {pipeline_mode = #tpu.pipeline_mode<synchronous>, transform_indices = @transform_2, window_bounds = array<i64: 1, 256>}, {pipeline_mode = #tpu.pipeline_mode<synchronous>, transform_indices = @transform_3, window_bounds = array<i64: 256, 256>}, {pipeline_mode = #tpu.pipeline_mode<synchronous>, transform_indices = @transform_4, window_bounds = array<i64: 1, 256>}, {pipeline_mode = #tpu.pipeline_mode<synchronous>, transform_indices = @transform_5, window_bounds = array<i64: 256, 256>}, {pipeline_mode = #tpu.pipeline_mode<synchronous>, transform_indices = @transform_6, window_bounds = array<i64: 1, 256>}, {pipeline_mode = #tpu.pipeline_mode<synchronous>, transform_indices = @transform_7, window_bounds = array<i64: 256, 256>}, {pipeline_mode = #tpu.pipeline_mode<synchronous>, transform_indices = @transform_8, window_bounds = array<i64: 1, 256>}, {pipeline_mode = #tpu.pipeline_mode<synchronous>, transform_indices = @transform_9, window_bounds = array<i64: 256, 256>}, {pipeline_mode = #tpu.pipeline_mode<synchronous>, transform_indices = @transform_10, window_bounds = array<i64: 1, 256>}, {pipeline_mode = #tpu.pipeline_mode<synchronous>, transform_indices = @transform_11, window_bounds = array<i64: 256, 256>}, {pipeline_mode = #tpu.pipeline_mode<synchronous>, transform_indices = @transform_12, window_bounds = array<i64: 1, 256>}, {pipeline_mode = #tpu.pipeline_mode<synchronous>, transform_indices = @transform_13, window_bounds = array<i64: 256, 256>}, {pipeline_mode = #tpu.pipeline_mode<synchronous>, transform_indices = @transform_14, window_bounds = array<i64: 1, 256>}, {pipeline_mode = #tpu.pipeline_mode<synchronous>, transform_indices = @transform_15, window_bounds = array<i64: 256, 128>}, {pipeline_mode = #tpu.pipeline_mode<synchronous>, transform_indices = @transform_16, window_bounds = array<i64: 1, 128>}, {transform_indices = @transform_17, window_bounds = array<i64: 16, 128>}]} {
    %c0 = arith.constant 0 : index
    %c0_0 = arith.constant 0 : index
    %0 = vector.load %arg1[%c0, %c0_0] : memref<16x256xbf16, #tpu.memory_space<vmem>>, vector<16x256xbf16>
    %c0_1 = arith.constant 0 : index
    %c0_2 = arith.constant 0 : index
    %1 = vector.load %arg2[%c0_1, %c0_2] : memref<256x256xbf16, #tpu.memory_space<vmem>>, vector<256x256xbf16>
    %cst = arith.constant dense<0.000000e+00> : vector<16x256xf32>
    %2 = tpu.matmul %0, %1, %cst {dimension_numbers = #tpu.dot_dimension_numbers<[1], [0], [0], [1], [0, 0, 1, 1], [], []>} : vector<16x256xbf16>, vector<256x256xbf16>, vector<16x256xf32> -> vector<16x256xf32>
    %c0_3 = arith.constant 0 : index
    %c0_4 = arith.constant 0 : index
    %3 = vector.load %arg3[%c0_3, %c0_4] : memref<1x256xf32, #tpu.memory_space<vmem>>, vector<1x256xf32>
    %4 = vector.broadcast %3 : vector<1x256xf32> to vector<16x256xf32>
    %5 = arith.addf %2, %4 : vector<16x256xf32>
    %cst_5 = arith.constant 0.000000e+00 : f32
    %6 = vector.broadcast %cst_5 : f32 to vector<16x256xf32>
    %7 = arith.maximumf %5, %6 : vector<16x256xf32>
    %8 = arith.truncf %7 : vector<16x256xf32> to vector<16x256xbf16>
    %c0_6 = arith.constant 0 : index
    %c0_7 = arith.constant 0 : index
    %9 = vector.load %arg4[%c0_6, %c0_7] : memref<256x256xbf16, #tpu.memory_space<vmem>>, vector<256x256xbf16>
    %cst_8 = arith.constant dense<0.000000e+00> : vector<16x256xf32>
    %10 = tpu.matmul %8, %9, %cst_8 {dimension_numbers = #tpu.dot_dimension_numbers<[1], [0], [0], [1], [0, 0, 1, 1], [], []>} : vector<16x256xbf16>, vector<256x256xbf16>, vector<16x256xf32> -> vector<16x256xf32>
    %c0_9 = arith.constant 0 : index
    %c0_10 = arith.constant 0 : index
    %11 = vector.load %arg5[%c0_9, %c0_10] : memref<1x256xf32, #tpu.memory_space<vmem>>, vector<1x256xf32>
    %12 = vector.broadcast %11 : vector<1x256xf32> to vector<16x256xf32>
    %13 = arith.addf %10, %12 : vector<16x256xf32>
    %cst_11 = arith.constant 0.000000e+00 : f32
    %14 = vector.broadcast %cst_11 : f32 to vector<16x256xf32>
    %15 = arith.maximumf %13, %14 : vector<16x256xf32>
    %16 = arith.truncf %15 : vector<16x256xf32> to vector<16x256xbf16>
    %c0_12 = arith.constant 0 : index
    %c0_13 = arith.constant 0 : index
    %17 = vector.load %arg6[%c0_12, %c0_13] : memref<256x256xbf16, #tpu.memory_space<vmem>>, vector<256x256xbf16>
    %cst_14 = arith.constant dense<0.000000e+00> : vector<16x256xf32>
    %18 = tpu.matmul %16, %17, %cst_14 {dimension_numbers = #tpu.dot_dimension_numbers<[1], [0], [0], [1], [0, 0, 1, 1], [], []>} : vector<16x256xbf16>, vector<256x256xbf16>, vector<16x256xf32> -> vector<16x256xf32>
    %c0_15 = arith.constant 0 : index
    %c0_16 = arith.constant 0 : index
    %19 = vector.load %arg7[%c0_15, %c0_16] : memref<1x256xf32, #tpu.memory_space<vmem>>, vector<1x256xf32>
    %20 = vector.broadcast %19 : vector<1x256xf32> to vector<16x256xf32>
    %21 = arith.addf %18, %20 : vector<16x256xf32>
    %cst_17 = arith.constant 0.000000e+00 : f32
    %22 = vector.broadcast %cst_17 : f32 to vector<16x256xf32>
    %23 = arith.maximumf %21, %22 : vector<16x256xf32>
    %24 = arith.truncf %23 : vector<16x256xf32> to vector<16x256xbf16>
    %c0_18 = arith.constant 0 : index
    %c0_19 = arith.constant 0 : index
    %25 = vector.load %arg8[%c0_18, %c0_19] : memref<256x256xbf16, #tpu.memory_space<vmem>>, vector<256x256xbf16>
    %cst_20 = arith.constant dense<0.000000e+00> : vector<16x256xf32>
    %26 = tpu.matmul %24, %25, %cst_20 {dimension_numbers = #tpu.dot_dimension_numbers<[1], [0], [0], [1], [0, 0, 1, 1], [], []>} : vector<16x256xbf16>, vector<256x256xbf16>, vector<16x256xf32> -> vector<16x256xf32>
    %c0_21 = arith.constant 0 : index
    %c0_22 = arith.constant 0 : index
    %27 = vector.load %arg9[%c0_21, %c0_22] : memref<1x256xf32, #tpu.memory_space<vmem>>, vector<1x256xf32>
    %28 = vector.broadcast %27 : vector<1x256xf32> to vector<16x256xf32>
    %29 = arith.addf %26, %28 : vector<16x256xf32>
    %cst_23 = arith.constant 0.000000e+00 : f32
    %30 = vector.broadcast %cst_23 : f32 to vector<16x256xf32>
    %31 = arith.maximumf %29, %30 : vector<16x256xf32>
    %32 = arith.truncf %31 : vector<16x256xf32> to vector<16x256xbf16>
    %c0_24 = arith.constant 0 : index
    %c0_25 = arith.constant 0 : index
    %33 = vector.load %arg1[%c0_24, %c0_25] : memref<16x256xbf16, #tpu.memory_space<vmem>>, vector<16x256xbf16>
    %34 = arith.extf %33 : vector<16x256xbf16> to vector<16x256xf32>
    %35 = arith.extf %32 : vector<16x256xbf16> to vector<16x256xf32>
    %36 = arith.addf %34, %35 : vector<16x256xf32>
    %37 = arith.truncf %36 : vector<16x256xf32> to vector<16x256xbf16>
    %c0_26 = arith.constant 0 : index
    %c0_27 = arith.constant 0 : index
    %38 = vector.load %arg10[%c0_26, %c0_27] : memref<256x256xbf16, #tpu.memory_space<vmem>>, vector<256x256xbf16>
    %cst_28 = arith.constant dense<0.000000e+00> : vector<16x256xf32>
    %39 = tpu.matmul %37, %38, %cst_28 {dimension_numbers = #tpu.dot_dimension_numbers<[1], [0], [0], [1], [0, 0, 1, 1], [], []>} : vector<16x256xbf16>, vector<256x256xbf16>, vector<16x256xf32> -> vector<16x256xf32>
    %c0_29 = arith.constant 0 : index
    %c0_30 = arith.constant 0 : index
    %40 = vector.load %arg11[%c0_29, %c0_30] : memref<1x256xf32, #tpu.memory_space<vmem>>, vector<1x256xf32>
    %41 = vector.broadcast %40 : vector<1x256xf32> to vector<16x256xf32>
    %42 = arith.addf %39, %41 : vector<16x256xf32>
    %cst_31 = arith.constant 0.000000e+00 : f32
    %43 = vector.broadcast %cst_31 : f32 to vector<16x256xf32>
    %44 = arith.maximumf %42, %43 : vector<16x256xf32>
    %45 = arith.truncf %44 : vector<16x256xf32> to vector<16x256xbf16>
    %c0_32 = arith.constant 0 : index
    %c0_33 = arith.constant 0 : index
    %46 = vector.load %arg12[%c0_32, %c0_33] : memref<256x256xbf16, #tpu.memory_space<vmem>>, vector<256x256xbf16>
    %cst_34 = arith.constant dense<0.000000e+00> : vector<16x256xf32>
    %47 = tpu.matmul %45, %46, %cst_34 {dimension_numbers = #tpu.dot_dimension_numbers<[1], [0], [0], [1], [0, 0, 1, 1], [], []>} : vector<16x256xbf16>, vector<256x256xbf16>, vector<16x256xf32> -> vector<16x256xf32>
    %c0_35 = arith.constant 0 : index
    %c0_36 = arith.constant 0 : index
    %48 = vector.load %arg13[%c0_35, %c0_36] : memref<1x256xf32, #tpu.memory_space<vmem>>, vector<1x256xf32>
    %49 = vector.broadcast %48 : vector<1x256xf32> to vector<16x256xf32>
    %50 = arith.addf %47, %49 : vector<16x256xf32>
    %cst_37 = arith.constant 0.000000e+00 : f32
    %51 = vector.broadcast %cst_37 : f32 to vector<16x256xf32>
    %52 = arith.maximumf %50, %51 : vector<16x256xf32>
    %53 = arith.truncf %52 : vector<16x256xf32> to vector<16x256xbf16>
    %c0_38 = arith.constant 0 : index
    %c0_39 = arith.constant 0 : index
    %54 = vector.load %arg14[%c0_38, %c0_39] : memref<256x256xbf16, #tpu.memory_space<vmem>>, vector<256x256xbf16>
    %cst_40 = arith.constant dense<0.000000e+00> : vector<16x256xf32>
    %55 = tpu.matmul %53, %54, %cst_40 {dimension_numbers = #tpu.dot_dimension_numbers<[1], [0], [0], [1], [0, 0, 1, 1], [], []>} : vector<16x256xbf16>, vector<256x256xbf16>, vector<16x256xf32> -> vector<16x256xf32>
    %c0_41 = arith.constant 0 : index
    %c0_42 = arith.constant 0 : index
    %56 = vector.load %arg15[%c0_41, %c0_42] : memref<1x256xf32, #tpu.memory_space<vmem>>, vector<1x256xf32>
    %57 = vector.broadcast %56 : vector<1x256xf32> to vector<16x256xf32>
    %58 = arith.addf %55, %57 : vector<16x256xf32>
    %cst_43 = arith.constant 0.000000e+00 : f32
    %59 = vector.broadcast %cst_43 : f32 to vector<16x256xf32>
    %60 = arith.maximumf %58, %59 : vector<16x256xf32>
    %61 = arith.truncf %60 : vector<16x256xf32> to vector<16x256xbf16>
    %c0_44 = arith.constant 0 : index
    %c0_45 = arith.constant 0 : index
    %62 = vector.load %arg16[%c0_44, %c0_45] : memref<256x128xbf16, #tpu.memory_space<vmem>>, vector<256x128xbf16>
    %cst_46 = arith.constant dense<0.000000e+00> : vector<16x128xf32>
    %63 = tpu.matmul %61, %62, %cst_46 {dimension_numbers = #tpu.dot_dimension_numbers<[1], [0], [0], [1], [0, 0, 1, 1], [], []>} : vector<16x256xbf16>, vector<256x128xbf16>, vector<16x128xf32> -> vector<16x128xf32>
    %c0_47 = arith.constant 0 : index
    %c0_48 = arith.constant 0 : index
    %64 = vector.load %arg17[%c0_47, %c0_48] : memref<1x128xf32, #tpu.memory_space<vmem>>, vector<1x128xf32>
    %65 = vector.broadcast %64 : vector<1x128xf32> to vector<16x128xf32>
    %66 = arith.addf %63, %65 : vector<16x128xf32>
    %cst_49 = arith.constant 0.000000e+00 : f32
    %67 = vector.broadcast %cst_49 : f32 to vector<16x128xf32>
    %68 = arith.maximumf %66, %67 : vector<16x128xf32>
    %c0_50 = arith.constant 0 : index
    %c0_51 = arith.constant 0 : index
    %69 = vector.load %arg18[%c0_50, %c0_51] : memref<16x128xf32, #tpu.memory_space<vmem>>, vector<16x128xf32>
    tpu.vector_store %arg18[%c0_50, %c0_51], %68 {strides = array<i32>} : memref<16x128xf32, #tpu.memory_space<vmem>>, vector<16x128xf32>,
    return
  }
  func.func @transform_0(%arg0: i32) -> (i32, i32) {
    %c0_i32 = arith.constant 0 : i32
    %c0_i32_0 = arith.constant 0 : i32
    return %arg0, %c0_i32 : i32, i32
  }
  func.func @transform_1(%arg0: i32) -> (i32, i32) {
    %c0_i32 = arith.constant 0 : i32
    %c0_i32_0 = arith.constant 0 : i32
    %c0_i32_1 = arith.constant 0 : i32
    return %c0_i32, %c0_i32_0 : i32, i32
  }
  func.func @transform_2(%arg0: i32) -> (i32, i32) {
    %c0_i32 = arith.constant 0 : i32
    %c0_i32_0 = arith.constant 0 : i32
    %c0_i32_1 = arith.constant 0 : i32
    return %c0_i32, %c0_i32_0 : i32, i32
  }
  func.func @transform_3(%arg0: i32) -> (i32, i32) {
    %c0_i32 = arith.constant 0 : i32
    %c0_i32_0 = arith.constant 0 : i32
    %c0_i32_1 = arith.constant 0 : i32
    return %c0_i32, %c0_i32_0 : i32, i32
  }
  func.func @transform_4(%arg0: i32) -> (i32, i32) {
    %c0_i32 = arith.constant 0 : i32
    %c0_i32_0 = arith.constant 0 : i32
    %c0_i32_1 = arith.constant 0 : i32
    return %c0_i32, %c0_i32_0 : i32, i32
  }
  func.func @transform_5(%arg0: i32) -> (i32, i32) {
    %c0_i32 = arith.constant 0 : i32
    %c0_i32_0 = arith.constant 0 : i32
    %c0_i32_1 = arith.constant 0 : i32
    return %c0_i32, %c0_i32_0 : i32, i32
  }
  func.func @transform_6(%arg0: i32) -> (i32, i32) {
    %c0_i32 = arith.constant 0 : i32
    %c0_i32_0 = arith.constant 0 : i32
    %c0_i32_1 = arith.constant 0 : i32
    return %c0_i32, %c0_i32_0 : i32, i32
  }
  func.func @transform_7(%arg0: i32) -> (i32, i32) {
    %c0_i32 = arith.constant 0 : i32
    %c0_i32_0 = arith.constant 0 : i32
    %c0_i32_1 = arith.constant 0 : i32
    return %c0_i32, %c0_i32_0 : i32, i32
  }
  func.func @transform_8(%arg0: i32) -> (i32, i32) {
    %c0_i32 = arith.constant 0 : i32
    %c0_i32_0 = arith.constant 0 : i32
    %c0_i32_1 = arith.constant 0 : i32
    return %c0_i32, %c0_i32_0 : i32, i32
  }
  func.func @transform_9(%arg0: i32) -> (i32, i32) {
    %c0_i32 = arith.constant 0 : i32
    %c0_i32_0 = arith.constant 0 : i32
    %c0_i32_1 = arith.constant 0 : i32
    return %c0_i32, %c0_i32_0 : i32, i32
  }
  func.func @transform_10(%arg0: i32) -> (i32, i32) {
    %c0_i32 = arith.constant 0 : i32
    %c0_i32_0 = arith.constant 0 : i32
    %c0_i32_1 = arith.constant 0 : i32
    return %c0_i32, %c0_i32_0 : i32, i32
  }
  func.func @transform_11(%arg0: i32) -> (i32, i32) {
    %c0_i32 = arith.constant 0 : i32
    %c0_i32_0 = arith.constant 0 : i32
    %c0_i32_1 = arith.constant 0 : i32
    return %c0_i32, %c0_i32_0 : i32, i32
  }
  func.func @transform_12(%arg0: i32) -> (i32, i32) {
    %c0_i32 = arith.constant 0 : i32
    %c0_i32_0 = arith.constant 0 : i32
    %c0_i32_1 = arith.constant 0 : i32
    return %c0_i32, %c0_i32_0 : i32, i32
  }
  func.func @transform_13(%arg0: i32) -> (i32, i32) {
    %c0_i32 = arith.constant 0 : i32
    %c0_i32_0 = arith.constant 0 : i32
    %c0_i32_1 = arith.constant 0 : i32
    return %c0_i32, %c0_i32_0 : i32, i32
  }
  func.func @transform_14(%arg0: i32) -> (i32, i32) {
    %c0_i32 = arith.constant 0 : i32
    %c0_i32_0 = arith.constant 0 : i32
    %c0_i32_1 = arith.constant 0 : i32
    return %c0_i32, %c0_i32_0 : i32, i32
  }
  func.func @transform_15(%arg0: i32) -> (i32, i32) {
    %c0_i32 = arith.constant 0 : i32
    %c0_i32_0 = arith.constant 0 : i32
    %c0_i32_1 = arith.constant 0 : i32
    return %c0_i32, %c0_i32_0 : i32, i32
  }
  func.func @transform_16(%arg0: i32) -> (i32, i32) {
    %c0_i32 = arith.constant 0 : i32
    %c0_i32_0 = arith.constant 0 : i32
    %c0_i32_1 = arith.constant 0 : i32
    return %c0_i32, %c0_i32_0 : i32, i32
  }
  func.func @transform_17(%arg0: i32) -> (i32, i32) {
    %c0_i32 = arith.constant 0 : i32
    %c0_i32_0 = arith.constant 0 : i32
    return %arg0, %c0_i32 : i32, i32
  }
}

module attributes {stable_mosaic.version = 11 : i64} {
  func.func @mlp_kernel(%arg0: i32, %arg1: memref<16x256xbf16, #tpu.memory_space<vmem>>, %arg2: memref<256x256xbf16, #tpu.memory_space<vmem>>, %arg3: memref<1x256xf32, #tpu.memory_space<vmem>>, %arg4: memref<256x256xbf16, #tpu.memory_space<vmem>>, %arg5: memref<1x256xf32, #tpu.memory_space<vmem>>, %arg6: memref<256x256xbf16, #tpu.memory_space<vmem>>, %arg7: memref<1x256xf32, #tpu.memory_space<vmem>>, %arg8: memref<256x256xbf16, #tpu.memory_space<vmem>>, %arg9: memref<1x256xf32, #tpu.memory_space<vmem>>, %arg10: memref<256x256xbf16, #tpu.memory_space<vmem>>, %arg11: memref<1x256xf32, #tpu.memory_space<vmem>>, %arg12: memref<256x256xbf16, #tpu.memory_space<vmem>>, %arg13: memref<1x256xf32, #tpu.memory_space<vmem>>, %arg14: memref<256x256xbf16, #tpu.memory_space<vmem>>, %arg15: memref<1x256xf32, #tpu.memory_space<vmem>>, %arg16: memref<256x128xbf16, #tpu.memory_space<vmem>>, %arg17: memref<1x128xf32, #tpu.memory_space<vmem>>, %arg18: memref<16x128xf32, #tpu.memory_space<vmem>>) attributes {dimension_semantics = [#tpu.dimension_semantics<parallel>], iteration_bounds = array<i64: 1>, scalar_prefetch = 0 : i64, scratch_operands = 0 : i64, tpu.core_type = #tpu.core_type<tc>, window_params = [{transform_indices = @transform_0, window_bounds = array<i64: 16, 256>}, {pipeline_mode = #tpu.pipeline_mode<synchronous>, transform_indices = @transform_1, window_bounds = array<i64: 256, 256>}, {pipeline_mode = #tpu.pipeline_mode<synchronous>, transform_indices = @transform_2, window_bounds = array<i64: 1, 256>}, {pipeline_mode = #tpu.pipeline_mode<synchronous>, transform_indices = @transform_3, window_bounds = array<i64: 256, 256>}, {pipeline_mode = #tpu.pipeline_mode<synchronous>, transform_indices = @transform_4, window_bounds = array<i64: 1, 256>}, {pipeline_mode = #tpu.pipeline_mode<synchronous>, transform_indices = @transform_5, window_bounds = array<i64: 256, 256>}, {pipeline_mode = #tpu.pipeline_mode<synchronous>, transform_indices = @transform_6, window_bounds = array<i64: 1, 256>}, {pipeline_mode = #tpu.pipeline_mode<synchronous>, transform_indices = @transform_7, window_bounds = array<i64: 256, 256>}, {pipeline_mode = #tpu.pipeline_mode<synchronous>, transform_indices = @transform_8, window_bounds = array<i64: 1, 256>}, {pipeline_mode = #tpu.pipeline_mode<synchronous>, transform_indices = @transform_9, window_bounds = array<i64: 256, 256>}, {pipeline_mode = #tpu.pipeline_mode<synchronous>, transform_indices = @transform_10, window_bounds = array<i64: 1, 256>}, {pipeline_mode = #tpu.pipeline_mode<synchronous>, transform_indices = @transform_11, window_bounds = array<i64: 256, 256>}, {pipeline_mode = #tpu.pipeline_mode<synchronous>, transform_indices = @transform_12, window_bounds = array<i64: 1, 256>}, {pipeline_mode = #tpu.pipeline_mode<synchronous>, transform_indices = @transform_13, window_bounds = array<i64: 256, 256>}, {pipeline_mode = #tpu.pipeline_mode<synchronous>, transform_indices = @transform_14, window_bounds = array<i64: 1, 256>}, {pipeline_mode = #tpu.pipeline_mode<synchronous>, transform_indices = @transform_15, window_bounds = array<i64: 256, 128>}, {pipeline_mode = #tpu.pipeline_mode<synchronous>, transform_indices = @transform_16, window_bounds = array<i64: 1, 128>}, {transform_indices = @transform_17, window_bounds = array<i64: 16, 128>}]} {
    %c0 = arith.constant 0 : index
    %c0_0 = arith.constant 0 : index
    %0 = vector.load %arg1[%c0, %c0_0] : memref<16x256xbf16, #tpu.memory_space<vmem>>, vector<16x256xbf16>
    %c0_1 = arith.constant 0 : index
    %c0_2 = arith.constant 0 : index
    %1 = vector.load %arg2[%c0_1, %c0_2] : memref<256x256xbf16, #tpu.memory_space<vmem>>, vector<256x256xbf16>
    %cst = arith.constant dense<0.000000e+00> : vector<16x256xf32>
    %2 = tpu.matmul %0, %1, %cst {dimension_numbers = #tpu.dot_dimension_numbers<[1], [0], [0], [1], [0, 0, 1, 1], [], []>} : vector<16x256xbf16>, vector<256x256xbf16>, vector<16x256xf32> -> vector<16x256xf32>
    %c0_3 = arith.constant 0 : index
    %c0_4 = arith.constant 0 : index
    %3 = vector.load %arg3[%c0_3, %c0_4] : memref<1x256xf32, #tpu.memory_space<vmem>>, vector<1x256xf32>
    %4 = vector.broadcast %3 : vector<1x256xf32> to vector<16x256xf32>
    %5 = arith.addf %2, %4 : vector<16x256xf32>
    %cst_5 = arith.constant 0.000000e+00 : f32
    %6 = vector.broadcast %cst_5 : f32 to vector<16x256xf32>
    %7 = arith.maximumf %5, %6 : vector<16x256xf32>
    %8 = arith.truncf %7 : vector<16x256xf32> to vector<16x256xbf16>
    %c0_6 = arith.constant 0 : index
    %c0_7 = arith.constant 0 : index
    %9 = vector.load %arg4[%c0_6, %c0_7] : memref<256x256xbf16, #tpu.memory_space<vmem>>, vector<256x256xbf16>
    %cst_8 = arith.constant dense<0.000000e+00> : vector<16x256xf32>
    %10 = tpu.matmul %8, %9, %cst_8 {dimension_numbers = #tpu.dot_dimension_numbers<[1], [0], [0], [1], [0, 0, 1, 1], [], []>} : vector<16x256xbf16>, vector<256x256xbf16>, vector<16x256xf32> -> vector<16x256xf32>
    %c0_9 = arith.constant 0 : index
    %c0_10 = arith.constant 0 : index
    %11 = vector.load %arg5[%c0_9, %c0_10] : memref<1x256xf32, #tpu.memory_space<vmem>>, vector<1x256xf32>
    %12 = vector.broadcast %11 : vector<1x256xf32> to vector<16x256xf32>
    %13 = arith.addf %10, %12 : vector<16x256xf32>
    %cst_11 = arith.constant 0.000000e+00 : f32
    %14 = vector.broadcast %cst_11 : f32 to vector<16x256xf32>
    %15 = arith.maximumf %13, %14 : vector<16x256xf32>
    %16 = arith.truncf %15 : vector<16x256xf32> to vector<16x256xbf16>
    %c0_12 = arith.constant 0 : index
    %c0_13 = arith.constant 0 : index
    %17 = vector.load %arg6[%c0_12, %c0_13] : memref<256x256xbf16, #tpu.memory_space<vmem>>, vector<256x256xbf16>
    %cst_14 = arith.constant dense<0.000000e+00> : vector<16x256xf32>
    %18 = tpu.matmul %16, %17, %cst_14 {dimension_numbers = #tpu.dot_dimension_numbers<[1], [0], [0], [1], [0, 0, 1, 1], [], []>} : vector<16x256xbf16>, vector<256x256xbf16>, vector<16x256xf32> -> vector<16x256xf32>
    %c0_15 = arith.constant 0 : index
    %c0_16 = arith.constant 0 : index
    %19 = vector.load %arg7[%c0_15, %c0_16] : memref<1x256xf32, #tpu.memory_space<vmem>>, vector<1x256xf32>
    %20 = vector.broadcast %19 : vector<1x256xf32> to vector<16x256xf32>
    %21 = arith.addf %18, %20 : vector<16x256xf32>
    %cst_17 = arith.constant 0.000000e+00 : f32
    %22 = vector.broadcast %cst_17 : f32 to vector<16x256xf32>
    %23 = arith.maximumf %21, %22 : vector<16x256xf32>
    %24 = arith.truncf %23 : vector<16x256xf32> to vector<16x256xbf16>
    %c0_18 = arith.constant 0 : index
    %c0_19 = arith.constant 0 : index
    %25 = vector.load %arg8[%c0_18, %c0_19] : memref<256x256xbf16, #tpu.memory_space<vmem>>, vector<256x256xbf16>
    %cst_20 = arith.constant dense<0.000000e+00> : vector<16x256xf32>
    %26 = tpu.matmul %24, %25, %cst_20 {dimension_numbers = #tpu.dot_dimension_numbers<[1], [0], [0], [1], [0, 0, 1, 1], [], []>} : vector<16x256xbf16>, vector<256x256xbf16>, vector<16x256xf32> -> vector<16x256xf32>
    %c0_21 = arith.constant 0 : index
    %c0_22 = arith.constant 0 : index
    %27 = vector.load %arg9[%c0_21, %c0_22] : memref<1x256xf32, #tpu.memory_space<vmem>>, vector<1x256xf32>
    %28 = vector.broadcast %27 : vector<1x256xf32> to vector<16x256xf32>
    %29 = arith.addf %26, %28 : vector<16x256xf32>
    %cst_23 = arith.constant 0.000000e+00 : f32
    %30 = vector.broadcast %cst_23 : f32 to vector<16x256xf32>
    %31 = arith.maximumf %29, %30 : vector<16x256xf32>
    %32 = arith.truncf %31 : vector<16x256xf32> to vector<16x256xbf16>
    %c0_24 = arith.constant 0 : index
    %c0_25 = arith.constant 0 : index
    %33 = vector.load %arg1[%c0_24, %c0_25] : memref<16x256xbf16, #tpu.memory_space<vmem>>, vector<16x256xbf16>
    %34 = arith.extf %33 : vector<16x256xbf16> to vector<16x256xf32>
    %35 = arith.extf %32 : vector<16x256xbf16> to vector<16x256xf32>
    %36 = arith.addf %34, %35 : vector<16x256xf32>
    %37 = arith.truncf %36 : vector<16x256xf32> to vector<16x256xbf16>
    %c0_26 = arith.constant 0 : index
    %c0_27 = arith.constant 0 : index
    %38 = vector.load %arg10[%c0_26, %c0_27] : memref<256x256xbf16, #tpu.memory_space<vmem>>, vector<256x256xbf16>
    %cst_28 = arith.constant dense<0.000000e+00> : vector<16x256xf32>
    %39 = tpu.matmul %37, %38, %cst_28 {dimension_numbers = #tpu.dot_dimension_numbers<[1], [0], [0], [1], [0, 0, 1, 1], [], []>} : vector<16x256xbf16>, vector<256x256xbf16>, vector<16x256xf32> -> vector<16x256xf32>
    %c0_29 = arith.constant 0 : index
    %c0_30 = arith.constant 0 : index
    %40 = vector.load %arg11[%c0_29, %c0_30] : memref<1x256xf32, #tpu.memory_space<vmem>>, vector<1x256xf32>
    %41 = vector.broadcast %40 : vector<1x256xf32> to vector<16x256xf32>
    %42 = arith.addf %39, %41 : vector<16x256xf32>
    %cst_31 = arith.constant 0.000000e+00 : f32
    %43 = vector.broadcast %cst_31 : f32 to vector<16x256xf32>
    %44 = arith.maximumf %42, %43 : vector<16x256xf32>
    %45 = arith.truncf %44 : vector<16x256xf32> to vector<16x256xbf16>
    %c0_32 = arith.constant 0 : index
    %c0_33 = arith.constant 0 : index
    %46 = vector.load %arg12[%c0_32, %c0_33] : memref<256x256xbf16, #tpu.memory_space<vmem>>, vector<256x256xbf16>
    %cst_34 = arith.constant dense<0.000000e+00> : vector<16x256xf32>
    %47 = tpu.matmul %45, %46, %cst_34 {dimension_numbers = #tpu.dot_dimension_numbers<[1], [0], [0], [1], [0, 0, 1, 1], [], []>} : vector<16x256xbf16>, vector<256x256xbf16>, vector<16x256xf32> -> vector<16x256xf32>
    %c0_35 = arith.constant 0 : index
    %c0_36 = arith.constant 0 : index
    %48 = vector.load %arg13[%c0_35, %c0_36] : memref<1x256xf32, #tpu.memory_space<vmem>>, vector<1x256xf32>
    %49 = vector.broadcast %48 : vector<1x256xf32> to vector<16x256xf32>
    %50 = arith.addf %47, %49 : vector<16x256xf32>
    %cst_37 = arith.constant 0.000000e+00 : f32
    %51 = vector.broadcast %cst_37 : f32 to vector<16x256xf32>
    %52 = arith.maximumf %50, %51 : vector<16x256xf32>
    %53 = arith.truncf %52 : vector<16x256xf32> to vector<16x256xbf16>
    %c0_38 = arith.constant 0 : index
    %c0_39 = arith.constant 0 : index
    %54 = vector.load %arg14[%c0_38, %c0_39] : memref<256x256xbf16, #tpu.memory_space<vmem>>, vector<256x256xbf16>
    %cst_40 = arith.constant dense<0.000000e+00> : vector<16x256xf32>
    %55 = tpu.matmul %53, %54, %cst_40 {dimension_numbers = #tpu.dot_dimension_numbers<[1], [0], [0], [1], [0, 0, 1, 1], [], []>} : vector<16x256xbf16>, vector<256x256xbf16>, vector<16x256xf32> -> vector<16x256xf32>
    %c0_41 = arith.constant 0 : index
    %c0_42 = arith.constant 0 : index
    %56 = vector.load %arg15[%c0_41, %c0_42] : memref<1x256xf32, #tpu.memory_space<vmem>>, vector<1x256xf32>
    %57 = vector.broadcast %56 : vector<1x256xf32> to vector<16x256xf32>
    %58 = arith.addf %55, %57 : vector<16x256xf32>
    %cst_43 = arith.constant 0.000000e+00 : f32
    %59 = vector.broadcast %cst_43 : f32 to vector<16x256xf32>
    %60 = arith.maximumf %58, %59 : vector<16x256xf32>
    %61 = arith.truncf %60 : vector<16x256xf32> to vector<16x256xbf16>
    %c0_44 = arith.constant 0 : index
    %c0_45 = arith.constant 0 : index
    %62 = vector.load %arg16[%c0_44, %c0_45] : memref<256x128xbf16, #tpu.memory_space<vmem>>, vector<256x128xbf16>
    %cst_46 = arith.constant dense<0.000000e+00> : vector<16x128xf32>
    %63 = tpu.matmul %61, %62, %cst_46 {dimension_numbers = #tpu.dot_dimension_numbers<[1], [0], [0], [1], [0, 0, 1, 1], [], []>} : vector<16x256xbf16>, vector<256x128xbf16>, vector<16x128xf32> -> vector<16x128xf32>
    %c0_47 = arith.constant 0 : index
    %c0_48 = arith.constant 0 : index
    %64 = vector.load %arg17[%c0_47, %c0_48] : memref<1x128xf32, #tpu.memory_space<vmem>>, vector<1x128xf32>
    %65 = vector.broadcast %64 : vector<1x128xf32> to vector<16x128xf32>
    %66 = arith.addf %63, %65 : vector<16x128xf32>
    %cst_49 = arith.constant 0.000000e+00 : f32
    %67 = vector.broadcast %cst_49 : f32 to vector<16x128xf32>
    %68 = arith.maximumf %66, %67 : vector<16x128xf32>
    %c0_50 = arith.constant 0 : index
    %c0_51 = arith.constant 0 : index
    %69 = vector.load %arg18[%c0_50, %c0_51] : memref<16x128xf32, #tpu.memory_space<vmem>>, vector<16x128xf32>
    tpu.vector_store %arg18[%c0_50, %c0_51], %68 {strides = array<i32>} : memref<16x128xf32, #tpu.memory_space<vmem>>, vector<16x128xf32>,
    return
  }
  func.func @transform_0(%arg0: i32) -> (i32, i32) {
    %c0_i32 = arith.constant 0 : i32
    %c0_i32_0 = arith.constant 0 : i32
    return %arg0, %c0_i32 : i32, i32
  }
  func.func @transform_1(%arg0: i32) -> (i32, i32) {
    %c0_i32 = arith.constant 0 : i32
    %c0_i32_0 = arith.constant 0 : i32
    %c0_i32_1 = arith.constant 0 : i32
    return %c0_i32, %c0_i32_0 : i32, i32
  }
  func.func @transform_2(%arg0: i32) -> (i32, i32) {
    %c0_i32 = arith.constant 0 : i32
    %c0_i32_0 = arith.constant 0 : i32
    %c0_i32_1 = arith.constant 0 : i32
    return %c0_i32, %c0_i32_0 : i32, i32
  }
  func.func @transform_3(%arg0: i32) -> (i32, i32) {
    %c0_i32 = arith.constant 0 : i32
    %c0_i32_0 = arith.constant 0 : i32
    %c0_i32_1 = arith.constant 0 : i32
    return %c0_i32, %c0_i32_0 : i32, i32
  }
  func.func @transform_4(%arg0: i32) -> (i32, i32) {
    %c0_i32 = arith.constant 0 : i32
    %c0_i32_0 = arith.constant 0 : i32
    %c0_i32_1 = arith.constant 0 : i32
    return %c0_i32, %c0_i32_0 : i32, i32
  }
  func.func @transform_5(%arg0: i32) -> (i32, i32) {
    %c0_i32 = arith.constant 0 : i32
    %c0_i32_0 = arith.constant 0 : i32
    %c0_i32_1 = arith.constant 0 : i32
    return %c0_i32, %c0_i32_0 : i32, i32
  }
  func.func @transform_6(%arg0: i32) -> (i32, i32) {
    %c0_i32 = arith.constant 0 : i32
    %c0_i32_0 = arith.constant 0 : i32
    %c0_i32_1 = arith.constant 0 : i32
    return %c0_i32, %c0_i32_0 : i32, i32
  }
  func.func @transform_7(%arg0: i32) -> (i32, i32) {
    %c0_i32 = arith.constant 0 : i32
    %c0_i32_0 = arith.constant 0 : i32
    %c0_i32_1 = arith.constant 0 : i32
    return %c0_i32, %c0_i32_0 : i32, i32
  }
  func.func @transform_8(%arg0: i32) -> (i32, i32) {
    %c0_i32 = arith.constant 0 : i32
    %c0_i32_0 = arith.constant 0 : i32
    %c0_i32_1 = arith.constant 0 : i32
    return %c0_i32, %c0_i32_0 : i32, i32
  }
  func.func @transform_9(%arg0: i32) -> (i32, i32) {
    %c0_i32 = arith.constant 0 : i32
    %c0_i32_0 = arith.constant 0 : i32
    %c0_i32_1 = arith.constant 0 : i32
    return %c0_i32, %c0_i32_0 : i32, i32
  }
  func.func @transform_10(%arg0: i32) -> (i32, i32) {
    %c0_i32 = arith.constant 0 : i32
    %c0_i32_0 = arith.constant 0 : i32
    %c0_i32_1 = arith.constant 0 : i32
    return %c0_i32, %c0_i32_0 : i32, i32
  }
  func.func @transform_11(%arg0: i32) -> (i32, i32) {
    %c0_i32 = arith.constant 0 : i32
    %c0_i32_0 = arith.constant 0 : i32
    %c0_i32_1 = arith.constant 0 : i32
    return %c0_i32, %c0_i32_0 : i32, i32
  }
  func.func @transform_12(%arg0: i32) -> (i32, i32) {
    %c0_i32 = arith.constant 0 : i32
    %c0_i32_0 = arith.constant 0 : i32
    %c0_i32_1 = arith.constant 0 : i32
    return %c0_i32, %c0_i32_0 : i32, i32
  }
  func.func @transform_13(%arg0: i32) -> (i32, i32) {
    %c0_i32 = arith.constant 0 : i32
    %c0_i32_0 = arith.constant 0 : i32
    %c0_i32_1 = arith.constant 0 : i32
    return %c0_i32, %c0_i32_0 : i32, i32
  }
  func.func @transform_14(%arg0: i32) -> (i32, i32) {
    %c0_i32 = arith.constant 0 : i32
    %c0_i32_0 = arith.constant 0 : i32
    %c0_i32_1 = arith.constant 0 : i32
    return %c0_i32, %c0_i32_0 : i32, i32
  }
  func.func @transform_15(%arg0: i32) -> (i32, i32) {
    %c0_i32 = arith.constant 0 : i32
    %c0_i32_0 = arith.constant 0 : i32
    %c0_i32_1 = arith.constant 0 : i32
    return %c0_i32, %c0_i32_0 : i32, i32
  }
  func.func @transform_16(%arg0: i32) -> (i32, i32) {
    %c0_i32 = arith.constant 0 : i32
    %c0_i32_0 = arith.constant 0 : i32
    %c0_i32_1 = arith.constant 0 : i32
    return %c0_i32, %c0_i32_0 : i32, i32
  }
  func.func @transform_17(%arg0: i32) -> (i32, i32) {
    %c0_i32 = arith.constant 0 : i32
    %c0_i32_0 = arith.constant 0 : i32
    return %arg0, %c0_i32 : i32, i32
  }
}

</mosaic_0001>

<llo_original>
// kernel: tpu_custom_call.1
$region0: #{tpu_custom_call.1}
  #allocation0 [shape = 'u32[]', space=smem, size = 0x4, offset = 0x4, fixed_abs, tag = 'smem constant byte address 0x4 - core index']
  #allocation1 [shape = 'u32[144,128]{1,0:T(1,128)}', space=vmem, size = 0x12000, scoped, tag = 'internal scratch']
  %s0 = inlined_call_operand.hbm [shape: bf16[16,256], index: 0, kind: input, shape index: {}]
  %s1 = inlined_call_operand.hbm [shape: bf16[256,256], index: 1, kind: input, shape index: {}]
  %s2 = inlined_call_operand.vmem [shape: f32[1,256], index: 2, kind: input, shape index: {}]
  %s3 = inlined_call_operand.hbm [shape: bf16[256,256], index: 3, kind: input, shape index: {}]
  %s4 = inlined_call_operand.vmem [shape: f32[1,256], index: 4, kind: input, shape index: {}]
  %s5 = inlined_call_operand.hbm [shape: bf16[256,256], index: 5, kind: input, shape index: {}]
  %s6 = inlined_call_operand.vmem [shape: f32[1,256], index: 6, kind: input, shape index: {}]
  %s7 = inlined_call_operand.hbm [shape: bf16[256,256], index: 7, kind: input, shape index: {}]
  %s8 = inlined_call_operand.vmem [shape: f32[1,256], index: 8, kind: input, shape index: {}]
  %s9 = inlined_call_operand.hbm [shape: bf16[256,256], index: 9, kind: input, shape index: {}]
  %s10 = inlined_call_operand.vmem [shape: f32[1,256], index: 10, kind: input, shape index: {}]
  %s11 = inlined_call_operand.hbm [shape: bf16[256,256], index: 11, kind: input, shape index: {}]
  %s12 = inlined_call_operand.vmem [shape: f32[1,256], index: 12, kind: input, shape index: {}]
  %s13 = inlined_call_operand.hbm [shape: bf16[256,256], index: 13, kind: input, shape index: {}]
  %s14 = inlined_call_operand.vmem [shape: f32[1,256], index: 14, kind: input, shape index: {}]
  %s15 = inlined_call_operand.hbm [shape: bf16[256,128], index: 15, kind: input, shape index: {}]
  %s16 = inlined_call_operand.vmem [shape: f32[1,128], index: 16, kind: input, shape index: {}]
  %s17 = inlined_call_operand.hbm [shape: f32[16,128], index: 17, kind: output, shape index: {}]
  %s18 = sld [smem:[#allocation0]]
  $region114: #{tpu_custom_call.1} parent=0
    _
  %s20 = ssub.s32 1, %s18
  %s21 = scalar_select 0, %s20, %s18
  $region1: #{tpu_custom_call.1} parent=0
    #allocation2 [shape = 'u8[8192]{0}', space=vmem, size = 0x2000, scoped, tag = 'input window, operand 0, single buffered']
    #allocation3 [shape = 's32[1]{0}', space=sflag, size = 0x4, scoped, tag = 'scoped memory for tpu_custom_call.1']
    #allocation4 [shape = 's32[1]{0}', space=sflag, size = 0x4, scoped, tag = 'scoped memory for tpu_custom_call.1']
    #allocation5 [shape = 'u8[131072]{0}', space=vmem, size = 0x20000, scoped, tag = 'input window, operand 1, single buffered']
    #allocation6 [shape = 's32[1]{0}', space=sflag, size = 0x4, scoped, tag = 'scoped memory for tpu_custom_call.1']
    #allocation7 [shape = 'u8[131072]{0}', space=vmem, size = 0x20000, scoped, tag = 'input window, operand 3, single buffered']
    #allocation8 [shape = 'u8[131072]{0}', space=vmem, size = 0x20000, scoped, tag = 'input window, operand 5, single buffered']
    #allocation9 [shape = 's32[1]{0}', space=sflag, size = 0x4, scoped, tag = 'scoped memory for tpu_custom_call.1']
    #allocation10 [shape = 'u8[131072]{0}', space=vmem, size = 0x20000, scoped, tag = 'input window, operand 7, single buffered']
    #allocation11 [shape = 'u8[131072]{0}', space=vmem, size = 0x20000, scoped, tag = 'input window, operand 9, single buffered']
    #allocation12 [shape = 's32[1]{0}', space=sflag, size = 0x4, scoped, tag = 'scoped memory for tpu_custom_call.1']
    #allocation13 [shape = 'u8[131072]{0}', space=vmem, size = 0x20000, scoped, tag = 'input window, operand 11, single buffered']
    #allocation14 [shape = 'u8[131072]{0}', space=vmem, size = 0x20000, scoped, tag = 'input window, operand 13, single buffered']
    #allocation15 [shape = 's32[1]{0}', space=sflag, size = 0x4, scoped, tag = 'scoped memory for tpu_custom_call.1']
    #allocation16 [shape = 'u8[65536]{0}', space=vmem, size = 0x10000, scoped, tag = 'input window, operand 15, single buffered']
    #allocation17 [shape = 'u8[8192]{0}', space=vmem, size = 0x2000, scoped, tag = 'output window, operand 0, single buffered']
    %22 = vsyncpa [#allocation3], 0
    %23 = vsyncpa [#allocation6], 0
    %24 = vsyncpa [#allocation9], 0
    %25 = vsyncpa [#allocation12], 0
    %26 = vsyncpa [#allocation15], 0
    %27 = vsyncpa [#allocation4], 0
    // Predicated region
    $region2: #{tpu_custom_call.1} parent=1 // pred_check
      _
    $region3: #{tpu_custom_call.1} parent=1 // pred_check_branch
      %29 = sbr.rel (0) target = $region5
    $region4: #{tpu_custom_call.1} parent=1 // pred_region
      %s31 = ssub.s32 256, 256
      %32 = vsyncadd [#allocation3], %s31
      %s33 = sshll.u32 [#allocation2], 4
      %s34 = int_to_ptr.vmem [resolvable:$true] %s33
      %39 = dma.hbm_to_vmem [thread:$0]  %s0, 256, %s34, [#allocation3], 128, 128, 8
    $region5: #{tpu_custom_call.1} parent=1 // pred_fallthru
      _
    // Predicated region
    $region6: #{tpu_custom_call.1} parent=1 // pred_check
      _
    $region7: #{tpu_custom_call.1} parent=1 // pred_check_branch
      %41 = sbr.rel (0) target = $region9
    $region8: #{tpu_custom_call.1} parent=1 // pred_region
      %s43 = ssub.s32 4096, 4096
      %44 = vsyncadd [#allocation6], %s43
      %s45 = sshll.u32 [#allocation5], 4
      %s46 = int_to_ptr.vmem [resolvable:$true] %s45
      %51 = dma.hbm_to_vmem [thread:$0]  %s1, 4096, %s46, [#allocation6], 128, 128, 8
    $region9: #{tpu_custom_call.1} parent=1 // pred_fallthru
      _
    // Predicated region
    $region10: #{tpu_custom_call.1} parent=1 // pred_check
      _
    $region11: #{tpu_custom_call.1} parent=1 // pred_check_branch
      %53 = sbr.rel (0) target = $region13
    $region12: #{tpu_custom_call.1} parent=1 // pred_region
      _
    $region13: #{tpu_custom_call.1} parent=1 // pred_fallthru
      _
    // Predicated region
    $region14: #{tpu_custom_call.1} parent=1 // pred_check
      _
    $region15: #{tpu_custom_call.1} parent=1 // pred_check_branch
      %55 = sbr.rel (0) target = $region17
    $region16: #{tpu_custom_call.1} parent=1 // pred_region
      %s57 = ssub.s32 4096, 4096
      %58 = vsyncadd [#allocation6], %s57
      %s59 = sshll.u32 [#allocation7], 4
      %s60 = int_to_ptr.vmem [resolvable:$true] %s59
      %65 = dma.hbm_to_vmem [thread:$0]  %s3, 4096, %s60, [#allocation6], 128, 128, 8
    $region17: #{tpu_custom_call.1} parent=1 // pred_fallthru
      _
    // Predicated region
    $region18: #{tpu_custom_call.1} parent=1 // pred_check
      _
    $region19: #{tpu_custom_call.1} parent=1 // pred_check_branch
      %67 = sbr.rel (0) target = $region21
    $region20: #{tpu_custom_call.1} parent=1 // pred_region
      _
    $region21: #{tpu_custom_call.1} parent=1 // pred_fallthru
      _
    // Predicated region
    $region22: #{tpu_custom_call.1} parent=1 // pred_check
      _
    $region23: #{tpu_custom_call.1} parent=1 // pred_check_branch
      %69 = sbr.rel (0) target = $region25
    $region24: #{tpu_custom_call.1} parent=1 // pred_region
      %s71 = ssub.s32 4096, 4096
      %72 = vsyncadd [#allocation9], %s71
      %s73 = sshll.u32 [#allocation8], 4
      %s74 = int_to_ptr.vmem [resolvable:$true] %s73
      %79 = dma.hbm_to_vmem [thread:$0]  %s5, 4096, %s74, [#allocation9], 128, 128, 8
    $region25: #{tpu_custom_call.1} parent=1 // pred_fallthru
      _
    // Predicated region
    $region26: #{tpu_custom_call.1} parent=1 // pred_check
      _
    $region27: #{tpu_custom_call.1} parent=1 // pred_check_branch
      %81 = sbr.rel (0) target = $region29
    $region28: #{tpu_custom_call.1} parent=1 // pred_region
      _
    $region29: #{tpu_custom_call.1} parent=1 // pred_fallthru
      _
    // Predicated region
    $region30: #{tpu_custom_call.1} parent=1 // pred_check
      _
    $region31: #{tpu_custom_call.1} parent=1 // pred_check_branch
      %83 = sbr.rel (0) target = $region33
    $region32: #{tpu_custom_call.1} parent=1 // pred_region
      %s85 = ssub.s32 4096, 4096
      %86 = vsyncadd [#allocation9], %s85
      %s87 = sshll.u32 [#allocation10], 4
      %s88 = int_to_ptr.vmem [resolvable:$true] %s87
      %93 = dma.hbm_to_vmem [thread:$0]  %s7, 4096, %s88, [#allocation9], 128, 128, 8
    $region33: #{tpu_custom_call.1} parent=1 // pred_fallthru
      _
    // Predicated region
    $region34: #{tpu_custom_call.1} parent=1 // pred_check
      _
    $region35: #{tpu_custom_call.1} parent=1 // pred_check_branch
      %95 = sbr.rel (0) target = $region37
    $region36: #{tpu_custom_call.1} parent=1 // pred_region
      _
    $region37: #{tpu_custom_call.1} parent=1 // pred_fallthru
      _
    // Predicated region
    $region38: #{tpu_custom_call.1} parent=1 // pred_check
      _
    $region39: #{tpu_custom_call.1} parent=1 // pred_check_branch
      %97 = sbr.rel (0) target = $region41
    $region40: #{tpu_custom_call.1} parent=1 // pred_region
      %s99 = ssub.s32 4096, 4096
      %100 = vsyncadd [#allocation12], %s99
      %s101 = sshll.u32 [#allocation11], 4
      %s102 = int_to_ptr.vmem [resolvable:$true] %s101
      %107 = dma.hbm_to_vmem [thread:$0]  %s9, 4096, %s102, [#allocation12], 128, 128, 8
    $region41: #{tpu_custom_call.1} parent=1 // pred_fallthru
      _
    // Predicated region
    $region42: #{tpu_custom_call.1} parent=1 // pred_check
      _
    $region43: #{tpu_custom_call.1} parent=1 // pred_check_branch
      %109 = sbr.rel (0) target = $region45
    $region44: #{tpu_custom_call.1} parent=1 // pred_region
      _
    $region45: #{tpu_custom_call.1} parent=1 // pred_fallthru
      _
    // Predicated region
    $region46: #{tpu_custom_call.1} parent=1 // pred_check
      _
    $region47: #{tpu_custom_call.1} parent=1 // pred_check_branch
      %111 = sbr.rel (0) target = $region49
    $region48: #{tpu_custom_call.1} parent=1 // pred_region
      %s113 = ssub.s32 4096, 4096
      %114 = vsyncadd [#allocation12], %s113
      %s115 = sshll.u32 [#allocation13], 4
      %s116 = int_to_ptr.vmem [resolvable:$true] %s115
      %121 = dma.hbm_to_vmem [thread:$0]  %s11, 4096, %s116, [#allocation12], 128, 128, 8
    $region49: #{tpu_custom_call.1} parent=1 // pred_fallthru
      _
    // Predicated region
    $region50: #{tpu_custom_call.1} parent=1 // pred_check
      _
    $region51: #{tpu_custom_call.1} parent=1 // pred_check_branch
      %123 = sbr.rel (0) target = $region53
    $region52: #{tpu_custom_call.1} parent=1 // pred_region
      _
    $region53: #{tpu_custom_call.1} parent=1 // pred_fallthru
      _
    // Predicated region
    $region54: #{tpu_custom_call.1} parent=1 // pred_check
      _
    $region55: #{tpu_custom_call.1} parent=1 // pred_check_branch
      %125 = sbr.rel (0) target = $region57
    $region56: #{tpu_custom_call.1} parent=1 // pred_region
      %s127 = ssub.s32 4096, 4096
      %128 = vsyncadd [#allocation15], %s127
      %s129 = sshll.u32 [#allocation14], 4
      %s130 = int_to_ptr.vmem [resolvable:$true] %s129
      %135 = dma.hbm_to_vmem [thread:$0]  %s13, 4096, %s130, [#allocation15], 128, 128, 8
    $region57: #{tpu_custom_call.1} parent=1 // pred_fallthru
      _
    // Predicated region
    $region58: #{tpu_custom_call.1} parent=1 // pred_check
      _
    $region59: #{tpu_custom_call.1} parent=1 // pred_check_branch
      %137 = sbr.rel (0) target = $region61
    $region60: #{tpu_custom_call.1} parent=1 // pred_region
      _
    $region61: #{tpu_custom_call.1} parent=1 // pred_fallthru
      _
    // Predicated region
    $region62: #{tpu_custom_call.1} parent=1 // pred_check
      _
    $region63: #{tpu_custom_call.1} parent=1 // pred_check_branch
      %139 = sbr.rel (0) target = $region65
    $region64: #{tpu_custom_call.1} parent=1 // pred_region
      %s141 = ssub.s32 2048, 2048
      %142 = vsyncadd [#allocation15], %s141
      %s143 = sshll.u32 [#allocation16], 4
      %s144 = int_to_ptr.vmem [resolvable:$true] %s143
      %149 = dma.hbm_to_vmem [thread:$0]  %s15, 2048, %s144, [#allocation15], 64, 64, 4
    $region65: #{tpu_custom_call.1} parent=1 // pred_fallthru
      _
    // Predicated region
    $region66: #{tpu_custom_call.1} parent=1 // pred_check
      _
    $region67: #{tpu_custom_call.1} parent=1 // pred_check_branch
      %151 = sbr.rel (0) target = $region69
    $region68: #{tpu_custom_call.1} parent=1 // pred_region
      _
    $region69: #{tpu_custom_call.1} parent=1 // pred_fallthru
      _
    // Predicated region
    $region70: #{tpu_custom_call.1} parent=1 // pred_check
      _
    $region71: #{tpu_custom_call.1} parent=1 // pred_check_branch
      %153 = sbr.rel (0) target = $region73
    $region72: #{tpu_custom_call.1} parent=1 // pred_region
      %154 = dma.done [#allocation3], 256
    $region73: #{tpu_custom_call.1} parent=1 // pred_fallthru
      _
    // Predicated region
    $region74: #{tpu_custom_call.1} parent=1 // pred_check
      _
    $region75: #{tpu_custom_call.1} parent=1 // pred_check_branch
      %156 = sbr.rel (0) target = $region77
    $region76: #{tpu_custom_call.1} parent=1 // pred_region
      %157 = dma.done [#allocation6], 4096
    $region77: #{tpu_custom_call.1} parent=1 // pred_fallthru
      _
    // Predicated region
    $region78: #{tpu_custom_call.1} parent=1 // pred_check
      _
    $region79: #{tpu_custom_call.1} parent=1 // pred_check_branch
      %159 = sbr.rel (0) target = $region81
    $region80: #{tpu_custom_call.1} parent=1 // pred_region
      %160 = dma.done [#allocation6], 4096
    $region81: #{tpu_custom_call.1} parent=1 // pred_fallthru
      _
    // Predicated region
    $region82: #{tpu_custom_call.1} parent=1 // pred_check
      _
    $region83: #{tpu_custom_call.1} parent=1 // pred_check_branch
      %162 = sbr.rel (0) target = $region85
    $region84: #{tpu_custom_call.1} parent=1 // pred_region
      %163 = dma.done [#allocation9], 4096
    $region85: #{tpu_custom_call.1} parent=1 // pred_fallthru
      _
    // Predicated region
    $region86: #{tpu_custom_call.1} parent=1 // pred_check
      _
    $region87: #{tpu_custom_call.1} parent=1 // pred_check_branch
      %165 = sbr.rel (0) target = $region89
    $region88: #{tpu_custom_call.1} parent=1 // pred_region
      %166 = dma.done [#allocation9], 4096
    $region89: #{tpu_custom_call.1} parent=1 // pred_fallthru
      _
    // Predicated region
    $region90: #{tpu_custom_call.1} parent=1 // pred_check
      _
    $region91: #{tpu_custom_call.1} parent=1 // pred_check_branch
      %168 = sbr.rel (0) target = $region93
    $region92: #{tpu_custom_call.1} parent=1 // pred_region
      %169 = dma.done [#allocation12], 4096
    $region93: #{tpu_custom_call.1} parent=1 // pred_fallthru
      _
    // Predicated region
    $region94: #{tpu_custom_call.1} parent=1 // pred_check
      _
    $region95: #{tpu_custom_call.1} parent=1 // pred_check_branch
      %171 = sbr.rel (0) target = $region97
    $region96: #{tpu_custom_call.1} parent=1 // pred_region
      %172 = dma.done [#allocation12], 4096
    $region97: #{tpu_custom_call.1} parent=1 // pred_fallthru
      _
    // Predicated region
    $region98: #{tpu_custom_call.1} parent=1 // pred_check
      _
    $region99: #{tpu_custom_call.1} parent=1 // pred_check_branch
      %174 = sbr.rel (0) target = $region101
    $region100: #{tpu_custom_call.1} parent=1 // pred_region
      %175 = dma.done [#allocation15], 4096
    $region101: #{tpu_custom_call.1} parent=1 // pred_fallthru
      _
    // Predicated region
    $region102: #{tpu_custom_call.1} parent=1 // pred_check
      _
    $region103: #{tpu_custom_call.1} parent=1 // pred_check_branch
      %177 = sbr.rel (0) target = $region105
    $region104: #{tpu_custom_call.1} parent=1 // pred_region
      %178 = dma.done [#allocation15], 2048
    $region105: #{tpu_custom_call.1} parent=1 // pred_fallthru
      _
    %v180 = vld [vmem:[#allocation2] sm:$0xff]
    %v181 = vld [vmem:[#allocation2 + $0x8] sm:$0xff]
    %v182 = vld [vmem:[#allocation5] sm:$0xff]
    %v183 = vld [vmem:[#allocation5 + $0x8] sm:$0xff]
    %v184 = vld [vmem:[#allocation5 + $0x10] sm:$0xff]
    %v185 = vld [vmem:[#allocation5 + $0x18] sm:$0xff]
    %v186 = vld [vmem:[#allocation5 + $0x20] sm:$0xff]
    %v187 = vld [vmem:[#allocation5 + $0x28] sm:$0xff]
    %v188 = vld [vmem:[#allocation5 + $0x30] sm:$0xff]
    %v189 = vld [vmem:[#allocation5 + $0x38] sm:$0xff]
    %v190 = vld [vmem:[#allocation5 + $0x40] sm:$0xff]
    %v191 = vld [vmem:[#allocation5 + $0x48] sm:$0xff]
    %v192 = vld [vmem:[#allocation5 + $0x50] sm:$0xff]
    %v193 = vld [vmem:[#allocation5 + $0x58] sm:$0xff]
    %v194 = vld [vmem:[#allocation5 + $0x60] sm:$0xff]
    %v195 = vld [vmem:[#allocation5 + $0x68] sm:$0xff]
    %v196 = vld [vmem:[#allocation5 + $0x70] sm:$0xff]
    %v197 = vld [vmem:[#allocation5 + $0x78] sm:$0xff]
    %v198 = vld [vmem:[#allocation5 + $0x80] sm:$0xff]
    %v199 = vld [vmem:[#allocation5 + $0x88] sm:$0xff]
    %v200 = vld [vmem:[#allocation5 + $0x90] sm:$0xff]
    %v201 = vld [vmem:[#allocation5 + $0x98] sm:$0xff]
    %v202 = vld [vmem:[#allocation5 + $0xa0] sm:$0xff]
    %v203 = vld [vmem:[#allocation5 + $0xa8] sm:$0xff]
    %v204 = vld [vmem:[#allocation5 + $0xb0] sm:$0xff]
    %v205 = vld [vmem:[#allocation5 + $0xb8] sm:$0xff]
    %v206 = vld [vmem:[#allocation5 + $0xc0] sm:$0xff]
    %v207 = vld [vmem:[#allocation5 + $0xc8] sm:$0xff]
    %v208 = vld [vmem:[#allocation5 + $0xd0] sm:$0xff]
    %v209 = vld [vmem:[#allocation5 + $0xd8] sm:$0xff]
    %v210 = vld [vmem:[#allocation5 + $0xe0] sm:$0xff]
    %v211 = vld [vmem:[#allocation5 + $0xe8] sm:$0xff]
    %v212 = vld [vmem:[#allocation5 + $0xf0] sm:$0xff]
    %v213 = vld [vmem:[#allocation5 + $0xf8] sm:$0xff]
    %v214 = vld [vmem:[%s2] sm:$0x3]
    %v216 = vlaneseq
    %v217 = vshrl.u32 %v216, 7
    %v218 = vsub.s32 0, %v217
    %v219 = vrot.slane %v214, %v218
    %v220 = vlaneseq
    %v221 = vshrl.u32 %v220, 7
    %v222 = vsub.s32 1, %v221
    %v223 = vrot.slane %v214, %v222
    %v228 = vunpack.c.l.b16 %v180
    %v229 = vunpack.c.h.b16 %v180
    %v230 = vunpack.c.l.b16 %v181
    %v231 = vunpack.c.h.b16 %v181
    %v232 = vpack.c.b16 %v230, %v228
    %v233 = vpack.c.b16 %v231, %v229
    %v268 = vunpack.c.l.b16 %v182
    %v269 = vunpack.c.h.b16 %v182
    %v270 = vunpack.c.l.b16 %v183
    %v271 = vunpack.c.h.b16 %v183
    %v272 = vunpack.c.l.b16 %v184
    %v273 = vunpack.c.h.b16 %v184
    %v274 = vunpack.c.l.b16 %v185
    %v275 = vunpack.c.h.b16 %v185
    %v276 = vunpack.c.l.b16 %v186
    %v277 = vunpack.c.h.b16 %v186
    %v278 = vunpack.c.l.b16 %v187
    %v279 = vunpack.c.h.b16 %v187
    %v280 = vunpack.c.l.b16 %v188
    %v281 = vunpack.c.h.b16 %v188
    %v282 = vunpack.c.l.b16 %v189
    %v283 = vunpack.c.h.b16 %v189
    %v284 = vunpack.c.l.b16 %v190
    %v285 = vunpack.c.h.b16 %v190
    %v286 = vunpack.c.l.b16 %v191
    %v287 = vunpack.c.h.b16 %v191
    %v288 = vunpack.c.l.b16 %v192
    %v289 = vunpack.c.h.b16 %v192
    %v290 = vunpack.c.l.b16 %v193
    %v291 = vunpack.c.h.b16 %v193
    %v292 = vunpack.c.l.b16 %v194
    %v293 = vunpack.c.h.b16 %v194
    %v294 = vunpack.c.l.b16 %v195
    %v295 = vunpack.c.h.b16 %v195
    %v296 = vunpack.c.l.b16 %v196
    %v297 = vunpack.c.h.b16 %v196
    %v298 = vunpack.c.l.b16 %v197
    %v299 = vunpack.c.h.b16 %v197
    %v300 = vunpack.c.l.b16 %v198
    %v301 = vunpack.c.h.b16 %v198
    %v302 = vunpack.c.l.b16 %v199
    %v303 = vunpack.c.h.b16 %v199
    %v304 = vunpack.c.l.b16 %v200
    %v305 = vunpack.c.h.b16 %v200
    %v306 = vunpack.c.l.b16 %v201
    %v307 = vunpack.c.h.b16 %v201
    %v308 = vunpack.c.l.b16 %v202
    %v309 = vunpack.c.h.b16 %v202
    %v310 = vunpack.c.l.b16 %v203
    %v311 = vunpack.c.h.b16 %v203
    %v312 = vunpack.c.l.b16 %v204
    %v313 = vunpack.c.h.b16 %v204
    %v314 = vunpack.c.l.b16 %v205
    %v315 = vunpack.c.h.b16 %v205
    %v316 = vunpack.c.l.b16 %v206
    %v317 = vunpack.c.h.b16 %v206
    %v318 = vunpack.c.l.b16 %v207
    %v319 = vunpack.c.h.b16 %v207
    %v320 = vunpack.c.l.b16 %v208
    %v321 = vunpack.c.h.b16 %v208
    %v322 = vunpack.c.l.b16 %v209
    %v323 = vunpack.c.h.b16 %v209
    %v324 = vunpack.c.l.b16 %v210
    %v325 = vunpack.c.h.b16 %v210
    %v326 = vunpack.c.l.b16 %v211
    %v327 = vunpack.c.h.b16 %v211
    %v328 = vunpack.c.l.b16 %v212
    %v329 = vunpack.c.h.b16 %v212
    %v330 = vunpack.c.l.b16 %v213
    %v331 = vunpack.c.h.b16 %v213
    %v332 = vpack.c.b16 %v270, %v268
    %v333 = vpack.c.b16 %v271, %v269
    %v334 = vpack.c.b16 %v274, %v272
    %v335 = vpack.c.b16 %v275, %v273
    %v336 = vpack.c.b16 %v278, %v276
    %v337 = vpack.c.b16 %v279, %v277
    %v338 = vpack.c.b16 %v282, %v280
    %v339 = vpack.c.b16 %v283, %v281
    %v340 = vpack.c.b16 %v286, %v284
    %v341 = vpack.c.b16 %v287, %v285
    %v342 = vpack.c.b16 %v290, %v288
    %v343 = vpack.c.b16 %v291, %v289
    %v344 = vpack.c.b16 %v294, %v292
    %v345 = vpack.c.b16 %v295, %v293
    %v346 = vpack.c.b16 %v298, %v296
    %v347 = vpack.c.b16 %v299, %v297
    %v348 = vpack.c.b16 %v302, %v300
    %v349 = vpack.c.b16 %v303, %v301
    %v350 = vpack.c.b16 %v306, %v304
    %v351 = vpack.c.b16 %v307, %v305
    %v352 = vpack.c.b16 %v310, %v308
    %v353 = vpack.c.b16 %v311, %v309
    %v354 = vpack.c.b16 %v314, %v312
    %v355 = vpack.c.b16 %v315, %v313
    %v356 = vpack.c.b16 %v318, %v316
    %v357 = vpack.c.b16 %v319, %v317
    %v358 = vpack.c.b16 %v322, %v320
    %v359 = vpack.c.b16 %v323, %v321
    %v360 = vpack.c.b16 %v326, %v324
    %v361 = vpack.c.b16 %v327, %v325
    %v362 = vpack.c.b16 %v330, %v328
    %v363 = vpack.c.b16 %v331, %v329
    %396 = vmatprep.subr.bf16.mxu0 %v347
    %397 = vmatpush1.bf16.msra.mxu0 %v346
    %398 = vmatprep.subr.bf16.mxu0 %v345
    %399 = vmatpush1.bf16.msra.mxu0 %v344
    %400 = vmatprep.subr.bf16.mxu0 %v343
    %401 = vmatpush1.bf16.msra.mxu0 %v342
    %402 = vmatprep.subr.bf16.mxu0 %v341
    %403 = vmatpush1.bf16.msra.mxu0 %v340
    %404 = vmatprep.subr.bf16.mxu0 %v339
    %405 = vmatpush1.bf16.msra.mxu0 %v338
    %406 = vmatprep.subr.bf16.mxu0 %v337
    %407 = vmatpush1.bf16.msra.mxu0 %v336
    %408 = vmatprep.subr.bf16.mxu0 %v335
    %409 = vmatpush1.bf16.msra.mxu0 %v334
    %410 = vmatprep.subr.bf16.mxu0 %v333
    %411 = vmatpush1.bf16.msra.mxu0 %v332
    %412 = vmatprep.subr.bf16.mxu0 %v363
    %413 = vmatpush2.bf16.msra.mxu0 %v362
    %414 = vmatprep.subr.bf16.mxu0 %v361
    %415 = vmatpush2.bf16.msra.mxu0 %v360
    %416 = vmatprep.subr.bf16.mxu0 %v359
    %417 = vmatpush2.bf16.msra.mxu0 %v358
    %418 = vmatprep.subr.bf16.mxu0 %v357
    %419 = vmatpush2.bf16.msra.mxu0 %v356
    %420 = vmatprep.subr.bf16.mxu0 %v355
    %421 = vmatpush2.bf16.msra.mxu0 %v354
    %422 = vmatprep.subr.bf16.mxu0 %v353
    %423 = vmatpush2.bf16.msra.mxu0 %v352
    %424 = vmatprep.subr.bf16.mxu0 %v351
    %425 = vmatpush2.bf16.msra.mxu0 %v350
    %426 = vmatprep.subr.bf16.mxu0 %v349
    %427 = vmatpush2.bf16.msra.mxu0 %v348
    %428 = vmatprep.mubr.bf16.mxu0 %v233
    %429 = vmatmul.mubr.bf16.gmra.mxu0 %v232
    %v430 = vpop.f32.mrf.mxu0
    %v431 = vadd.f32 %v219, %v430
    %v432 = vpop.f32.mrf.mxu0
    %v433 = vadd.f32 %v223, %v432
    %v434 = vpop.f32.mrf.mxu0
    %v435 = vadd.f32 %v219, %v434
    %v436 = vpop.f32.mrf.mxu0
    %v437 = vadd.f32 %v223, %v436
    %438 = vdwg.mxu0
    %v439 = vmax.f32 %v431, 0.0
    %v440 = vmax.f32 %v433, 0.0
    %v441 = vmax.f32 %v435, 0.0
    %v442 = vmax.f32 %v437, 0.0
    %v443 = vpack.c.bf16 %v441, %v439
    %v444 = vpack.c.bf16 %v442, %v440
    %v445 = vld [vmem:[#allocation7] sm:$0xff]
    %v446 = vld [vmem:[#allocation7 + $0x8] sm:$0xff]
    %v447 = vld [vmem:[#allocation7 + $0x10] sm:$0xff]
    %v448 = vld [vmem:[#allocation7 + $0x18] sm:$0xff]
    %v449 = vld [vmem:[#allocation7 + $0x20] sm:$0xff]
    %v450 = vld [vmem:[#allocation7 + $0x28] sm:$0xff]
    %v451 = vld [vmem:[#allocation7 + $0x30] sm:$0xff]
    %v452 = vld [vmem:[#allocation7 + $0x38] sm:$0xff]
    %v453 = vld [vmem:[#allocation7 + $0x40] sm:$0xff]
    %v454 = vld [vmem:[#allocation7 + $0x48] sm:$0xff]
    %v455 = vld [vmem:[#allocation7 + $0x50] sm:$0xff]
    %v456 = vld [vmem:[#allocation7 + $0x58] sm:$0xff]
    %v457 = vld [vmem:[#allocation7 + $0x60] sm:$0xff]
    %v458 = vld [vmem:[#allocation7 + $0x68] sm:$0xff]
    %v459 = vld [vmem:[#allocation7 + $0x70] sm:$0xff]
    %v460 = vld [vmem:[#allocation7 + $0x78] sm:$0xff]
    %v461 = vld [vmem:[#allocation7 + $0x80] sm:$0xff]
    %v462 = vld [vmem:[#allocation7 + $0x88] sm:$0xff]
    %v463 = vld [vmem:[#allocation7 + $0x90] sm:$0xff]
    %v464 = vld [vmem:[#allocation7 + $0x98] sm:$0xff]
    %v465 = vld [vmem:[#allocation7 + $0xa0] sm:$0xff]
    %v466 = vld [vmem:[#allocation7 + $0xa8] sm:$0xff]
    %v467 = vld [vmem:[#allocation7 + $0xb0] sm:$0xff]
    %v468 = vld [vmem:[#allocation7 + $0xb8] sm:$0xff]
    %v469 = vld [vmem:[#allocation7 + $0xc0] sm:$0xff]
    %v470 = vld [vmem:[#allocation7 + $0xc8] sm:$0xff]
    %v471 = vld [vmem:[#allocation7 + $0xd0] sm:$0xff]
    %v472 = vld [vmem:[#allocation7 + $0xd8] sm:$0xff]
    %v473 = vld [vmem:[#allocation7 + $0xe0] sm:$0xff]
    %v474 = vld [vmem:[#allocation7 + $0xe8] sm:$0xff]
    %v475 = vld [vmem:[#allocation7 + $0xf0] sm:$0xff]
    %v476 = vld [vmem:[#allocation7 + $0xf8] sm:$0xff]
    %v477 = vld [vmem:[%s4] sm:$0x3]
    %v479 = vlaneseq
    %v480 = vshrl.u32 %v479, 7
    %v481 = vsub.s32 0, %v480
    %v482 = vrot.slane %v477, %v481
    %v483 = vlaneseq
    %v484 = vshrl.u32 %v483, 7
    %v485 = vsub.s32 1, %v484
    %v486 = vrot.slane %v477, %v485
    %v521 = vunpack.c.l.b16 %v445
    %v522 = vunpack.c.h.b16 %v445
    %v523 = vunpack.c.l.b16 %v446
    %v524 = vunpack.c.h.b16 %v446
    %v525 = vunpack.c.l.b16 %v447
    %v526 = vunpack.c.h.b16 %v447
    %v527 = vunpack.c.l.b16 %v448
    %v528 = vunpack.c.h.b16 %v448
    %v529 = vunpack.c.l.b16 %v449
    %v530 = vunpack.c.h.b16 %v449
    %v531 = vunpack.c.l.b16 %v450
    %v532 = vunpack.c.h.b16 %v450
    %v533 = vunpack.c.l.b16 %v451
    %v534 = vunpack.c.h.b16 %v451
    %v535 = vunpack.c.l.b16 %v452
    %v536 = vunpack.c.h.b16 %v452
    %v537 = vunpack.c.l.b16 %v453
    %v538 = vunpack.c.h.b16 %v453
    %v539 = vunpack.c.l.b16 %v454
    %v540 = vunpack.c.h.b16 %v454
    %v541 = vunpack.c.l.b16 %v455
    %v542 = vunpack.c.h.b16 %v455
    %v543 = vunpack.c.l.b16 %v456
    %v544 = vunpack.c.h.b16 %v456
    %v545 = vunpack.c.l.b16 %v457
    %v546 = vunpack.c.h.b16 %v457
    %v547 = vunpack.c.l.b16 %v458
    %v548 = vunpack.c.h.b16 %v458
    %v549 = vunpack.c.l.b16 %v459
    %v550 = vunpack.c.h.b16 %v459
    %v551 = vunpack.c.l.b16 %v460
    %v552 = vunpack.c.h.b16 %v460
    %v553 = vunpack.c.l.b16 %v461
    %v554 = vunpack.c.h.b16 %v461
    %v555 = vunpack.c.l.b16 %v462
    %v556 = vunpack.c.h.b16 %v462
    %v557 = vunpack.c.l.b16 %v463
    %v558 = vunpack.c.h.b16 %v463
    %v559 = vunpack.c.l.b16 %v464
    %v560 = vunpack.c.h.b16 %v464
    %v561 = vunpack.c.l.b16 %v465
    %v562 = vunpack.c.h.b16 %v465
    %v563 = vunpack.c.l.b16 %v466
    %v564 = vunpack.c.h.b16 %v466
    %v565 = vunpack.c.l.b16 %v467
    %v566 = vunpack.c.h.b16 %v467
    %v567 = vunpack.c.l.b16 %v468
    %v568 = vunpack.c.h.b16 %v468
    %v569 = vunpack.c.l.b16 %v469
    %v570 = vunpack.c.h.b16 %v469
    %v571 = vunpack.c.l.b16 %v470
    %v572 = vunpack.c.h.b16 %v470
    %v573 = vunpack.c.l.b16 %v471
    %v574 = vunpack.c.h.b16 %v471
    %v575 = vunpack.c.l.b16 %v472
    %v576 = vunpack.c.h.b16 %v472
    %v577 = vunpack.c.l.b16 %v473
    %v578 = vunpack.c.h.b16 %v473
    %v579 = vunpack.c.l.b16 %v474
    %v580 = vunpack.c.h.b16 %v474
    %v581 = vunpack.c.l.b16 %v475
    %v582 = vunpack.c.h.b16 %v475
    %v583 = vunpack.c.l.b16 %v476
    %v584 = vunpack.c.h.b16 %v476
    %v585 = vpack.c.b16 %v523, %v521
    %v586 = vpack.c.b16 %v524, %v522
    %v587 = vpack.c.b16 %v527, %v525
    %v588 = vpack.c.b16 %v528, %v526
    %v589 = vpack.c.b16 %v531, %v529
    %v590 = vpack.c.b16 %v532, %v530
    %v591 = vpack.c.b16 %v535, %v533
    %v592 = vpack.c.b16 %v536, %v534
    %v593 = vpack.c.b16 %v539, %v537
    %v594 = vpack.c.b16 %v540, %v538
    %v595 = vpack.c.b16 %v543, %v541
    %v596 = vpack.c.b16 %v544, %v542
    %v597 = vpack.c.b16 %v547, %v545
    %v598 = vpack.c.b16 %v548, %v546
    %v599 = vpack.c.b16 %v551, %v549
    %v600 = vpack.c.b16 %v552, %v550
    %v601 = vpack.c.b16 %v555, %v553
    %v602 = vpack.c.b16 %v556, %v554
    %v603 = vpack.c.b16 %v559, %v557
    %v604 = vpack.c.b16 %v560, %v558
    %v605 = vpack.c.b16 %v563, %v561
    %v606 = vpack.c.b16 %v564, %v562
    %v607 = vpack.c.b16 %v567, %v565
    %v608 = vpack.c.b16 %v568, %v566
    %v609 = vpack.c.b16 %v571, %v569
    %v610 = vpack.c.b16 %v572, %v570
    %v611 = vpack.c.b16 %v575, %v573
    %v612 = vpack.c.b16 %v576, %v574
    %v613 = vpack.c.b16 %v579, %v577
    %v614 = vpack.c.b16 %v580, %v578
    %v615 = vpack.c.b16 %v583, %v581
    %v616 = vpack.c.b16 %v584, %v582
    %649 = vmatprep.subr.bf16.mxu0 %v600
    %650 = vmatpush1.bf16.msra.mxu0 %v599
    %651 = vmatprep.subr.bf16.mxu0 %v598
    %652 = vmatpush1.bf16.msra.mxu0 %v597
    %653 = vmatprep.subr.bf16.mxu0 %v596
    %654 = vmatpush1.bf16.msra.mxu0 %v595
    %655 = vmatprep.subr.bf16.mxu0 %v594
    %656 = vmatpush1.bf16.msra.mxu0 %v593
    %657 = vmatprep.subr.bf16.mxu0 %v592
    %658 = vmatpush1.bf16.msra.mxu0 %v591
    %659 = vmatprep.subr.bf16.mxu0 %v590
    %660 = vmatpush1.bf16.msra.mxu0 %v589
    %661 = vmatprep.subr.bf16.mxu0 %v588
    %662 = vmatpush1.bf16.msra.mxu0 %v587
    %663 = vmatprep.subr.bf16.mxu0 %v586
    %664 = vmatpush1.bf16.msra.mxu0 %v585
    %665 = vmatprep.subr.bf16.mxu0 %v616
    %666 = vmatpush2.bf16.msra.mxu0 %v615
    %667 = vmatprep.subr.bf16.mxu0 %v614
    %668 = vmatpush2.bf16.msra.mxu0 %v613
    %669 = vmatprep.subr.bf16.mxu0 %v612
    %670 = vmatpush2.bf16.msra.mxu0 %v611
    %671 = vmatprep.subr.bf16.mxu0 %v610
    %672 = vmatpush2.bf16.msra.mxu0 %v609
    %673 = vmatprep.subr.bf16.mxu0 %v608
    %674 = vmatpush2.bf16.msra.mxu0 %v607
    %675 = vmatprep.subr.bf16.mxu0 %v606
    %676 = vmatpush2.bf16.msra.mxu0 %v605
    %677 = vmatprep.subr.bf16.mxu0 %v604
    %678 = vmatpush2.bf16.msra.mxu0 %v603
    %679 = vmatprep.subr.bf16.mxu0 %v602
    %680 = vmatpush2.bf16.msra.mxu0 %v601
    %681 = vmatprep.mubr.bf16.mxu0 %v444
    %682 = vmatmul.mubr.bf16.gmra.mxu0 %v443
    %v683 = vpop.f32.mrf.mxu0
    %v684 = vadd.f32 %v482, %v683
    %v685 = vpop.f32.mrf.mxu0
    %v686 = vadd.f32 %v486, %v685
    %v687 = vpop.f32.mrf.mxu0
    %v688 = vadd.f32 %v482, %v687
    %v689 = vpop.f32.mrf.mxu0
    %v690 = vadd.f32 %v486, %v689
    %691 = vdwg.mxu0
    %v692 = vmax.f32 %v684, 0.0
    %v693 = vmax.f32 %v686, 0.0
    %v694 = vmax.f32 %v688, 0.0
    %v695 = vmax.f32 %v690, 0.0
    %v696 = vpack.c.bf16 %v694, %v692
    %v697 = vpack.c.bf16 %v695, %v693
    %v698 = vld [vmem:[#allocation8] sm:$0xff]
    %v699 = vld [vmem:[#allocation8 + $0x8] sm:$0xff]
    %v700 = vld [vmem:[#allocation8 + $0x10] sm:$0xff]
    %v701 = vld [vmem:[#allocation8 + $0x18] sm:$0xff]
    %v702 = vld [vmem:[#allocation8 + $0x20] sm:$0xff]
    %v703 = vld [vmem:[#allocation8 + $0x28] sm:$0xff]
    %v704 = vld [vmem:[#allocation8 + $0x30] sm:$0xff]
    %v705 = vld [vmem:[#allocation8 + $0x38] sm:$0xff]
    %v706 = vld [vmem:[#allocation8 + $0x40] sm:$0xff]
    %v707 = vld [vmem:[#allocation8 + $0x48] sm:$0xff]
    %v708 = vld [vmem:[#allocation8 + $0x50] sm:$0xff]
    %v709 = vld [vmem:[#allocation8 + $0x58] sm:$0xff]
    %v710 = vld [vmem:[#allocation8 + $0x60] sm:$0xff]
    %v711 = vld [vmem:[#allocation8 + $0x68] sm:$0xff]
    %v712 = vld [vmem:[#allocation8 + $0x70] sm:$0xff]
    %v713 = vld [vmem:[#allocation8 + $0x78] sm:$0xff]
    %v714 = vld [vmem:[#allocation8 + $0x80] sm:$0xff]
    %v715 = vld [vmem:[#allocation8 + $0x88] sm:$0xff]
    %v716 = vld [vmem:[#allocation8 + $0x90] sm:$0xff]
    %v717 = vld [vmem:[#allocation8 + $0x98] sm:$0xff]
    %v718 = vld [vmem:[#allocation8 + $0xa0] sm:$0xff]
    %v719 = vld [vmem:[#allocation8 + $0xa8] sm:$0xff]
    %v720 = vld [vmem:[#allocation8 + $0xb0] sm:$0xff]
    %v721 = vld [vmem:[#allocation8 + $0xb8] sm:$0xff]
    %v722 = vld [vmem:[#allocation8 + $0xc0] sm:$0xff]
    %v723 = vld [vmem:[#allocation8 + $0xc8] sm:$0xff]
    %v724 = vld [vmem:[#allocation8 + $0xd0] sm:$0xff]
    %v725 = vld [vmem:[#allocation8 + $0xd8] sm:$0xff]
    %v726 = vld [vmem:[#allocation8 + $0xe0] sm:$0xff]
    %v727 = vld [vmem:[#allocation8 + $0xe8] sm:$0xff]
    %v728 = vld [vmem:[#allocation8 + $0xf0] sm:$0xff]
    %v729 = vld [vmem:[#allocation8 + $0xf8] sm:$0xff]
    %v730 = vld [vmem:[%s6] sm:$0x3]
    %v732 = vlaneseq
    %v733 = vshrl.u32 %v732, 7
    %v734 = vsub.s32 0, %v733
    %v735 = vrot.slane %v730, %v734
    %v736 = vlaneseq
    %v737 = vshrl.u32 %v736, 7
    %v738 = vsub.s32 1, %v737
    %v739 = vrot.slane %v730, %v738
    %v774 = vunpack.c.l.b16 %v698
    %v775 = vunpack.c.h.b16 %v698
    %v776 = vunpack.c.l.b16 %v699
    %v777 = vunpack.c.h.b16 %v699
    %v778 = vunpack.c.l.b16 %v700
    %v779 = vunpack.c.h.b16 %v700
    %v780 = vunpack.c.l.b16 %v701
    %v781 = vunpack.c.h.b16 %v701
    %v782 = vunpack.c.l.b16 %v702
    %v783 = vunpack.c.h.b16 %v702
    %v784 = vunpack.c.l.b16 %v703
    %v785 = vunpack.c.h.b16 %v703
    %v786 = vunpack.c.l.b16 %v704
    %v787 = vunpack.c.h.b16 %v704
    %v788 = vunpack.c.l.b16 %v705
    %v789 = vunpack.c.h.b16 %v705
    %v790 = vunpack.c.l.b16 %v706
    %v791 = vunpack.c.h.b16 %v706
    %v792 = vunpack.c.l.b16 %v707
    %v793 = vunpack.c.h.b16 %v707
    %v794 = vunpack.c.l.b16 %v708
    %v795 = vunpack.c.h.b16 %v708
    %v796 = vunpack.c.l.b16 %v709
    %v797 = vunpack.c.h.b16 %v709
    %v798 = vunpack.c.l.b16 %v710
    %v799 = vunpack.c.h.b16 %v710
    %v800 = vunpack.c.l.b16 %v711
    %v801 = vunpack.c.h.b16 %v711
    %v802 = vunpack.c.l.b16 %v712
    %v803 = vunpack.c.h.b16 %v712
    %v804 = vunpack.c.l.b16 %v713
    %v805 = vunpack.c.h.b16 %v713
    %v806 = vunpack.c.l.b16 %v714
    %v807 = vunpack.c.h.b16 %v714
    %v808 = vunpack.c.l.b16 %v715
    %v809 = vunpack.c.h.b16 %v715
    %v810 = vunpack.c.l.b16 %v716
    %v811 = vunpack.c.h.b16 %v716
    %v812 = vunpack.c.l.b16 %v717
    %v813 = vunpack.c.h.b16 %v717
    %v814 = vunpack.c.l.b16 %v718
    %v815 = vunpack.c.h.b16 %v718
    %v816 = vunpack.c.l.b16 %v719
    %v817 = vunpack.c.h.b16 %v719
    %v818 = vunpack.c.l.b16 %v720
    %v819 = vunpack.c.h.b16 %v720
    %v820 = vunpack.c.l.b16 %v721
    %v821 = vunpack.c.h.b16 %v721
    %v822 = vunpack.c.l.b16 %v722
    %v823 = vunpack.c.h.b16 %v722
    %v824 = vunpack.c.l.b16 %v723
    %v825 = vunpack.c.h.b16 %v723
    %v826 = vunpack.c.l.b16 %v724
    %v827 = vunpack.c.h.b16 %v724
    %v828 = vunpack.c.l.b16 %v725
    %v829 = vunpack.c.h.b16 %v725
    %v830 = vunpack.c.l.b16 %v726
    %v831 = vunpack.c.h.b16 %v726
    %v832 = vunpack.c.l.b16 %v727
    %v833 = vunpack.c.h.b16 %v727
    %v834 = vunpack.c.l.b16 %v728
    %v835 = vunpack.c.h.b16 %v728
    %v836 = vunpack.c.l.b16 %v729
    %v837 = vunpack.c.h.b16 %v729
    %v838 = vpack.c.b16 %v776, %v774
    %v839 = vpack.c.b16 %v777, %v775
    %v840 = vpack.c.b16 %v780, %v778
    %v841 = vpack.c.b16 %v781, %v779
    %v842 = vpack.c.b16 %v784, %v782
    %v843 = vpack.c.b16 %v785, %v783
    %v844 = vpack.c.b16 %v788, %v786
    %v845 = vpack.c.b16 %v789, %v787
    %v846 = vpack.c.b16 %v792, %v790
    %v847 = vpack.c.b16 %v793, %v791
    %v848 = vpack.c.b16 %v796, %v794
    %v849 = vpack.c.b16 %v797, %v795
    %v850 = vpack.c.b16 %v800, %v798
    %v851 = vpack.c.b16 %v801, %v799
    %v852 = vpack.c.b16 %v804, %v802
    %v853 = vpack.c.b16 %v805, %v803
    %v854 = vpack.c.b16 %v808, %v806
    %v855 = vpack.c.b16 %v809, %v807
    %v856 = vpack.c.b16 %v812, %v810
    %v857 = vpack.c.b16 %v813, %v811
    %v858 = vpack.c.b16 %v816, %v814
    %v859 = vpack.c.b16 %v817, %v815
    %v860 = vpack.c.b16 %v820, %v818
    %v861 = vpack.c.b16 %v821, %v819
    %v862 = vpack.c.b16 %v824, %v822
    %v863 = vpack.c.b16 %v825, %v823
    %v864 = vpack.c.b16 %v828, %v826
    %v865 = vpack.c.b16 %v829, %v827
    %v866 = vpack.c.b16 %v832, %v830
    %v867 = vpack.c.b16 %v833, %v831
    %v868 = vpack.c.b16 %v836, %v834
    %v869 = vpack.c.b16 %v837, %v835
    %902 = vmatprep.subr.bf16.mxu0 %v853
    %903 = vmatpush1.bf16.msra.mxu0 %v852
    %904 = vmatprep.subr.bf16.mxu0 %v851
    %905 = vmatpush1.bf16.msra.mxu0 %v850
    %906 = vmatprep.subr.bf16.mxu0 %v849
    %907 = vmatpush1.bf16.msra.mxu0 %v848
    %908 = vmatprep.subr.bf16.mxu0 %v847
    %909 = vmatpush1.bf16.msra.mxu0 %v846
    %910 = vmatprep.subr.bf16.mxu0 %v845
    %911 = vmatpush1.bf16.msra.mxu0 %v844
    %912 = vmatprep.subr.bf16.mxu0 %v843
    %913 = vmatpush1.bf16.msra.mxu0 %v842
    %914 = vmatprep.subr.bf16.mxu0 %v841
    %915 = vmatpush1.bf16.msra.mxu0 %v840
    %916 = vmatprep.subr.bf16.mxu0 %v839
    %917 = vmatpush1.bf16.msra.mxu0 %v838
    %918 = vmatprep.subr.bf16.mxu0 %v869
    %919 = vmatpush2.bf16.msra.mxu0 %v868
    %920 = vmatprep.subr.bf16.mxu0 %v867
    %921 = vmatpush2.bf16.msra.mxu0 %v866
    %922 = vmatprep.subr.bf16.mxu0 %v865
    %923 = vmatpush2.bf16.msra.mxu0 %v864
    %924 = vmatprep.subr.bf16.mxu0 %v863
    %925 = vmatpush2.bf16.msra.mxu0 %v862
    %926 = vmatprep.subr.bf16.mxu0 %v861
    %927 = vmatpush2.bf16.msra.mxu0 %v860
    %928 = vmatprep.subr.bf16.mxu0 %v859
    %929 = vmatpush2.bf16.msra.mxu0 %v858
    %930 = vmatprep.subr.bf16.mxu0 %v857
    %931 = vmatpush2.bf16.msra.mxu0 %v856
    %932 = vmatprep.subr.bf16.mxu0 %v855
    %933 = vmatpush2.bf16.msra.mxu0 %v854
    %934 = vmatprep.mubr.bf16.mxu0 %v697
    %935 = vmatmul.mubr.bf16.gmra.mxu0 %v696
    %v936 = vpop.f32.mrf.mxu0
    %v937 = vadd.f32 %v735, %v936
    %v938 = vpop.f32.mrf.mxu0
    %v939 = vadd.f32 %v739, %v938
    %v940 = vpop.f32.mrf.mxu0
    %v941 = vadd.f32 %v735, %v940
    %v942 = vpop.f32.mrf.mxu0
    %v943 = vadd.f32 %v739, %v942
    %944 = vdwg.mxu0
    %v945 = vmax.f32 %v937, 0.0
    %v946 = vmax.f32 %v939, 0.0
    %v947 = vmax.f32 %v941, 0.0
    %v948 = vmax.f32 %v943, 0.0
    %v949 = vpack.c.bf16 %v947, %v945
    %v950 = vpack.c.bf16 %v948, %v946
    %v951 = vld [vmem:[#allocation10] sm:$0xff]
    %v952 = vld [vmem:[#allocation10 + $0x8] sm:$0xff]
    %v953 = vld [vmem:[#allocation10 + $0x10] sm:$0xff]
    %v954 = vld [vmem:[#allocation10 + $0x18] sm:$0xff]
    %v955 = vld [vmem:[#allocation10 + $0x20] sm:$0xff]
    %v956 = vld [vmem:[#allocation10 + $0x28] sm:$0xff]
    %v957 = vld [vmem:[#allocation10 + $0x30] sm:$0xff]
    %v958 = vld [vmem:[#allocation10 + $0x38] sm:$0xff]
    %v959 = vld [vmem:[#allocation10 + $0x40] sm:$0xff]
    %v960 = vld [vmem:[#allocation10 + $0x48] sm:$0xff]
    %v961 = vld [vmem:[#allocation10 + $0x50] sm:$0xff]
    %v962 = vld [vmem:[#allocation10 + $0x58] sm:$0xff]
    %v963 = vld [vmem:[#allocation10 + $0x60] sm:$0xff]
    %v964 = vld [vmem:[#allocation10 + $0x68] sm:$0xff]
    %v965 = vld [vmem:[#allocation10 + $0x70] sm:$0xff]
    %v966 = vld [vmem:[#allocation10 + $0x78] sm:$0xff]
    %v967 = vld [vmem:[#allocation10 + $0x80] sm:$0xff]
    %v968 = vld [vmem:[#allocation10 + $0x88] sm:$0xff]
    %v969 = vld [vmem:[#allocation10 + $0x90] sm:$0xff]
    %v970 = vld [vmem:[#allocation10 + $0x98] sm:$0xff]
    %v971 = vld [vmem:[#allocation10 + $0xa0] sm:$0xff]
    %v972 = vld [vmem:[#allocation10 + $0xa8] sm:$0xff]
    %v973 = vld [vmem:[#allocation10 + $0xb0] sm:$0xff]
    %v974 = vld [vmem:[#allocation10 + $0xb8] sm:$0xff]
    %v975 = vld [vmem:[#allocation10 + $0xc0] sm:$0xff]
    %v976 = vld [vmem:[#allocation10 + $0xc8] sm:$0xff]
    %v977 = vld [vmem:[#allocation10 + $0xd0] sm:$0xff]
    %v978 = vld [vmem:[#allocation10 + $0xd8] sm:$0xff]
    %v979 = vld [vmem:[#allocation10 + $0xe0] sm:$0xff]
    %v980 = vld [vmem:[#allocation10 + $0xe8] sm:$0xff]
    %v981 = vld [vmem:[#allocation10 + $0xf0] sm:$0xff]
    %v982 = vld [vmem:[#allocation10 + $0xf8] sm:$0xff]
    %v983 = vld [vmem:[%s8] sm:$0x3]
    %v985 = vlaneseq
    %v986 = vshrl.u32 %v985, 7
    %v987 = vsub.s32 0, %v986
    %v988 = vrot.slane %v983, %v987
    %v989 = vlaneseq
    %v990 = vshrl.u32 %v989, 7
    %v991 = vsub.s32 1, %v990
    %v992 = vrot.slane %v983, %v991
    %v1027 = vunpack.c.l.b16 %v951
    %v1028 = vunpack.c.h.b16 %v951
    %v1029 = vunpack.c.l.b16 %v952
    %v1030 = vunpack.c.h.b16 %v952
    %v1031 = vunpack.c.l.b16 %v953
    %v1032 = vunpack.c.h.b16 %v953
    %v1033 = vunpack.c.l.b16 %v954
    %v1034 = vunpack.c.h.b16 %v954
    %v1035 = vunpack.c.l.b16 %v955
    %v1036 = vunpack.c.h.b16 %v955
    %v1037 = vunpack.c.l.b16 %v956
    %v1038 = vunpack.c.h.b16 %v956
    %v1039 = vunpack.c.l.b16 %v957
    %v1040 = vunpack.c.h.b16 %v957
    %v1041 = vunpack.c.l.b16 %v958
    %v1042 = vunpack.c.h.b16 %v958
    %v1043 = vunpack.c.l.b16 %v959
    %v1044 = vunpack.c.h.b16 %v959
    %v1045 = vunpack.c.l.b16 %v960
    %v1046 = vunpack.c.h.b16 %v960
    %v1047 = vunpack.c.l.b16 %v961
    %v1048 = vunpack.c.h.b16 %v961
    %v1049 = vunpack.c.l.b16 %v962
    %v1050 = vunpack.c.h.b16 %v962
    %v1051 = vunpack.c.l.b16 %v963
    %v1052 = vunpack.c.h.b16 %v963
    %v1053 = vunpack.c.l.b16 %v964
    %v1054 = vunpack.c.h.b16 %v964
    %v1055 = vunpack.c.l.b16 %v965
    %v1056 = vunpack.c.h.b16 %v965
    %v1057 = vunpack.c.l.b16 %v966
    %v1058 = vunpack.c.h.b16 %v966
    %v1059 = vunpack.c.l.b16 %v967
    %v1060 = vunpack.c.h.b16 %v967
    %v1061 = vunpack.c.l.b16 %v968
    %v1062 = vunpack.c.h.b16 %v968
    %v1063 = vunpack.c.l.b16 %v969
    %v1064 = vunpack.c.h.b16 %v969
    %v1065 = vunpack.c.l.b16 %v970
    %v1066 = vunpack.c.h.b16 %v970
    %v1067 = vunpack.c.l.b16 %v971
    %v1068 = vunpack.c.h.b16 %v971
    %v1069 = vunpack.c.l.b16 %v972
    %v1070 = vunpack.c.h.b16 %v972
    %v1071 = vunpack.c.l.b16 %v973
    %v1072 = vunpack.c.h.b16 %v973
    %v1073 = vunpack.c.l.b16 %v974
    %v1074 = vunpack.c.h.b16 %v974
    %v1075 = vunpack.c.l.b16 %v975
    %v1076 = vunpack.c.h.b16 %v975
    %v1077 = vunpack.c.l.b16 %v976
    %v1078 = vunpack.c.h.b16 %v976
    %v1079 = vunpack.c.l.b16 %v977
    %v1080 = vunpack.c.h.b16 %v977
    %v1081 = vunpack.c.l.b16 %v978
    %v1082 = vunpack.c.h.b16 %v978
    %v1083 = vunpack.c.l.b16 %v979
    %v1084 = vunpack.c.h.b16 %v979
    %v1085 = vunpack.c.l.b16 %v980
    %v1086 = vunpack.c.h.b16 %v980
    %v1087 = vunpack.c.l.b16 %v981
    %v1088 = vunpack.c.h.b16 %v981
    %v1089 = vunpack.c.l.b16 %v982
    %v1090 = vunpack.c.h.b16 %v982
    %v1091 = vpack.c.b16 %v1029, %v1027
    %v1092 = vpack.c.b16 %v1030, %v1028
    %v1093 = vpack.c.b16 %v1033, %v1031
    %v1094 = vpack.c.b16 %v1034, %v1032
    %v1095 = vpack.c.b16 %v1037, %v1035
    %v1096 = vpack.c.b16 %v1038, %v1036
    %v1097 = vpack.c.b16 %v1041, %v1039
    %v1098 = vpack.c.b16 %v1042, %v1040
    %v1099 = vpack.c.b16 %v1045, %v1043
    %v1100 = vpack.c.b16 %v1046, %v1044
    %v1101 = vpack.c.b16 %v1049, %v1047
    %v1102 = vpack.c.b16 %v1050, %v1048
    %v1103 = vpack.c.b16 %v1053, %v1051
    %v1104 = vpack.c.b16 %v1054, %v1052
    %v1105 = vpack.c.b16 %v1057, %v1055
    %v1106 = vpack.c.b16 %v1058, %v1056
    %v1107 = vpack.c.b16 %v1061, %v1059
    %v1108 = vpack.c.b16 %v1062, %v1060
    %v1109 = vpack.c.b16 %v1065, %v1063
    %v1110 = vpack.c.b16 %v1066, %v1064
    %v1111 = vpack.c.b16 %v1069, %v1067
    %v1112 = vpack.c.b16 %v1070, %v1068
    %v1113 = vpack.c.b16 %v1073, %v1071
    %v1114 = vpack.c.b16 %v1074, %v1072
    %v1115 = vpack.c.b16 %v1077, %v1075
    %v1116 = vpack.c.b16 %v1078, %v1076
    %v1117 = vpack.c.b16 %v1081, %v1079
    %v1118 = vpack.c.b16 %v1082, %v1080
    %v1119 = vpack.c.b16 %v1085, %v1083
    %v1120 = vpack.c.b16 %v1086, %v1084
    %v1121 = vpack.c.b16 %v1089, %v1087
    %v1122 = vpack.c.b16 %v1090, %v1088
    %1155 = vmatprep.subr.bf16.mxu0 %v1106
    %1156 = vmatpush1.bf16.msra.mxu0 %v1105
    %1157 = vmatprep.subr.bf16.mxu0 %v1104
    %1158 = vmatpush1.bf16.msra.mxu0 %v1103
    %1159 = vmatprep.subr.bf16.mxu0 %v1102
    %1160 = vmatpush1.bf16.msra.mxu0 %v1101
    %1161 = vmatprep.subr.bf16.mxu0 %v1100
    %1162 = vmatpush1.bf16.msra.mxu0 %v1099
    %1163 = vmatprep.subr.bf16.mxu0 %v1098
    %1164 = vmatpush1.bf16.msra.mxu0 %v1097
    %1165 = vmatprep.subr.bf16.mxu0 %v1096
    %1166 = vmatpush1.bf16.msra.mxu0 %v1095
    %1167 = vmatprep.subr.bf16.mxu0 %v1094
    %1168 = vmatpush1.bf16.msra.mxu0 %v1093
    %1169 = vmatprep.subr.bf16.mxu0 %v1092
    %1170 = vmatpush1.bf16.msra.mxu0 %v1091
    %1171 = vmatprep.subr.bf16.mxu0 %v1122
    %1172 = vmatpush2.bf16.msra.mxu0 %v1121
    %1173 = vmatprep.subr.bf16.mxu0 %v1120
    %1174 = vmatpush2.bf16.msra.mxu0 %v1119
    %1175 = vmatprep.subr.bf16.mxu0 %v1118
    %1176 = vmatpush2.bf16.msra.mxu0 %v1117
    %1177 = vmatprep.subr.bf16.mxu0 %v1116
    %1178 = vmatpush2.bf16.msra.mxu0 %v1115
    %1179 = vmatprep.subr.bf16.mxu0 %v1114
    %1180 = vmatpush2.bf16.msra.mxu0 %v1113
    %1181 = vmatprep.subr.bf16.mxu0 %v1112
    %1182 = vmatpush2.bf16.msra.mxu0 %v1111
    %1183 = vmatprep.subr.bf16.mxu0 %v1110
    %1184 = vmatpush2.bf16.msra.mxu0 %v1109
    %1185 = vmatprep.subr.bf16.mxu0 %v1108
    %1186 = vmatpush2.bf16.msra.mxu0 %v1107
    %1187 = vmatprep.mubr.bf16.mxu0 %v950
    %1188 = vmatmul.mubr.bf16.gmra.mxu0 %v949
    %v1189 = vpop.f32.mrf.mxu0
    %v1190 = vadd.f32 %v988, %v1189
    %v1191 = vpop.f32.mrf.mxu0
    %v1192 = vadd.f32 %v992, %v1191
    %v1193 = vpop.f32.mrf.mxu0
    %v1194 = vadd.f32 %v988, %v1193
    %v1195 = vpop.f32.mrf.mxu0
    %v1196 = vadd.f32 %v992, %v1195
    %1197 = vdwg.mxu0
    %v1198 = vmax.f32 %v1190, 0.0
    %v1199 = vmax.f32 %v1192, 0.0
    %v1200 = vmax.f32 %v1194, 0.0
    %v1201 = vmax.f32 %v1196, 0.0
    %v1202 = vpack.c.bf16 %v1200, %v1198
    %v1203 = vpack.c.bf16 %v1201, %v1199
    %v1204 = vunpack.c.l.bf16 %v180
    %v1205 = vunpack.c.h.bf16 %v180
    %v1206 = vunpack.c.l.bf16 %v181
    %v1207 = vunpack.c.h.bf16 %v181
    %v1208 = vunpack.c.l.bf16 %v1202
    %v1209 = vunpack.c.l.bf16 %v1203
    %v1210 = vunpack.c.h.bf16 %v1202
    %v1211 = vunpack.c.h.bf16 %v1203
    %v1212 = vadd.f32 %v1204, %v1208
    %v1213 = vadd.f32 %v1205, %v1209
    %v1214 = vadd.f32 %v1206, %v1210
    %v1215 = vadd.f32 %v1207, %v1211
    %v1216 = vpack.c.bf16 %v1214, %v1212
    %v1217 = vpack.c.bf16 %v1215, %v1213
    %v1218 = vld [vmem:[#allocation11] sm:$0xff]
    %v1219 = vld [vmem:[#allocation11 + $0x8] sm:$0xff]
    %v1220 = vld [vmem:[#allocation11 + $0x10] sm:$0xff]
    %v1221 = vld [vmem:[#allocation11 + $0x18] sm:$0xff]
    %v1222 = vld [vmem:[#allocation11 + $0x20] sm:$0xff]
    %v1223 = vld [vmem:[#allocation11 + $0x28] sm:$0xff]
    %v1224 = vld [vmem:[#allocation11 + $0x30] sm:$0xff]
    %v1225 = vld [vmem:[#allocation11 + $0x38] sm:$0xff]
    %v1226 = vld [vmem:[#allocation11 + $0x40] sm:$0xff]
    %v1227 = vld [vmem:[#allocation11 + $0x48] sm:$0xff]
    %v1228 = vld [vmem:[#allocation11 + $0x50] sm:$0xff]
    %v1229 = vld [vmem:[#allocation11 + $0x58] sm:$0xff]
    %v1230 = vld [vmem:[#allocation11 + $0x60] sm:$0xff]
    %v1231 = vld [vmem:[#allocation11 + $0x68] sm:$0xff]
    %v1232 = vld [vmem:[#allocation11 + $0x70] sm:$0xff]
    %v1233 = vld [vmem:[#allocation11 + $0x78] sm:$0xff]
    %v1234 = vld [vmem:[#allocation11 + $0x80] sm:$0xff]
    %v1235 = vld [vmem:[#allocation11 + $0x88] sm:$0xff]
    %v1236 = vld [vmem:[#allocation11 + $0x90] sm:$0xff]
    %v1237 = vld [vmem:[#allocation11 + $0x98] sm:$0xff]
    %v1238 = vld [vmem:[#allocation11 + $0xa0] sm:$0xff]
    %v1239 = vld [vmem:[#allocation11 + $0xa8] sm:$0xff]
    %v1240 = vld [vmem:[#allocation11 + $0xb0] sm:$0xff]
    %v1241 = vld [vmem:[#allocation11 + $0xb8] sm:$0xff]
    %v1242 = vld [vmem:[#allocation11 + $0xc0] sm:$0xff]
    %v1243 = vld [vmem:[#allocation11 + $0xc8] sm:$0xff]
    %v1244 = vld [vmem:[#allocation11 + $0xd0] sm:$0xff]
    %v1245 = vld [vmem:[#allocation11 + $0xd8] sm:$0xff]
    %v1246 = vld [vmem:[#allocation11 + $0xe0] sm:$0xff]
    %v1247 = vld [vmem:[#allocation11 + $0xe8] sm:$0xff]
    %v1248 = vld [vmem:[#allocation11 + $0xf0] sm:$0xff]
    %v1249 = vld [vmem:[#allocation11 + $0xf8] sm:$0xff]
    %v1250 = vld [vmem:[%s10] sm:$0x3]
    %v1252 = vlaneseq
    %v1253 = vshrl.u32 %v1252, 7
    %v1254 = vsub.s32 0, %v1253
    %v1255 = vrot.slane %v1250, %v1254
    %v1256 = vlaneseq
    %v1257 = vshrl.u32 %v1256, 7
    %v1258 = vsub.s32 1, %v1257
    %v1259 = vrot.slane %v1250, %v1258
    %v1294 = vunpack.c.l.b16 %v1218
    %v1295 = vunpack.c.h.b16 %v1218
    %v1296 = vunpack.c.l.b16 %v1219
    %v1297 = vunpack.c.h.b16 %v1219
    %v1298 = vunpack.c.l.b16 %v1220
    %v1299 = vunpack.c.h.b16 %v1220
    %v1300 = vunpack.c.l.b16 %v1221
    %v1301 = vunpack.c.h.b16 %v1221
    %v1302 = vunpack.c.l.b16 %v1222
    %v1303 = vunpack.c.h.b16 %v1222
    %v1304 = vunpack.c.l.b16 %v1223
    %v1305 = vunpack.c.h.b16 %v1223
    %v1306 = vunpack.c.l.b16 %v1224
    %v1307 = vunpack.c.h.b16 %v1224
    %v1308 = vunpack.c.l.b16 %v1225
    %v1309 = vunpack.c.h.b16 %v1225
    %v1310 = vunpack.c.l.b16 %v1226
    %v1311 = vunpack.c.h.b16 %v1226
    %v1312 = vunpack.c.l.b16 %v1227
    %v1313 = vunpack.c.h.b16 %v1227
    %v1314 = vunpack.c.l.b16 %v1228
    %v1315 = vunpack.c.h.b16 %v1228
    %v1316 = vunpack.c.l.b16 %v1229
    %v1317 = vunpack.c.h.b16 %v1229
    %v1318 = vunpack.c.l.b16 %v1230
    %v1319 = vunpack.c.h.b16 %v1230
    %v1320 = vunpack.c.l.b16 %v1231
    %v1321 = vunpack.c.h.b16 %v1231
    %v1322 = vunpack.c.l.b16 %v1232
    %v1323 = vunpack.c.h.b16 %v1232
    %v1324 = vunpack.c.l.b16 %v1233
    %v1325 = vunpack.c.h.b16 %v1233
    %v1326 = vunpack.c.l.b16 %v1234
    %v1327 = vunpack.c.h.b16 %v1234
    %v1328 = vunpack.c.l.b16 %v1235
    %v1329 = vunpack.c.h.b16 %v1235
    %v1330 = vunpack.c.l.b16 %v1236
    %v1331 = vunpack.c.h.b16 %v1236
    %v1332 = vunpack.c.l.b16 %v1237
    %v1333 = vunpack.c.h.b16 %v1237
    %v1334 = vunpack.c.l.b16 %v1238
    %v1335 = vunpack.c.h.b16 %v1238
    %v1336 = vunpack.c.l.b16 %v1239
    %v1337 = vunpack.c.h.b16 %v1239
    %v1338 = vunpack.c.l.b16 %v1240
    %v1339 = vunpack.c.h.b16 %v1240
    %v1340 = vunpack.c.l.b16 %v1241
    %v1341 = vunpack.c.h.b16 %v1241
    %v1342 = vunpack.c.l.b16 %v1242
    %v1343 = vunpack.c.h.b16 %v1242
    %v1344 = vunpack.c.l.b16 %v1243
    %v1345 = vunpack.c.h.b16 %v1243
    %v1346 = vunpack.c.l.b16 %v1244
    %v1347 = vunpack.c.h.b16 %v1244
    %v1348 = vunpack.c.l.b16 %v1245
    %v1349 = vunpack.c.h.b16 %v1245
    %v1350 = vunpack.c.l.b16 %v1246
    %v1351 = vunpack.c.h.b16 %v1246
    %v1352 = vunpack.c.l.b16 %v1247
    %v1353 = vunpack.c.h.b16 %v1247
    %v1354 = vunpack.c.l.b16 %v1248
    %v1355 = vunpack.c.h.b16 %v1248
    %v1356 = vunpack.c.l.b16 %v1249
    %v1357 = vunpack.c.h.b16 %v1249
    %v1358 = vpack.c.b16 %v1296, %v1294
    %v1359 = vpack.c.b16 %v1297, %v1295
    %v1360 = vpack.c.b16 %v1300, %v1298
    %v1361 = vpack.c.b16 %v1301, %v1299
    %v1362 = vpack.c.b16 %v1304, %v1302
    %v1363 = vpack.c.b16 %v1305, %v1303
    %v1364 = vpack.c.b16 %v1308, %v1306
    %v1365 = vpack.c.b16 %v1309, %v1307
    %v1366 = vpack.c.b16 %v1312, %v1310
    %v1367 = vpack.c.b16 %v1313, %v1311
    %v1368 = vpack.c.b16 %v1316, %v1314
    %v1369 = vpack.c.b16 %v1317, %v1315
    %v1370 = vpack.c.b16 %v1320, %v1318
    %v1371 = vpack.c.b16 %v1321, %v1319
    %v1372 = vpack.c.b16 %v1324, %v1322
    %v1373 = vpack.c.b16 %v1325, %v1323
    %v1374 = vpack.c.b16 %v1328, %v1326
    %v1375 = vpack.c.b16 %v1329, %v1327
    %v1376 = vpack.c.b16 %v1332, %v1330
    %v1377 = vpack.c.b16 %v1333, %v1331
    %v1378 = vpack.c.b16 %v1336, %v1334
    %v1379 = vpack.c.b16 %v1337, %v1335
    %v1380 = vpack.c.b16 %v1340, %v1338
    %v1381 = vpack.c.b16 %v1341, %v1339
    %v1382 = vpack.c.b16 %v1344, %v1342
    %v1383 = vpack.c.b16 %v1345, %v1343
    %v1384 = vpack.c.b16 %v1348, %v1346
    %v1385 = vpack.c.b16 %v1349, %v1347
    %v1386 = vpack.c.b16 %v1352, %v1350
    %v1387 = vpack.c.b16 %v1353, %v1351
    %v1388 = vpack.c.b16 %v1356, %v1354
    %v1389 = vpack.c.b16 %v1357, %v1355
    %1422 = vmatprep.subr.bf16.mxu0 %v1373
    %1423 = vmatpush1.bf16.msra.mxu0 %v1372
    %1424 = vmatprep.subr.bf16.mxu0 %v1371
    %1425 = vmatpush1.bf16.msra.mxu0 %v1370
    %1426 = vmatprep.subr.bf16.mxu0 %v1369
    %1427 = vmatpush1.bf16.msra.mxu0 %v1368
    %1428 = vmatprep.subr.bf16.mxu0 %v1367
    %1429 = vmatpush1.bf16.msra.mxu0 %v1366
    %1430 = vmatprep.subr.bf16.mxu0 %v1365
    %1431 = vmatpush1.bf16.msra.mxu0 %v1364
    %1432 = vmatprep.subr.bf16.mxu0 %v1363
    %1433 = vmatpush1.bf16.msra.mxu0 %v1362
    %1434 = vmatprep.subr.bf16.mxu0 %v1361
    %1435 = vmatpush1.bf16.msra.mxu0 %v1360
    %1436 = vmatprep.subr.bf16.mxu0 %v1359
    %1437 = vmatpush1.bf16.msra.mxu0 %v1358
    %1438 = vmatprep.subr.bf16.mxu0 %v1389
    %1439 = vmatpush2.bf16.msra.mxu0 %v1388
    %1440 = vmatprep.subr.bf16.mxu0 %v1387
    %1441 = vmatpush2.bf16.msra.mxu0 %v1386
    %1442 = vmatprep.subr.bf16.mxu0 %v1385
    %1443 = vmatpush2.bf16.msra.mxu0 %v1384
    %1444 = vmatprep.subr.bf16.mxu0 %v1383
    %1445 = vmatpush2.bf16.msra.mxu0 %v1382
    %1446 = vmatprep.subr.bf16.mxu0 %v1381
    %1447 = vmatpush2.bf16.msra.mxu0 %v1380
    %1448 = vmatprep.subr.bf16.mxu0 %v1379
    %1449 = vmatpush2.bf16.msra.mxu0 %v1378
    %1450 = vmatprep.subr.bf16.mxu0 %v1377
    %1451 = vmatpush2.bf16.msra.mxu0 %v1376
    %1452 = vmatprep.subr.bf16.mxu0 %v1375
    %1453 = vmatpush2.bf16.msra.mxu0 %v1374
    %1454 = vmatprep.mubr.bf16.mxu0 %v1217
    %1455 = vmatmul.mubr.bf16.gmra.mxu0 %v1216
    %v1456 = vpop.f32.mrf.mxu0
    %v1457 = vadd.f32 %v1255, %v1456
    %v1458 = vpop.f32.mrf.mxu0
    %v1459 = vadd.f32 %v1259, %v1458
    %v1460 = vpop.f32.mrf.mxu0
    %v1461 = vadd.f32 %v1255, %v1460
    %v1462 = vpop.f32.mrf.mxu0
    %v1463 = vadd.f32 %v1259, %v1462
    %1464 = vdwg.mxu0
    %v1465 = vmax.f32 %v1457, 0.0
    %v1466 = vmax.f32 %v1459, 0.0
    %v1467 = vmax.f32 %v1461, 0.0
    %v1468 = vmax.f32 %v1463, 0.0
    %v1469 = vpack.c.bf16 %v1467, %v1465
    %v1470 = vpack.c.bf16 %v1468, %v1466
    %v1471 = vld [vmem:[#allocation13] sm:$0xff]
    %v1472 = vld [vmem:[#allocation13 + $0x8] sm:$0xff]
    %v1473 = vld [vmem:[#allocation13 + $0x10] sm:$0xff]
    %v1474 = vld [vmem:[#allocation13 + $0x18] sm:$0xff]
    %v1475 = vld [vmem:[#allocation13 + $0x20] sm:$0xff]
    %v1476 = vld [vmem:[#allocation13 + $0x28] sm:$0xff]
    %v1477 = vld [vmem:[#allocation13 + $0x30] sm:$0xff]
    %v1478 = vld [vmem:[#allocation13 + $0x38] sm:$0xff]
    %v1479 = vld [vmem:[#allocation13 + $0x40] sm:$0xff]
    %v1480 = vld [vmem:[#allocation13 + $0x48] sm:$0xff]
    %v1481 = vld [vmem:[#allocation13 + $0x50] sm:$0xff]
    %v1482 = vld [vmem:[#allocation13 + $0x58] sm:$0xff]
    %v1483 = vld [vmem:[#allocation13 + $0x60] sm:$0xff]
    %v1484 = vld [vmem:[#allocation13 + $0x68] sm:$0xff]
    %v1485 = vld [vmem:[#allocation13 + $0x70] sm:$0xff]
    %v1486 = vld [vmem:[#allocation13 + $0x78] sm:$0xff]
    %v1487 = vld [vmem:[#allocation13 + $0x80] sm:$0xff]
    %v1488 = vld [vmem:[#allocation13 + $0x88] sm:$0xff]
    %v1489 = vld [vmem:[#allocation13 + $0x90] sm:$0xff]
    %v1490 = vld [vmem:[#allocation13 + $0x98] sm:$0xff]
    %v1491 = vld [vmem:[#allocation13 + $0xa0] sm:$0xff]
    %v1492 = vld [vmem:[#allocation13 + $0xa8] sm:$0xff]
    %v1493 = vld [vmem:[#allocation13 + $0xb0] sm:$0xff]
    %v1494 = vld [vmem:[#allocation13 + $0xb8] sm:$0xff]
    %v1495 = vld [vmem:[#allocation13 + $0xc0] sm:$0xff]
    %v1496 = vld [vmem:[#allocation13 + $0xc8] sm:$0xff]
    %v1497 = vld [vmem:[#allocation13 + $0xd0] sm:$0xff]
    %v1498 = vld [vmem:[#allocation13 + $0xd8] sm:$0xff]
    %v1499 = vld [vmem:[#allocation13 + $0xe0] sm:$0xff]
    %v1500 = vld [vmem:[#allocation13 + $0xe8] sm:$0xff]
    %v1501 = vld [vmem:[#allocation13 + $0xf0] sm:$0xff]
    %v1502 = vld [vmem:[#allocation13 + $0xf8] sm:$0xff]
    %v1503 = vld [vmem:[%s12] sm:$0x3]
    %v1505 = vlaneseq
    %v1506 = vshrl.u32 %v1505, 7
    %v1507 = vsub.s32 0, %v1506
    %v1508 = vrot.slane %v1503, %v1507
    %v1509 = vlaneseq
    %v1510 = vshrl.u32 %v1509, 7
    %v1511 = vsub.s32 1, %v1510
    %v1512 = vrot.slane %v1503, %v1511
    %v1547 = vunpack.c.l.b16 %v1471
    %v1548 = vunpack.c.h.b16 %v1471
    %v1549 = vunpack.c.l.b16 %v1472
    %v1550 = vunpack.c.h.b16 %v1472
    %v1551 = vunpack.c.l.b16 %v1473
    %v1552 = vunpack.c.h.b16 %v1473
    %v1553 = vunpack.c.l.b16 %v1474
    %v1554 = vunpack.c.h.b16 %v1474
    %v1555 = vunpack.c.l.b16 %v1475
    %v1556 = vunpack.c.h.b16 %v1475
    %v1557 = vunpack.c.l.b16 %v1476
    %v1558 = vunpack.c.h.b16 %v1476
    %v1559 = vunpack.c.l.b16 %v1477
    %v1560 = vunpack.c.h.b16 %v1477
    %v1561 = vunpack.c.l.b16 %v1478
    %v1562 = vunpack.c.h.b16 %v1478
    %v1563 = vunpack.c.l.b16 %v1479
    %v1564 = vunpack.c.h.b16 %v1479
    %v1565 = vunpack.c.l.b16 %v1480
    %v1566 = vunpack.c.h.b16 %v1480
    %v1567 = vunpack.c.l.b16 %v1481
    %v1568 = vunpack.c.h.b16 %v1481
    %v1569 = vunpack.c.l.b16 %v1482
    %v1570 = vunpack.c.h.b16 %v1482
    %v1571 = vunpack.c.l.b16 %v1483
    %v1572 = vunpack.c.h.b16 %v1483
    %v1573 = vunpack.c.l.b16 %v1484
    %v1574 = vunpack.c.h.b16 %v1484
    %v1575 = vunpack.c.l.b16 %v1485
    %v1576 = vunpack.c.h.b16 %v1485
    %v1577 = vunpack.c.l.b16 %v1486
    %v1578 = vunpack.c.h.b16 %v1486
    %v1579 = vunpack.c.l.b16 %v1487
    %v1580 = vunpack.c.h.b16 %v1487
    %v1581 = vunpack.c.l.b16 %v1488
    %v1582 = vunpack.c.h.b16 %v1488
    %v1583 = vunpack.c.l.b16 %v1489
    %v1584 = vunpack.c.h.b16 %v1489
    %v1585 = vunpack.c.l.b16 %v1490
    %v1586 = vunpack.c.h.b16 %v1490
    %v1587 = vunpack.c.l.b16 %v1491
    %v1588 = vunpack.c.h.b16 %v1491
    %v1589 = vunpack.c.l.b16 %v1492
    %v1590 = vunpack.c.h.b16 %v1492
    %v1591 = vunpack.c.l.b16 %v1493
    %v1592 = vunpack.c.h.b16 %v1493
    %v1593 = vunpack.c.l.b16 %v1494
    %v1594 = vunpack.c.h.b16 %v1494
    %v1595 = vunpack.c.l.b16 %v1495
    %v1596 = vunpack.c.h.b16 %v1495
    %v1597 = vunpack.c.l.b16 %v1496
    %v1598 = vunpack.c.h.b16 %v1496
    %v1599 = vunpack.c.l.b16 %v1497
    %v1600 = vunpack.c.h.b16 %v1497
    %v1601 = vunpack.c.l.b16 %v1498
    %v1602 = vunpack.c.h.b16 %v1498
    %v1603 = vunpack.c.l.b16 %v1499
    %v1604 = vunpack.c.h.b16 %v1499
    %v1605 = vunpack.c.l.b16 %v1500
    %v1606 = vunpack.c.h.b16 %v1500
    %v1607 = vunpack.c.l.b16 %v1501
    %v1608 = vunpack.c.h.b16 %v1501
    %v1609 = vunpack.c.l.b16 %v1502
    %v1610 = vunpack.c.h.b16 %v1502
    %v1611 = vpack.c.b16 %v1549, %v1547
    %v1612 = vpack.c.b16 %v1550, %v1548
    %v1613 = vpack.c.b16 %v1553, %v1551
    %v1614 = vpack.c.b16 %v1554, %v1552
    %v1615 = vpack.c.b16 %v1557, %v1555
    %v1616 = vpack.c.b16 %v1558, %v1556
    %v1617 = vpack.c.b16 %v1561, %v1559
    %v1618 = vpack.c.b16 %v1562, %v1560
    %v1619 = vpack.c.b16 %v1565, %v1563
    %v1620 = vpack.c.b16 %v1566, %v1564
    %v1621 = vpack.c.b16 %v1569, %v1567
    %v1622 = vpack.c.b16 %v1570, %v1568
    %v1623 = vpack.c.b16 %v1573, %v1571
    %v1624 = vpack.c.b16 %v1574, %v1572
    %v1625 = vpack.c.b16 %v1577, %v1575
    %v1626 = vpack.c.b16 %v1578, %v1576
    %v1627 = vpack.c.b16 %v1581, %v1579
    %v1628 = vpack.c.b16 %v1582, %v1580
    %v1629 = vpack.c.b16 %v1585, %v1583
    %v1630 = vpack.c.b16 %v1586, %v1584
    %v1631 = vpack.c.b16 %v1589, %v1587
    %v1632 = vpack.c.b16 %v1590, %v1588
    %v1633 = vpack.c.b16 %v1593, %v1591
    %v1634 = vpack.c.b16 %v1594, %v1592
    %v1635 = vpack.c.b16 %v1597, %v1595
    %v1636 = vpack.c.b16 %v1598, %v1596
    %v1637 = vpack.c.b16 %v1601, %v1599
    %v1638 = vpack.c.b16 %v1602, %v1600
    %v1639 = vpack.c.b16 %v1605, %v1603
    %v1640 = vpack.c.b16 %v1606, %v1604
    %v1641 = vpack.c.b16 %v1609, %v1607
    %v1642 = vpack.c.b16 %v1610, %v1608
    %1675 = vmatprep.subr.bf16.mxu0 %v1626
    %1676 = vmatpush1.bf16.msra.mxu0 %v1625
    %1677 = vmatprep.subr.bf16.mxu0 %v1624
    %1678 = vmatpush1.bf16.msra.mxu0 %v1623
    %1679 = vmatprep.subr.bf16.mxu0 %v1622
    %1680 = vmatpush1.bf16.msra.mxu0 %v1621
    %1681 = vmatprep.subr.bf16.mxu0 %v1620
    %1682 = vmatpush1.bf16.msra.mxu0 %v1619
    %1683 = vmatprep.subr.bf16.mxu0 %v1618
    %1684 = vmatpush1.bf16.msra.mxu0 %v1617
    %1685 = vmatprep.subr.bf16.mxu0 %v1616
    %1686 = vmatpush1.bf16.msra.mxu0 %v1615
    %1687 = vmatprep.subr.bf16.mxu0 %v1614
    %1688 = vmatpush1.bf16.msra.mxu0 %v1613
    %1689 = vmatprep.subr.bf16.mxu0 %v1612
    %1690 = vmatpush1.bf16.msra.mxu0 %v1611
    %1691 = vmatprep.subr.bf16.mxu0 %v1642
    %1692 = vmatpush2.bf16.msra.mxu0 %v1641
    %1693 = vmatprep.subr.bf16.mxu0 %v1640
    %1694 = vmatpush2.bf16.msra.mxu0 %v1639
    %1695 = vmatprep.subr.bf16.mxu0 %v1638
    %1696 = vmatpush2.bf16.msra.mxu0 %v1637
    %1697 = vmatprep.subr.bf16.mxu0 %v1636
    %1698 = vmatpush2.bf16.msra.mxu0 %v1635
    %1699 = vmatprep.subr.bf16.mxu0 %v1634
    %1700 = vmatpush2.bf16.msra.mxu0 %v1633
    %1701 = vmatprep.subr.bf16.mxu0 %v1632
    %1702 = vmatpush2.bf16.msra.mxu0 %v1631
    %1703 = vmatprep.subr.bf16.mxu0 %v1630
    %1704 = vmatpush2.bf16.msra.mxu0 %v1629
    %1705 = vmatprep.subr.bf16.mxu0 %v1628
    %1706 = vmatpush2.bf16.msra.mxu0 %v1627
    %1707 = vmatprep.mubr.bf16.mxu0 %v1470
    %1708 = vmatmul.mubr.bf16.gmra.mxu0 %v1469
    %v1709 = vpop.f32.mrf.mxu0
    %v1710 = vadd.f32 %v1508, %v1709
    %v1711 = vpop.f32.mrf.mxu0
    %v1712 = vadd.f32 %v1512, %v1711
    %v1713 = vpop.f32.mrf.mxu0
    %v1714 = vadd.f32 %v1508, %v1713
    %v1715 = vpop.f32.mrf.mxu0
    %v1716 = vadd.f32 %v1512, %v1715
    %1717 = vdwg.mxu0
    %v1718 = vmax.f32 %v1710, 0.0
    %v1719 = vmax.f32 %v1712, 0.0
    %v1720 = vmax.f32 %v1714, 0.0
    %v1721 = vmax.f32 %v1716, 0.0
    %v1722 = vpack.c.bf16 %v1720, %v1718
    %v1723 = vpack.c.bf16 %v1721, %v1719
    %v1724 = vld [vmem:[#allocation14] sm:$0xff]
    %v1725 = vld [vmem:[#allocation14 + $0x8] sm:$0xff]
    %v1726 = vld [vmem:[#allocation14 + $0x10] sm:$0xff]
    %v1727 = vld [vmem:[#allocation14 + $0x18] sm:$0xff]
    %v1728 = vld [vmem:[#allocation14 + $0x20] sm:$0xff]
    %v1729 = vld [vmem:[#allocation14 + $0x28] sm:$0xff]
    %v1730 = vld [vmem:[#allocation14 + $0x30] sm:$0xff]
    %v1731 = vld [vmem:[#allocation14 + $0x38] sm:$0xff]
    %v1732 = vld [vmem:[#allocation14 + $0x40] sm:$0xff]
    %v1733 = vld [vmem:[#allocation14 + $0x48] sm:$0xff]
    %v1734 = vld [vmem:[#allocation14 + $0x50] sm:$0xff]
    %v1735 = vld [vmem:[#allocation14 + $0x58] sm:$0xff]
    %v1736 = vld [vmem:[#allocation14 + $0x60] sm:$0xff]
    %v1737 = vld [vmem:[#allocation14 + $0x68] sm:$0xff]
    %v1738 = vld [vmem:[#allocation14 + $0x70] sm:$0xff]
    %v1739 = vld [vmem:[#allocation14 + $0x78] sm:$0xff]
    %v1740 = vld [vmem:[#allocation14 + $0x80] sm:$0xff]
    %v1741 = vld [vmem:[#allocation14 + $0x88] sm:$0xff]
    %v1742 = vld [vmem:[#allocation14 + $0x90] sm:$0xff]
    %v1743 = vld [vmem:[#allocation14 + $0x98] sm:$0xff]
    %v1744 = vld [vmem:[#allocation14 + $0xa0] sm:$0xff]
    %v1745 = vld [vmem:[#allocation14 + $0xa8] sm:$0xff]
    %v1746 = vld [vmem:[#allocation14 + $0xb0] sm:$0xff]
    %v1747 = vld [vmem:[#allocation14 + $0xb8] sm:$0xff]
    %v1748 = vld [vmem:[#allocation14 + $0xc0] sm:$0xff]
    %v1749 = vld [vmem:[#allocation14 + $0xc8] sm:$0xff]
    %v1750 = vld [vmem:[#allocation14 + $0xd0] sm:$0xff]
    %v1751 = vld [vmem:[#allocation14 + $0xd8] sm:$0xff]
    %v1752 = vld [vmem:[#allocation14 + $0xe0] sm:$0xff]
    %v1753 = vld [vmem:[#allocation14 + $0xe8] sm:$0xff]
    %v1754 = vld [vmem:[#allocation14 + $0xf0] sm:$0xff]
    %v1755 = vld [vmem:[#allocation14 + $0xf8] sm:$0xff]
    %v1756 = vld [vmem:[%s14] sm:$0x3]
    %v1758 = vlaneseq
    %v1759 = vshrl.u32 %v1758, 7
    %v1760 = vsub.s32 0, %v1759
    %v1761 = vrot.slane %v1756, %v1760
    %v1762 = vlaneseq
    %v1763 = vshrl.u32 %v1762, 7
    %v1764 = vsub.s32 1, %v1763
    %v1765 = vrot.slane %v1756, %v1764
    %v1800 = vunpack.c.l.b16 %v1724
    %v1801 = vunpack.c.h.b16 %v1724
    %v1802 = vunpack.c.l.b16 %v1725
    %v1803 = vunpack.c.h.b16 %v1725
    %v1804 = vunpack.c.l.b16 %v1726
    %v1805 = vunpack.c.h.b16 %v1726
    %v1806 = vunpack.c.l.b16 %v1727
    %v1807 = vunpack.c.h.b16 %v1727
    %v1808 = vunpack.c.l.b16 %v1728
    %v1809 = vunpack.c.h.b16 %v1728
    %v1810 = vunpack.c.l.b16 %v1729
    %v1811 = vunpack.c.h.b16 %v1729
    %v1812 = vunpack.c.l.b16 %v1730
    %v1813 = vunpack.c.h.b16 %v1730
    %v1814 = vunpack.c.l.b16 %v1731
    %v1815 = vunpack.c.h.b16 %v1731
    %v1816 = vunpack.c.l.b16 %v1732
    %v1817 = vunpack.c.h.b16 %v1732
    %v1818 = vunpack.c.l.b16 %v1733
    %v1819 = vunpack.c.h.b16 %v1733
    %v1820 = vunpack.c.l.b16 %v1734
    %v1821 = vunpack.c.h.b16 %v1734
    %v1822 = vunpack.c.l.b16 %v1735
    %v1823 = vunpack.c.h.b16 %v1735
    %v1824 = vunpack.c.l.b16 %v1736
    %v1825 = vunpack.c.h.b16 %v1736
    %v1826 = vunpack.c.l.b16 %v1737
    %v1827 = vunpack.c.h.b16 %v1737
    %v1828 = vunpack.c.l.b16 %v1738
    %v1829 = vunpack.c.h.b16 %v1738
    %v1830 = vunpack.c.l.b16 %v1739
    %v1831 = vunpack.c.h.b16 %v1739
    %v1832 = vunpack.c.l.b16 %v1740
    %v1833 = vunpack.c.h.b16 %v1740
    %v1834 = vunpack.c.l.b16 %v1741
    %v1835 = vunpack.c.h.b16 %v1741
    %v1836 = vunpack.c.l.b16 %v1742
    %v1837 = vunpack.c.h.b16 %v1742
    %v1838 = vunpack.c.l.b16 %v1743
    %v1839 = vunpack.c.h.b16 %v1743
    %v1840 = vunpack.c.l.b16 %v1744
    %v1841 = vunpack.c.h.b16 %v1744
    %v1842 = vunpack.c.l.b16 %v1745
    %v1843 = vunpack.c.h.b16 %v1745
    %v1844 = vunpack.c.l.b16 %v1746
    %v1845 = vunpack.c.h.b16 %v1746
    %v1846 = vunpack.c.l.b16 %v1747
    %v1847 = vunpack.c.h.b16 %v1747
    %v1848 = vunpack.c.l.b16 %v1748
    %v1849 = vunpack.c.h.b16 %v1748
    %v1850 = vunpack.c.l.b16 %v1749
    %v1851 = vunpack.c.h.b16 %v1749
    %v1852 = vunpack.c.l.b16 %v1750
    %v1853 = vunpack.c.h.b16 %v1750
    %v1854 = vunpack.c.l.b16 %v1751
    %v1855 = vunpack.c.h.b16 %v1751
    %v1856 = vunpack.c.l.b16 %v1752
    %v1857 = vunpack.c.h.b16 %v1752
    %v1858 = vunpack.c.l.b16 %v1753
    %v1859 = vunpack.c.h.b16 %v1753
    %v1860 = vunpack.c.l.b16 %v1754
    %v1861 = vunpack.c.h.b16 %v1754
    %v1862 = vunpack.c.l.b16 %v1755
    %v1863 = vunpack.c.h.b16 %v1755
    %v1864 = vpack.c.b16 %v1802, %v1800
    %v1865 = vpack.c.b16 %v1803, %v1801
    %v1866 = vpack.c.b16 %v1806, %v1804
    %v1867 = vpack.c.b16 %v1807, %v1805
    %v1868 = vpack.c.b16 %v1810, %v1808
    %v1869 = vpack.c.b16 %v1811, %v1809
    %v1870 = vpack.c.b16 %v1814, %v1812
    %v1871 = vpack.c.b16 %v1815, %v1813
    %v1872 = vpack.c.b16 %v1818, %v1816
    %v1873 = vpack.c.b16 %v1819, %v1817
    %v1874 = vpack.c.b16 %v1822, %v1820
    %v1875 = vpack.c.b16 %v1823, %v1821
    %v1876 = vpack.c.b16 %v1826, %v1824
    %v1877 = vpack.c.b16 %v1827, %v1825
    %v1878 = vpack.c.b16 %v1830, %v1828
    %v1879 = vpack.c.b16 %v1831, %v1829
    %v1880 = vpack.c.b16 %v1834, %v1832
    %v1881 = vpack.c.b16 %v1835, %v1833
    %v1882 = vpack.c.b16 %v1838, %v1836
    %v1883 = vpack.c.b16 %v1839, %v1837
    %v1884 = vpack.c.b16 %v1842, %v1840
    %v1885 = vpack.c.b16 %v1843, %v1841
    %v1886 = vpack.c.b16 %v1846, %v1844
    %v1887 = vpack.c.b16 %v1847, %v1845
    %v1888 = vpack.c.b16 %v1850, %v1848
    %v1889 = vpack.c.b16 %v1851, %v1849
    %v1890 = vpack.c.b16 %v1854, %v1852
    %v1891 = vpack.c.b16 %v1855, %v1853
    %v1892 = vpack.c.b16 %v1858, %v1856
    %v1893 = vpack.c.b16 %v1859, %v1857
    %v1894 = vpack.c.b16 %v1862, %v1860
    %v1895 = vpack.c.b16 %v1863, %v1861
    %1928 = vmatprep.subr.bf16.mxu0 %v1879
    %1929 = vmatpush1.bf16.msra.mxu0 %v1878
    %1930 = vmatprep.subr.bf16.mxu0 %v1877
    %1931 = vmatpush1.bf16.msra.mxu0 %v1876
    %1932 = vmatprep.subr.bf16.mxu0 %v1875
    %1933 = vmatpush1.bf16.msra.mxu0 %v1874
    %1934 = vmatprep.subr.bf16.mxu0 %v1873
    %1935 = vmatpush1.bf16.msra.mxu0 %v1872
    %1936 = vmatprep.subr.bf16.mxu0 %v1871
    %1937 = vmatpush1.bf16.msra.mxu0 %v1870
    %1938 = vmatprep.subr.bf16.mxu0 %v1869
    %1939 = vmatpush1.bf16.msra.mxu0 %v1868
    %1940 = vmatprep.subr.bf16.mxu0 %v1867
    %1941 = vmatpush1.bf16.msra.mxu0 %v1866
    %1942 = vmatprep.subr.bf16.mxu0 %v1865
    %1943 = vmatpush1.bf16.msra.mxu0 %v1864
    %1944 = vmatprep.subr.bf16.mxu0 %v1895
    %1945 = vmatpush2.bf16.msra.mxu0 %v1894
    %1946 = vmatprep.subr.bf16.mxu0 %v1893
    %1947 = vmatpush2.bf16.msra.mxu0 %v1892
    %1948 = vmatprep.subr.bf16.mxu0 %v1891
    %1949 = vmatpush2.bf16.msra.mxu0 %v1890
    %1950 = vmatprep.subr.bf16.mxu0 %v1889
    %1951 = vmatpush2.bf16.msra.mxu0 %v1888
    %1952 = vmatprep.subr.bf16.mxu0 %v1887
    %1953 = vmatpush2.bf16.msra.mxu0 %v1886
    %1954 = vmatprep.subr.bf16.mxu0 %v1885
    %1955 = vmatpush2.bf16.msra.mxu0 %v1884
    %1956 = vmatprep.subr.bf16.mxu0 %v1883
    %1957 = vmatpush2.bf16.msra.mxu0 %v1882
    %1958 = vmatprep.subr.bf16.mxu0 %v1881
    %1959 = vmatpush2.bf16.msra.mxu0 %v1880
    %1960 = vmatprep.mubr.bf16.mxu0 %v1723
    %1961 = vmatmul.mubr.bf16.gmra.mxu0 %v1722
    %v1962 = vpop.f32.mrf.mxu0
    %v1963 = vadd.f32 %v1761, %v1962
    %v1964 = vpop.f32.mrf.mxu0
    %v1965 = vadd.f32 %v1765, %v1964
    %v1966 = vpop.f32.mrf.mxu0
    %v1967 = vadd.f32 %v1761, %v1966
    %v1968 = vpop.f32.mrf.mxu0
    %v1969 = vadd.f32 %v1765, %v1968
    %1970 = vdwg.mxu0
    %v1971 = vmax.f32 %v1963, 0.0
    %v1972 = vmax.f32 %v1965, 0.0
    %v1973 = vmax.f32 %v1967, 0.0
    %v1974 = vmax.f32 %v1969, 0.0
    %v1975 = vpack.c.bf16 %v1973, %v1971
    %v1976 = vpack.c.bf16 %v1974, %v1972
    %v1977 = vld [vmem:[#allocation16] sm:$0xf]
    %v1978 = vld [vmem:[#allocation16 + $0x4] sm:$0xf]
    %v1979 = vld [vmem:[#allocation16 + $0x8] sm:$0xf]
    %v1980 = vld [vmem:[#allocation16 + $0xc] sm:$0xf]
    %v1981 = vld [vmem:[#allocation16 + $0x10] sm:$0xf]
    %v1982 = vld [vmem:[#allocation16 + $0x14] sm:$0xf]
    %v1983 = vld [vmem:[#allocation16 + $0x18] sm:$0xf]
    %v1984 = vld [vmem:[#allocation16 + $0x1c] sm:$0xf]
    %v1985 = vld [vmem:[#allocation16 + $0x20] sm:$0xf]
    %v1986 = vld [vmem:[#allocation16 + $0x24] sm:$0xf]
    %v1987 = vld [vmem:[#allocation16 + $0x28] sm:$0xf]
    %v1988 = vld [vmem:[#allocation16 + $0x2c] sm:$0xf]
    %v1989 = vld [vmem:[#allocation16 + $0x30] sm:$0xf]
    %v1990 = vld [vmem:[#allocation16 + $0x34] sm:$0xf]
    %v1991 = vld [vmem:[#allocation16 + $0x38] sm:$0xf]
    %v1992 = vld [vmem:[#allocation16 + $0x3c] sm:$0xf]
    %v1993 = vld [vmem:[#allocation16 + $0x40] sm:$0xf]
    %v1994 = vld [vmem:[#allocation16 + $0x44] sm:$0xf]
    %v1995 = vld [vmem:[#allocation16 + $0x48] sm:$0xf]
    %v1996 = vld [vmem:[#allocation16 + $0x4c] sm:$0xf]
    %v1997 = vld [vmem:[#allocation16 + $0x50] sm:$0xf]
    %v1998 = vld [vmem:[#allocation16 + $0x54] sm:$0xf]
    %v1999 = vld [vmem:[#allocation16 + $0x58] sm:$0xf]
    %v2000 = vld [vmem:[#allocation16 + $0x5c] sm:$0xf]
    %v2001 = vld [vmem:[#allocation16 + $0x60] sm:$0xf]
    %v2002 = vld [vmem:[#allocation16 + $0x64] sm:$0xf]
    %v2003 = vld [vmem:[#allocation16 + $0x68] sm:$0xf]
    %v2004 = vld [vmem:[#allocation16 + $0x6c] sm:$0xf]
    %v2005 = vld [vmem:[#allocation16 + $0x70] sm:$0xf]
    %v2006 = vld [vmem:[#allocation16 + $0x74] sm:$0xf]
    %v2007 = vld [vmem:[#allocation16 + $0x78] sm:$0xf]
    %v2008 = vld [vmem:[#allocation16 + $0x7c] sm:$0xf]
    %v2009 = vld [vmem:[%s16] sm:$0x1]
    %v2011 = vlaneseq
    %v2012 = vshrl.u32 %v2011, 7
    %v2013 = vsub.s32 0, %v2012
    %v2014 = vrot.slane %v2009, %v2013
    %v2048 = vunpack.c.l.b16 %v1977
    %v2049 = vunpack.c.l.b16 %v1978
    %v2050 = vunpack.c.l.b16 %v1979
    %v2051 = vunpack.c.l.b16 %v1980
    %v2052 = vunpack.c.l.b16 %v1981
    %v2053 = vunpack.c.l.b16 %v1982
    %v2054 = vunpack.c.l.b16 %v1983
    %v2055 = vunpack.c.l.b16 %v1984
    %v2056 = vunpack.c.l.b16 %v1985
    %v2057 = vunpack.c.l.b16 %v1986
    %v2058 = vunpack.c.l.b16 %v1987
    %v2059 = vunpack.c.l.b16 %v1988
    %v2060 = vunpack.c.l.b16 %v1989
    %v2061 = vunpack.c.l.b16 %v1990
    %v2062 = vunpack.c.l.b16 %v1991
    %v2063 = vunpack.c.l.b16 %v1992
    %v2064 = vunpack.c.l.b16 %v1993
    %v2065 = vunpack.c.l.b16 %v1994
    %v2066 = vunpack.c.l.b16 %v1995
    %v2067 = vunpack.c.l.b16 %v1996
    %v2068 = vunpack.c.l.b16 %v1997
    %v2069 = vunpack.c.l.b16 %v1998
    %v2070 = vunpack.c.l.b16 %v1999
    %v2071 = vunpack.c.l.b16 %v2000
    %v2072 = vunpack.c.l.b16 %v2001
    %v2073 = vunpack.c.l.b16 %v2002
    %v2074 = vunpack.c.l.b16 %v2003
    %v2075 = vunpack.c.l.b16 %v2004
    %v2076 = vunpack.c.l.b16 %v2005
    %v2077 = vunpack.c.l.b16 %v2006
    %v2078 = vunpack.c.l.b16 %v2007
    %v2079 = vunpack.c.l.b16 %v2008
    %v2080 = vpack.c.b16 %v2049, %v2048
    %v2081 = vpack.c.b16 %v2051, %v2050
    %v2082 = vpack.c.b16 %v2053, %v2052
    %v2083 = vpack.c.b16 %v2055, %v2054
    %v2084 = vpack.c.b16 %v2057, %v2056
    %v2085 = vpack.c.b16 %v2059, %v2058
    %v2086 = vpack.c.b16 %v2061, %v2060
    %v2087 = vpack.c.b16 %v2063, %v2062
    %v2088 = vpack.c.b16 %v2065, %v2064
    %v2089 = vpack.c.b16 %v2067, %v2066
    %v2090 = vpack.c.b16 %v2069, %v2068
    %v2091 = vpack.c.b16 %v2071, %v2070
    %v2092 = vpack.c.b16 %v2073, %v2072
    %v2093 = vpack.c.b16 %v2075, %v2074
    %v2094 = vpack.c.b16 %v2077, %v2076
    %v2095 = vpack.c.b16 %v2079, %v2078
    %2112 = vmatprep.subr.bf16.mxu0 0
    %2113 = vmatpush1.bf16.msra.mxu0 %v2087
    %2114 = vmatprep.subr.bf16.mxu0 0
    %2115 = vmatpush1.bf16.msra.mxu0 %v2086
    %2116 = vmatprep.subr.bf16.mxu0 0
    %2117 = vmatpush1.bf16.msra.mxu0 %v2085
    %2118 = vmatprep.subr.bf16.mxu0 0
    %2119 = vmatpush1.bf16.msra.mxu0 %v2084
    %2120 = vmatprep.subr.bf16.mxu0 0
    %2121 = vmatpush1.bf16.msra.mxu0 %v2083
    %2122 = vmatprep.subr.bf16.mxu0 0
    %2123 = vmatpush1.bf16.msra.mxu0 %v2082
    %2124 = vmatprep.subr.bf16.mxu0 0
    %2125 = vmatpush1.bf16.msra.mxu0 %v2081
    %2126 = vmatprep.subr.bf16.mxu0 0
    %2127 = vmatpush1.bf16.msra.mxu0 %v2080
    %2128 = vmatprep.subr.bf16.mxu0 0
    %2129 = vmatpush2.bf16.msra.mxu0 %v2095
    %2130 = vmatprep.subr.bf16.mxu0 0
    %2131 = vmatpush2.bf16.msra.mxu0 %v2094
    %2132 = vmatprep.subr.bf16.mxu0 0
    %2133 = vmatpush2.bf16.msra.mxu0 %v2093
    %2134 = vmatprep.subr.bf16.mxu0 0
    %2135 = vmatpush2.bf16.msra.mxu0 %v2092
    %2136 = vmatprep.subr.bf16.mxu0 0
    %2137 = vmatpush2.bf16.msra.mxu0 %v2091
    %2138 = vmatprep.subr.bf16.mxu0 0
    %2139 = vmatpush2.bf16.msra.mxu0 %v2090
    %2140 = vmatprep.subr.bf16.mxu0 0
    %2141 = vmatpush2.bf16.msra.mxu0 %v2089
    %2142 = vmatprep.subr.bf16.mxu0 0
    %2143 = vmatpush2.bf16.msra.mxu0 %v2088
    %2144 = vmatprep.mubr.bf16.mxu0 %v1976
    %2145 = vmatmul.mubr.bf16.gmra.mxu0 %v1975
    %v2146 = vpop.f32.mrf.mxu0
    %v2147 = vadd.f32 %v2014, %v2146
    %v2148 = vpop.f32.mrf.mxu0
    %v2149 = vpop.f32.mrf.mxu0
    %v2150 = vadd.f32 %v2014, %v2149
    %v2151 = vpop.f32.mrf.mxu0
    %2152 = vdwg.mxu0
    %v2153 = vmax.f32 %v2147, 0.0
    %v2154 = vmax.f32 %v2150, 0.0
    %2155 = vst [vmem:[#allocation17] sm:$0xff] %v2153
    %2156 = vst [vmem:[#allocation17 + $0x8] sm:$0xff] %v2154
    // Predicated region
    $region106: #{tpu_custom_call.1} parent=1 // pred_check
      _
    $region107: #{tpu_custom_call.1} parent=1 // pred_check_branch
      %2158 = sbr.rel (0) target = $region109
    $region108: #{tpu_custom_call.1} parent=1 // pred_region
      %s2160 = ssub.s32 256, 256
      %2161 = vsyncadd [#allocation4], %s2160
      %s2162 = sshll.u32 [#allocation17], 4
      %s2163 = int_to_ptr.vmem [resolvable:$true] %s2162
      %2168 = dma.vmem_to_hbm [thread:$0]  %s2163, 256, %s17, [#allocation4], 128, 128, 8
    $region109: #{tpu_custom_call.1} parent=1 // pred_fallthru
      _
    // Predicated region
    $region110: #{tpu_custom_call.1} parent=1 // pred_check
      _
    $region111: #{tpu_custom_call.1} parent=1 // pred_check_branch
      %2170 = sbr.rel (0) target = $region113
    $region112: #{tpu_custom_call.1} parent=1 // pred_region
      %2171 = dma.done [#allocation4], 256
    $region113: #{tpu_custom_call.1} parent=1 // pred_fallthru
      _
    %2172 = vsyncpa [#allocation3], 1
    %2173 = vsyncpa [#allocation6], 1
    %2174 = vsyncpa [#allocation9], 1
    %2175 = vsyncpa [#allocation12], 1
    %2176 = vsyncpa [#allocation15], 1
    %2177 = vsyncpa [#allocation4], 1

// kernel: tpu_custom_call.1
$region0: #{tpu_custom_call.1}
  #allocation0 [shape = 'u32[]', space=smem, size = 0x4, offset = 0x4, fixed_abs, tag = 'smem constant byte address 0x4 - core index']
  #allocation1 [shape = 'u32[144,128]{1,0:T(1,128)}', space=vmem, size = 0x12000, scoped, tag = 'internal scratch']
  %s0 = inlined_call_operand.hbm [shape: bf16[16,256], index: 0, kind: input, shape index: {}]
  %s1 = inlined_call_operand.hbm [shape: bf16[256,256], index: 1, kind: input, shape index: {}]
  %s2 = inlined_call_operand.vmem [shape: f32[1,256], index: 2, kind: input, shape index: {}]
  %s3 = inlined_call_operand.hbm [shape: bf16[256,256], index: 3, kind: input, shape index: {}]
  %s4 = inlined_call_operand.vmem [shape: f32[1,256], index: 4, kind: input, shape index: {}]
  %s5 = inlined_call_operand.hbm [shape: bf16[256,256], index: 5, kind: input, shape index: {}]
  %s6 = inlined_call_operand.vmem [shape: f32[1,256], index: 6, kind: input, shape index: {}]
  %s7 = inlined_call_operand.hbm [shape: bf16[256,256], index: 7, kind: input, shape index: {}]
  %s8 = inlined_call_operand.vmem [shape: f32[1,256], index: 8, kind: input, shape index: {}]
  %s9 = inlined_call_operand.hbm [shape: bf16[256,256], index: 9, kind: input, shape index: {}]
  %s10 = inlined_call_operand.vmem [shape: f32[1,256], index: 10, kind: input, shape index: {}]
  %s11 = inlined_call_operand.hbm [shape: bf16[256,256], index: 11, kind: input, shape index: {}]
  %s12 = inlined_call_operand.vmem [shape: f32[1,256], index: 12, kind: input, shape index: {}]
  %s13 = inlined_call_operand.hbm [shape: bf16[256,256], index: 13, kind: input, shape index: {}]
  %s14 = inlined_call_operand.vmem [shape: f32[1,256], index: 14, kind: input, shape index: {}]
  %s15 = inlined_call_operand.hbm [shape: bf16[256,128], index: 15, kind: input, shape index: {}]
  %s16 = inlined_call_operand.vmem [shape: f32[1,128], index: 16, kind: input, shape index: {}]
  %s17 = inlined_call_operand.hbm [shape: f32[16,128], index: 17, kind: output, shape index: {}]
  %s18 = sld [smem:[#allocation0]]
  $region114: #{tpu_custom_call.1} parent=0
    _
  %s20 = ssub.s32 1, %s18
  %s21 = scalar_select 0, %s20, %s18
  $region1: #{tpu_custom_call.1} parent=0
    #allocation2 [shape = 'u8[8192]{0}', space=vmem, size = 0x2000, scoped, tag = 'input window, operand 0, single buffered']
    #allocation3 [shape = 's32[1]{0}', space=sflag, size = 0x4, scoped, tag = 'scoped memory for tpu_custom_call.1']
    #allocation4 [shape = 's32[1]{0}', space=sflag, size = 0x4, scoped, tag = 'scoped memory for tpu_custom_call.1']
    #allocation5 [shape = 'u8[131072]{0}', space=vmem, size = 0x20000, scoped, tag = 'input window, operand 1, single buffered']
    #allocation6 [shape = 's32[1]{0}', space=sflag, size = 0x4, scoped, tag = 'scoped memory for tpu_custom_call.1']
    #allocation7 [shape = 'u8[131072]{0}', space=vmem, size = 0x20000, scoped, tag = 'input window, operand 3, single buffered']
    #allocation8 [shape = 'u8[131072]{0}', space=vmem, size = 0x20000, scoped, tag = 'input window, operand 5, single buffered']
    #allocation9 [shape = 's32[1]{0}', space=sflag, size = 0x4, scoped, tag = 'scoped memory for tpu_custom_call.1']
    #allocation10 [shape = 'u8[131072]{0}', space=vmem, size = 0x20000, scoped, tag = 'input window, operand 7, single buffered']
    #allocation11 [shape = 'u8[131072]{0}', space=vmem, size = 0x20000, scoped, tag = 'input window, operand 9, single buffered']
    #allocation12 [shape = 's32[1]{0}', space=sflag, size = 0x4, scoped, tag = 'scoped memory for tpu_custom_call.1']
    #allocation13 [shape = 'u8[131072]{0}', space=vmem, size = 0x20000, scoped, tag = 'input window, operand 11, single buffered']
    #allocation14 [shape = 'u8[131072]{0}', space=vmem, size = 0x20000, scoped, tag = 'input window, operand 13, single buffered']
    #allocation15 [shape = 's32[1]{0}', space=sflag, size = 0x4, scoped, tag = 'scoped memory for tpu_custom_call.1']
    #allocation16 [shape = 'u8[65536]{0}', space=vmem, size = 0x10000, scoped, tag = 'input window, operand 15, single buffered']
    #allocation17 [shape = 'u8[8192]{0}', space=vmem, size = 0x2000, scoped, tag = 'output window, operand 0, single buffered']
    %22 = vsyncpa [#allocation3], 0
    %23 = vsyncpa [#allocation6], 0
    %24 = vsyncpa [#allocation9], 0
    %25 = vsyncpa [#allocation12], 0
    %26 = vsyncpa [#allocation15], 0
    %27 = vsyncpa [#allocation4], 0
    // Predicated region
    $region2: #{tpu_custom_call.1} parent=1 // pred_check
      _
    $region3: #{tpu_custom_call.1} parent=1 // pred_check_branch
      %29 = sbr.rel (0) target = $region5
    $region4: #{tpu_custom_call.1} parent=1 // pred_region
      %s31 = ssub.s32 256, 256
      %32 = vsyncadd [#allocation3], %s31
      %s33 = sshll.u32 [#allocation2], 4
      %s34 = int_to_ptr.vmem [resolvable:$true] %s33
      %39 = dma.hbm_to_vmem [thread:$0]  %s0, 256, %s34, [#allocation3], 128, 128, 8
    $region5: #{tpu_custom_call.1} parent=1 // pred_fallthru
      _
    // Predicated region
    $region6: #{tpu_custom_call.1} parent=1 // pred_check
      _
    $region7: #{tpu_custom_call.1} parent=1 // pred_check_branch
      %41 = sbr.rel (0) target = $region9
    $region8: #{tpu_custom_call.1} parent=1 // pred_region
      %s43 = ssub.s32 4096, 4096
      %44 = vsyncadd [#allocation6], %s43
      %s45 = sshll.u32 [#allocation5], 4
      %s46 = int_to_ptr.vmem [resolvable:$true] %s45
      %51 = dma.hbm_to_vmem [thread:$0]  %s1, 4096, %s46, [#allocation6], 128, 128, 8
    $region9: #{tpu_custom_call.1} parent=1 // pred_fallthru
      _
    // Predicated region
    $region10: #{tpu_custom_call.1} parent=1 // pred_check
      _
    $region11: #{tpu_custom_call.1} parent=1 // pred_check_branch
      %53 = sbr.rel (0) target = $region13
    $region12: #{tpu_custom_call.1} parent=1 // pred_region
      _
    $region13: #{tpu_custom_call.1} parent=1 // pred_fallthru
      _
    // Predicated region
    $region14: #{tpu_custom_call.1} parent=1 // pred_check
      _
    $region15: #{tpu_custom_call.1} parent=1 // pred_check_branch
      %55 = sbr.rel (0) target = $region17
    $region16: #{tpu_custom_call.1} parent=1 // pred_region
      %s57 = ssub.s32 4096, 4096
      %58 = vsyncadd [#allocation6], %s57
      %s59 = sshll.u32 [#allocation7], 4
      %s60 = int_to_ptr.vmem [resolvable:$true] %s59
      %65 = dma.hbm_to_vmem [thread:$0]  %s3, 4096, %s60, [#allocation6], 128, 128, 8
    $region17: #{tpu_custom_call.1} parent=1 // pred_fallthru
      _
    // Predicated region
    $region18: #{tpu_custom_call.1} parent=1 // pred_check
      _
    $region19: #{tpu_custom_call.1} parent=1 // pred_check_branch
      %67 = sbr.rel (0) target = $region21
    $region20: #{tpu_custom_call.1} parent=1 // pred_region
      _
    $region21: #{tpu_custom_call.1} parent=1 // pred_fallthru
      _
    // Predicated region
    $region22: #{tpu_custom_call.1} parent=1 // pred_check
      _
    $region23: #{tpu_custom_call.1} parent=1 // pred_check_branch
      %69 = sbr.rel (0) target = $region25
    $region24: #{tpu_custom_call.1} parent=1 // pred_region
      %s71 = ssub.s32 4096, 4096
      %72 = vsyncadd [#allocation9], %s71
      %s73 = sshll.u32 [#allocation8], 4
      %s74 = int_to_ptr.vmem [resolvable:$true] %s73
      %79 = dma.hbm_to_vmem [thread:$0]  %s5, 4096, %s74, [#allocation9], 128, 128, 8
    $region25: #{tpu_custom_call.1} parent=1 // pred_fallthru
      _
    // Predicated region
    $region26: #{tpu_custom_call.1} parent=1 // pred_check
      _
    $region27: #{tpu_custom_call.1} parent=1 // pred_check_branch
      %81 = sbr.rel (0) target = $region29
    $region28: #{tpu_custom_call.1} parent=1 // pred_region
      _
    $region29: #{tpu_custom_call.1} parent=1 // pred_fallthru
      _
    // Predicated region
    $region30: #{tpu_custom_call.1} parent=1 // pred_check
      _
    $region31: #{tpu_custom_call.1} parent=1 // pred_check_branch
      %83 = sbr.rel (0) target = $region33
    $region32: #{tpu_custom_call.1} parent=1 // pred_region
      %s85 = ssub.s32 4096, 4096
      %86 = vsyncadd [#allocation9], %s85
      %s87 = sshll.u32 [#allocation10], 4
      %s88 = int_to_ptr.vmem [resolvable:$true] %s87
      %93 = dma.hbm_to_vmem [thread:$0]  %s7, 4096, %s88, [#allocation9], 128, 128, 8
    $region33: #{tpu_custom_call.1} parent=1 // pred_fallthru
      _
    // Predicated region
    $region34: #{tpu_custom_call.1} parent=1 // pred_check
      _
    $region35: #{tpu_custom_call.1} parent=1 // pred_check_branch
      %95 = sbr.rel (0) target = $region37
    $region36: #{tpu_custom_call.1} parent=1 // pred_region
      _
    $region37: #{tpu_custom_call.1} parent=1 // pred_fallthru
      _
    // Predicated region
    $region38: #{tpu_custom_call.1} parent=1 // pred_check
      _
    $region39: #{tpu_custom_call.1} parent=1 // pred_check_branch
      %97 = sbr.rel (0) target = $region41
    $region40: #{tpu_custom_call.1} parent=1 // pred_region
      %s99 = ssub.s32 4096, 4096
      %100 = vsyncadd [#allocation12], %s99
      %s101 = sshll.u32 [#allocation11], 4
      %s102 = int_to_ptr.vmem [resolvable:$true] %s101
      %107 = dma.hbm_to_vmem [thread:$0]  %s9, 4096, %s102, [#allocation12], 128, 128, 8
    $region41: #{tpu_custom_call.1} parent=1 // pred_fallthru
      _
    // Predicated region
    $region42: #{tpu_custom_call.1} parent=1 // pred_check
      _
    $region43: #{tpu_custom_call.1} parent=1 // pred_check_branch
      %109 = sbr.rel (0) target = $region45
    $region44: #{tpu_custom_call.1} parent=1 // pred_region
      _
    $region45: #{tpu_custom_call.1} parent=1 // pred_fallthru
      _
    // Predicated region
    $region46: #{tpu_custom_call.1} parent=1 // pred_check
      _
    $region47: #{tpu_custom_call.1} parent=1 // pred_check_branch
      %111 = sbr.rel (0) target = $region49
    $region48: #{tpu_custom_call.1} parent=1 // pred_region
      %s113 = ssub.s32 4096, 4096
      %114 = vsyncadd [#allocation12], %s113
      %s115 = sshll.u32 [#allocation13], 4
      %s116 = int_to_ptr.vmem [resolvable:$true] %s115
      %121 = dma.hbm_to_vmem [thread:$0]  %s11, 4096, %s116, [#allocation12], 128, 128, 8
    $region49: #{tpu_custom_call.1} parent=1 // pred_fallthru
      _
    // Predicated region
    $region50: #{tpu_custom_call.1} parent=1 // pred_check
      _
    $region51: #{tpu_custom_call.1} parent=1 // pred_check_branch
      %123 = sbr.rel (0) target = $region53
    $region52: #{tpu_custom_call.1} parent=1 // pred_region
      _
    $region53: #{tpu_custom_call.1} parent=1 // pred_fallthru
      _
    // Predicated region
    $region54: #{tpu_custom_call.1} parent=1 // pred_check
      _
    $region55: #{tpu_custom_call.1} parent=1 // pred_check_branch
      %125 = sbr.rel (0) target = $region57
    $region56: #{tpu_custom_call.1} parent=1 // pred_region
      %s127 = ssub.s32 4096, 4096
      %128 = vsyncadd [#allocation15], %s127
      %s129 = sshll.u32 [#allocation14], 4
      %s130 = int_to_ptr.vmem [resolvable:$true] %s129
      %135 = dma.hbm_to_vmem [thread:$0]  %s13, 4096, %s130, [#allocation15], 128, 128, 8
    $region57: #{tpu_custom_call.1} parent=1 // pred_fallthru
      _
    // Predicated region
    $region58: #{tpu_custom_call.1} parent=1 // pred_check
      _
    $region59: #{tpu_custom_call.1} parent=1 // pred_check_branch
      %137 = sbr.rel (0) target = $region61
    $region60: #{tpu_custom_call.1} parent=1 // pred_region
      _
    $region61: #{tpu_custom_call.1} parent=1 // pred_fallthru
      _
    // Predicated region
    $region62: #{tpu_custom_call.1} parent=1 // pred_check
      _
    $region63: #{tpu_custom_call.1} parent=1 // pred_check_branch
      %139 = sbr.rel (0) target = $region65
    $region64: #{tpu_custom_call.1} parent=1 // pred_region
      %s141 = ssub.s32 2048, 2048
      %142 = vsyncadd [#allocation15], %s141
      %s143 = sshll.u32 [#allocation16], 4
      %s144 = int_to_ptr.vmem [resolvable:$true] %s143
      %149 = dma.hbm_to_vmem [thread:$0]  %s15, 2048, %s144, [#allocation15], 64, 64, 4
    $region65: #{tpu_custom_call.1} parent=1 // pred_fallthru
      _
    // Predicated region
    $region66: #{tpu_custom_call.1} parent=1 // pred_check
      _
    $region67: #{tpu_custom_call.1} parent=1 // pred_check_branch
      %151 = sbr.rel (0) target = $region69
    $region68: #{tpu_custom_call.1} parent=1 // pred_region
      _
    $region69: #{tpu_custom_call.1} parent=1 // pred_fallthru
      _
    // Predicated region
    $region70: #{tpu_custom_call.1} parent=1 // pred_check
      _
    $region71: #{tpu_custom_call.1} parent=1 // pred_check_branch
      %153 = sbr.rel (0) target = $region73
    $region72: #{tpu_custom_call.1} parent=1 // pred_region
      %154 = dma.done [#allocation3], 256
    $region73: #{tpu_custom_call.1} parent=1 // pred_fallthru
      _
    // Predicated region
    $region74: #{tpu_custom_call.1} parent=1 // pred_check
      _
    $region75: #{tpu_custom_call.1} parent=1 // pred_check_branch
      %156 = sbr.rel (0) target = $region77
    $region76: #{tpu_custom_call.1} parent=1 // pred_region
      %157 = dma.done [#allocation6], 4096
    $region77: #{tpu_custom_call.1} parent=1 // pred_fallthru
      _
    // Predicated region
    $region78: #{tpu_custom_call.1} parent=1 // pred_check
      _
    $region79: #{tpu_custom_call.1} parent=1 // pred_check_branch
      %159 = sbr.rel (0) target = $region81
    $region80: #{tpu_custom_call.1} parent=1 // pred_region
      %160 = dma.done [#allocation6], 4096
    $region81: #{tpu_custom_call.1} parent=1 // pred_fallthru
      _
    // Predicated region
    $region82: #{tpu_custom_call.1} parent=1 // pred_check
      _
    $region83: #{tpu_custom_call.1} parent=1 // pred_check_branch
      %162 = sbr.rel (0) target = $region85
    $region84: #{tpu_custom_call.1} parent=1 // pred_region
      %163 = dma.done [#allocation9], 4096
    $region85: #{tpu_custom_call.1} parent=1 // pred_fallthru
      _
    // Predicated region
    $region86: #{tpu_custom_call.1} parent=1 // pred_check
      _
    $region87: #{tpu_custom_call.1} parent=1 // pred_check_branch
      %165 = sbr.rel (0) target = $region89
    $region88: #{tpu_custom_call.1} parent=1 // pred_region
      %166 = dma.done [#allocation9], 4096
    $region89: #{tpu_custom_call.1} parent=1 // pred_fallthru
      _
    // Predicated region
    $region90: #{tpu_custom_call.1} parent=1 // pred_check
      _
    $region91: #{tpu_custom_call.1} parent=1 // pred_check_branch
      %168 = sbr.rel (0) target = $region93
    $region92: #{tpu_custom_call.1} parent=1 // pred_region
      %169 = dma.done [#allocation12], 4096
    $region93: #{tpu_custom_call.1} parent=1 // pred_fallthru
      _
    // Predicated region
    $region94: #{tpu_custom_call.1} parent=1 // pred_check
      _
    $region95: #{tpu_custom_call.1} parent=1 // pred_check_branch
      %171 = sbr.rel (0) target = $region97
    $region96: #{tpu_custom_call.1} parent=1 // pred_region
      %172 = dma.done [#allocation12], 4096
    $region97: #{tpu_custom_call.1} parent=1 // pred_fallthru
      _
    // Predicated region
    $region98: #{tpu_custom_call.1} parent=1 // pred_check
      _
    $region99: #{tpu_custom_call.1} parent=1 // pred_check_branch
      %174 = sbr.rel (0) target = $region101
    $region100: #{tpu_custom_call.1} parent=1 // pred_region
      %175 = dma.done [#allocation15], 4096
    $region101: #{tpu_custom_call.1} parent=1 // pred_fallthru
      _
    // Predicated region
    $region102: #{tpu_custom_call.1} parent=1 // pred_check
      _
    $region103: #{tpu_custom_call.1} parent=1 // pred_check_branch
      %177 = sbr.rel (0) target = $region105
    $region104: #{tpu_custom_call.1} parent=1 // pred_region
      %178 = dma.done [#allocation15], 2048
    $region105: #{tpu_custom_call.1} parent=1 // pred_fallthru
      _
    %v180 = vld [vmem:[#allocation2] sm:$0xff]
    %v181 = vld [vmem:[#allocation2 + $0x8] sm:$0xff]
    %v182 = vld [vmem:[#allocation5] sm:$0xff]
    %v183 = vld [vmem:[#allocation5 + $0x8] sm:$0xff]
    %v184 = vld [vmem:[#allocation5 + $0x10] sm:$0xff]
    %v185 = vld [vmem:[#allocation5 + $0x18] sm:$0xff]
    %v186 = vld [vmem:[#allocation5 + $0x20] sm:$0xff]
    %v187 = vld [vmem:[#allocation5 + $0x28] sm:$0xff]
    %v188 = vld [vmem:[#allocation5 + $0x30] sm:$0xff]
    %v189 = vld [vmem:[#allocation5 + $0x38] sm:$0xff]
    %v190 = vld [vmem:[#allocation5 + $0x40] sm:$0xff]
    %v191 = vld [vmem:[#allocation5 + $0x48] sm:$0xff]
    %v192 = vld [vmem:[#allocation5 + $0x50] sm:$0xff]
    %v193 = vld [vmem:[#allocation5 + $0x58] sm:$0xff]
    %v194 = vld [vmem:[#allocation5 + $0x60] sm:$0xff]
    %v195 = vld [vmem:[#allocation5 + $0x68] sm:$0xff]
    %v196 = vld [vmem:[#allocation5 + $0x70] sm:$0xff]
    %v197 = vld [vmem:[#allocation5 + $0x78] sm:$0xff]
    %v198 = vld [vmem:[#allocation5 + $0x80] sm:$0xff]
    %v199 = vld [vmem:[#allocation5 + $0x88] sm:$0xff]
    %v200 = vld [vmem:[#allocation5 + $0x90] sm:$0xff]
    %v201 = vld [vmem:[#allocation5 + $0x98] sm:$0xff]
    %v202 = vld [vmem:[#allocation5 + $0xa0] sm:$0xff]
    %v203 = vld [vmem:[#allocation5 + $0xa8] sm:$0xff]
    %v204 = vld [vmem:[#allocation5 + $0xb0] sm:$0xff]
    %v205 = vld [vmem:[#allocation5 + $0xb8] sm:$0xff]
    %v206 = vld [vmem:[#allocation5 + $0xc0] sm:$0xff]
    %v207 = vld [vmem:[#allocation5 + $0xc8] sm:$0xff]
    %v208 = vld [vmem:[#allocation5 + $0xd0] sm:$0xff]
    %v209 = vld [vmem:[#allocation5 + $0xd8] sm:$0xff]
    %v210 = vld [vmem:[#allocation5 + $0xe0] sm:$0xff]
    %v211 = vld [vmem:[#allocation5 + $0xe8] sm:$0xff]
    %v212 = vld [vmem:[#allocation5 + $0xf0] sm:$0xff]
    %v213 = vld [vmem:[#allocation5 + $0xf8] sm:$0xff]
    %v214 = vld [vmem:[%s2] sm:$0x3]
    %v216 = vlaneseq
    %v217 = vshrl.u32 %v216, 7
    %v218 = vsub.s32 0, %v217
    %v219 = vrot.slane %v214, %v218
    %v220 = vlaneseq
    %v221 = vshrl.u32 %v220, 7
    %v222 = vsub.s32 1, %v221
    %v223 = vrot.slane %v214, %v222
    %v228 = vunpack.c.l.b16 %v180
    %v229 = vunpack.c.h.b16 %v180
    %v230 = vunpack.c.l.b16 %v181
    %v231 = vunpack.c.h.b16 %v181
    %v232 = vpack.c.b16 %v230, %v228
    %v233 = vpack.c.b16 %v231, %v229
    %v268 = vunpack.c.l.b16 %v182
    %v269 = vunpack.c.h.b16 %v182
    %v270 = vunpack.c.l.b16 %v183
    %v271 = vunpack.c.h.b16 %v183
    %v272 = vunpack.c.l.b16 %v184
    %v273 = vunpack.c.h.b16 %v184
    %v274 = vunpack.c.l.b16 %v185
    %v275 = vunpack.c.h.b16 %v185
    %v276 = vunpack.c.l.b16 %v186
    %v277 = vunpack.c.h.b16 %v186
    %v278 = vunpack.c.l.b16 %v187
    %v279 = vunpack.c.h.b16 %v187
    %v280 = vunpack.c.l.b16 %v188
    %v281 = vunpack.c.h.b16 %v188
    %v282 = vunpack.c.l.b16 %v189
    %v283 = vunpack.c.h.b16 %v189
    %v284 = vunpack.c.l.b16 %v190
    %v285 = vunpack.c.h.b16 %v190
    %v286 = vunpack.c.l.b16 %v191
    %v287 = vunpack.c.h.b16 %v191
    %v288 = vunpack.c.l.b16 %v192
    %v289 = vunpack.c.h.b16 %v192
    %v290 = vunpack.c.l.b16 %v193
    %v291 = vunpack.c.h.b16 %v193
    %v292 = vunpack.c.l.b16 %v194
    %v293 = vunpack.c.h.b16 %v194
    %v294 = vunpack.c.l.b16 %v195
    %v295 = vunpack.c.h.b16 %v195
    %v296 = vunpack.c.l.b16 %v196
    %v297 = vunpack.c.h.b16 %v196
    %v298 = vunpack.c.l.b16 %v197
    %v299 = vunpack.c.h.b16 %v197
    %v300 = vunpack.c.l.b16 %v198
    %v301 = vunpack.c.h.b16 %v198
    %v302 = vunpack.c.l.b16 %v199
    %v303 = vunpack.c.h.b16 %v199
    %v304 = vunpack.c.l.b16 %v200
    %v305 = vunpack.c.h.b16 %v200
    %v306 = vunpack.c.l.b16 %v201
    %v307 = vunpack.c.h.b16 %v201
    %v308 = vunpack.c.l.b16 %v202
    %v309 = vunpack.c.h.b16 %v202
    %v310 = vunpack.c.l.b16 %v203
    %v311 = vunpack.c.h.b16 %v203
    %v312 = vunpack.c.l.b16 %v204
    %v313 = vunpack.c.h.b16 %v204
    %v314 = vunpack.c.l.b16 %v205
    %v315 = vunpack.c.h.b16 %v205
    %v316 = vunpack.c.l.b16 %v206
    %v317 = vunpack.c.h.b16 %v206
    %v318 = vunpack.c.l.b16 %v207
    %v319 = vunpack.c.h.b16 %v207
    %v320 = vunpack.c.l.b16 %v208
    %v321 = vunpack.c.h.b16 %v208
    %v322 = vunpack.c.l.b16 %v209
    %v323 = vunpack.c.h.b16 %v209
    %v324 = vunpack.c.l.b16 %v210
    %v325 = vunpack.c.h.b16 %v210
    %v326 = vunpack.c.l.b16 %v211
    %v327 = vunpack.c.h.b16 %v211
    %v328 = vunpack.c.l.b16 %v212
    %v329 = vunpack.c.h.b16 %v212
    %v330 = vunpack.c.l.b16 %v213
    %v331 = vunpack.c.h.b16 %v213
    %v332 = vpack.c.b16 %v270, %v268
    %v333 = vpack.c.b16 %v271, %v269
    %v334 = vpack.c.b16 %v274, %v272
    %v335 = vpack.c.b16 %v275, %v273
    %v336 = vpack.c.b16 %v278, %v276
    %v337 = vpack.c.b16 %v279, %v277
    %v338 = vpack.c.b16 %v282, %v280
    %v339 = vpack.c.b16 %v283, %v281
    %v340 = vpack.c.b16 %v286, %v284
    %v341 = vpack.c.b16 %v287, %v285
    %v342 = vpack.c.b16 %v290, %v288
    %v343 = vpack.c.b16 %v291, %v289
    %v344 = vpack.c.b16 %v294, %v292
    %v345 = vpack.c.b16 %v295, %v293
    %v346 = vpack.c.b16 %v298, %v296
    %v347 = vpack.c.b16 %v299, %v297
    %v348 = vpack.c.b16 %v302, %v300
    %v349 = vpack.c.b16 %v303, %v301
    %v350 = vpack.c.b16 %v306, %v304
    %v351 = vpack.c.b16 %v307, %v305
    %v352 = vpack.c.b16 %v310, %v308
    %v353 = vpack.c.b16 %v311, %v309
    %v354 = vpack.c.b16 %v314, %v312
    %v355 = vpack.c.b16 %v315, %v313
    %v356 = vpack.c.b16 %v318, %v316
    %v357 = vpack.c.b16 %v319, %v317
    %v358 = vpack.c.b16 %v322, %v320
    %v359 = vpack.c.b16 %v323, %v321
    %v360 = vpack.c.b16 %v326, %v324
    %v361 = vpack.c.b16 %v327, %v325
    %v362 = vpack.c.b16 %v330, %v328
    %v363 = vpack.c.b16 %v331, %v329
    %396 = vmatprep.subr.bf16.mxu0 %v347
    %397 = vmatpush1.bf16.msra.mxu0 %v346
    %398 = vmatprep.subr.bf16.mxu0 %v345
    %399 = vmatpush1.bf16.msra.mxu0 %v344
    %400 = vmatprep.subr.bf16.mxu0 %v343
    %401 = vmatpush1.bf16.msra.mxu0 %v342
    %402 = vmatprep.subr.bf16.mxu0 %v341
    %403 = vmatpush1.bf16.msra.mxu0 %v340
    %404 = vmatprep.subr.bf16.mxu0 %v339
    %405 = vmatpush1.bf16.msra.mxu0 %v338
    %406 = vmatprep.subr.bf16.mxu0 %v337
    %407 = vmatpush1.bf16.msra.mxu0 %v336
    %408 = vmatprep.subr.bf16.mxu0 %v335
    %409 = vmatpush1.bf16.msra.mxu0 %v334
    %410 = vmatprep.subr.bf16.mxu0 %v333
    %411 = vmatpush1.bf16.msra.mxu0 %v332
    %412 = vmatprep.subr.bf16.mxu0 %v363
    %413 = vmatpush2.bf16.msra.mxu0 %v362
    %414 = vmatprep.subr.bf16.mxu0 %v361
    %415 = vmatpush2.bf16.msra.mxu0 %v360
    %416 = vmatprep.subr.bf16.mxu0 %v359
    %417 = vmatpush2.bf16.msra.mxu0 %v358
    %418 = vmatprep.subr.bf16.mxu0 %v357
    %419 = vmatpush2.bf16.msra.mxu0 %v356
    %420 = vmatprep.subr.bf16.mxu0 %v355
    %421 = vmatpush2.bf16.msra.mxu0 %v354
    %422 = vmatprep.subr.bf16.mxu0 %v353
    %423 = vmatpush2.bf16.msra.mxu0 %v352
    %424 = vmatprep.subr.bf16.mxu0 %v351
    %425 = vmatpush2.bf16.msra.mxu0 %v350
    %426 = vmatprep.subr.bf16.mxu0 %v349
    %427 = vmatpush2.bf16.msra.mxu0 %v348
    %428 = vmatprep.mubr.bf16.mxu0 %v233
    %429 = vmatmul.mubr.bf16.gmra.mxu0 %v232
    %v430 = vpop.f32.mrf.mxu0
    %v431 = vadd.f32 %v219, %v430
    %v432 = vpop.f32.mrf.mxu0
    %v433 = vadd.f32 %v223, %v432
    %v434 = vpop.f32.mrf.mxu0
    %v435 = vadd.f32 %v219, %v434
    %v436 = vpop.f32.mrf.mxu0
    %v437 = vadd.f32 %v223, %v436
    %438 = vdwg.mxu0
    %v439 = vmax.f32 %v431, 0.0
    %v440 = vmax.f32 %v433, 0.0
    %v441 = vmax.f32 %v435, 0.0
    %v442 = vmax.f32 %v437, 0.0
    %v443 = vpack.c.bf16 %v441, %v439
    %v444 = vpack.c.bf16 %v442, %v440
    %v445 = vld [vmem:[#allocation7] sm:$0xff]
    %v446 = vld [vmem:[#allocation7 + $0x8] sm:$0xff]
    %v447 = vld [vmem:[#allocation7 + $0x10] sm:$0xff]
    %v448 = vld [vmem:[#allocation7 + $0x18] sm:$0xff]
    %v449 = vld [vmem:[#allocation7 + $0x20] sm:$0xff]
    %v450 = vld [vmem:[#allocation7 + $0x28] sm:$0xff]
    %v451 = vld [vmem:[#allocation7 + $0x30] sm:$0xff]
    %v452 = vld [vmem:[#allocation7 + $0x38] sm:$0xff]
    %v453 = vld [vmem:[#allocation7 + $0x40] sm:$0xff]
    %v454 = vld [vmem:[#allocation7 + $0x48] sm:$0xff]
    %v455 = vld [vmem:[#allocation7 + $0x50] sm:$0xff]
    %v456 = vld [vmem:[#allocation7 + $0x58] sm:$0xff]
    %v457 = vld [vmem:[#allocation7 + $0x60] sm:$0xff]
    %v458 = vld [vmem:[#allocation7 + $0x68] sm:$0xff]
    %v459 = vld [vmem:[#allocation7 + $0x70] sm:$0xff]
    %v460 = vld [vmem:[#allocation7 + $0x78] sm:$0xff]
    %v461 = vld [vmem:[#allocation7 + $0x80] sm:$0xff]
    %v462 = vld [vmem:[#allocation7 + $0x88] sm:$0xff]
    %v463 = vld [vmem:[#allocation7 + $0x90] sm:$0xff]
    %v464 = vld [vmem:[#allocation7 + $0x98] sm:$0xff]
    %v465 = vld [vmem:[#allocation7 + $0xa0] sm:$0xff]
    %v466 = vld [vmem:[#allocation7 + $0xa8] sm:$0xff]
    %v467 = vld [vmem:[#allocation7 + $0xb0] sm:$0xff]
    %v468 = vld [vmem:[#allocation7 + $0xb8] sm:$0xff]
    %v469 = vld [vmem:[#allocation7 + $0xc0] sm:$0xff]
    %v470 = vld [vmem:[#allocation7 + $0xc8] sm:$0xff]
    %v471 = vld [vmem:[#allocation7 + $0xd0] sm:$0xff]
    %v472 = vld [vmem:[#allocation7 + $0xd8] sm:$0xff]
    %v473 = vld [vmem:[#allocation7 + $0xe0] sm:$0xff]
    %v474 = vld [vmem:[#allocation7 + $0xe8] sm:$0xff]
    %v475 = vld [vmem:[#allocation7 + $0xf0] sm:$0xff]
    %v476 = vld [vmem:[#allocation7 + $0xf8] sm:$0xff]
    %v477 = vld [vmem:[%s4] sm:$0x3]
    %v479 = vlaneseq
    %v480 = vshrl.u32 %v479, 7
    %v481 = vsub.s32 0, %v480
    %v482 = vrot.slane %v477, %v481
    %v483 = vlaneseq
    %v484 = vshrl.u32 %v483, 7
    %v485 = vsub.s32 1, %v484
    %v486 = vrot.slane %v477, %v485
    %v521 = vunpack.c.l.b16 %v445
    %v522 = vunpack.c.h.b16 %v445
    %v523 = vunpack.c.l.b16 %v446
    %v524 = vunpack.c.h.b16 %v446
    %v525 = vunpack.c.l.b16 %v447
    %v526 = vunpack.c.h.b16 %v447
    %v527 = vunpack.c.l.b16 %v448
    %v528 = vunpack.c.h.b16 %v448
    %v529 = vunpack.c.l.b16 %v449
    %v530 = vunpack.c.h.b16 %v449
    %v531 = vunpack.c.l.b16 %v450
    %v532 = vunpack.c.h.b16 %v450
    %v533 = vunpack.c.l.b16 %v451
    %v534 = vunpack.c.h.b16 %v451
    %v535 = vunpack.c.l.b16 %v452
    %v536 = vunpack.c.h.b16 %v452
    %v537 = vunpack.c.l.b16 %v453
    %v538 = vunpack.c.h.b16 %v453
    %v539 = vunpack.c.l.b16 %v454
    %v540 = vunpack.c.h.b16 %v454
    %v541 = vunpack.c.l.b16 %v455
    %v542 = vunpack.c.h.b16 %v455
    %v543 = vunpack.c.l.b16 %v456
    %v544 = vunpack.c.h.b16 %v456
    %v545 = vunpack.c.l.b16 %v457
    %v546 = vunpack.c.h.b16 %v457
    %v547 = vunpack.c.l.b16 %v458
    %v548 = vunpack.c.h.b16 %v458
    %v549 = vunpack.c.l.b16 %v459
    %v550 = vunpack.c.h.b16 %v459
    %v551 = vunpack.c.l.b16 %v460
    %v552 = vunpack.c.h.b16 %v460
    %v553 = vunpack.c.l.b16 %v461
    %v554 = vunpack.c.h.b16 %v461
    %v555 = vunpack.c.l.b16 %v462
    %v556 = vunpack.c.h.b16 %v462
    %v557 = vunpack.c.l.b16 %v463
    %v558 = vunpack.c.h.b16 %v463
    %v559 = vunpack.c.l.b16 %v464
    %v560 = vunpack.c.h.b16 %v464
    %v561 = vunpack.c.l.b16 %v465
    %v562 = vunpack.c.h.b16 %v465
    %v563 = vunpack.c.l.b16 %v466
    %v564 = vunpack.c.h.b16 %v466
    %v565 = vunpack.c.l.b16 %v467
    %v566 = vunpack.c.h.b16 %v467
    %v567 = vunpack.c.l.b16 %v468
    %v568 = vunpack.c.h.b16 %v468
    %v569 = vunpack.c.l.b16 %v469
    %v570 = vunpack.c.h.b16 %v469
    %v571 = vunpack.c.l.b16 %v470
    %v572 = vunpack.c.h.b16 %v470
    %v573 = vunpack.c.l.b16 %v471
    %v574 = vunpack.c.h.b16 %v471
    %v575 = vunpack.c.l.b16 %v472
    %v576 = vunpack.c.h.b16 %v472
    %v577 = vunpack.c.l.b16 %v473
    %v578 = vunpack.c.h.b16 %v473
    %v579 = vunpack.c.l.b16 %v474
    %v580 = vunpack.c.h.b16 %v474
    %v581 = vunpack.c.l.b16 %v475
    %v582 = vunpack.c.h.b16 %v475
    %v583 = vunpack.c.l.b16 %v476
    %v584 = vunpack.c.h.b16 %v476
    %v585 = vpack.c.b16 %v523, %v521
    %v586 = vpack.c.b16 %v524, %v522
    %v587 = vpack.c.b16 %v527, %v525
    %v588 = vpack.c.b16 %v528, %v526
    %v589 = vpack.c.b16 %v531, %v529
    %v590 = vpack.c.b16 %v532, %v530
    %v591 = vpack.c.b16 %v535, %v533
    %v592 = vpack.c.b16 %v536, %v534
    %v593 = vpack.c.b16 %v539, %v537
    %v594 = vpack.c.b16 %v540, %v538
    %v595 = vpack.c.b16 %v543, %v541
    %v596 = vpack.c.b16 %v544, %v542
    %v597 = vpack.c.b16 %v547, %v545
    %v598 = vpack.c.b16 %v548, %v546
    %v599 = vpack.c.b16 %v551, %v549
    %v600 = vpack.c.b16 %v552, %v550
    %v601 = vpack.c.b16 %v555, %v553
    %v602 = vpack.c.b16 %v556, %v554
    %v603 = vpack.c.b16 %v559, %v557
    %v604 = vpack.c.b16 %v560, %v558
    %v605 = vpack.c.b16 %v563, %v561
    %v606 = vpack.c.b16 %v564, %v562
    %v607 = vpack.c.b16 %v567, %v565
    %v608 = vpack.c.b16 %v568, %v566
    %v609 = vpack.c.b16 %v571, %v569
    %v610 = vpack.c.b16 %v572, %v570
    %v611 = vpack.c.b16 %v575, %v573
    %v612 = vpack.c.b16 %v576, %v574
    %v613 = vpack.c.b16 %v579, %v577
    %v614 = vpack.c.b16 %v580, %v578
    %v615 = vpack.c.b16 %v583, %v581
    %v616 = vpack.c.b16 %v584, %v582
    %649 = vmatprep.subr.bf16.mxu0 %v600
    %650 = vmatpush1.bf16.msra.mxu0 %v599
    %651 = vmatprep.subr.bf16.mxu0 %v598
    %652 = vmatpush1.bf16.msra.mxu0 %v597
    %653 = vmatprep.subr.bf16.mxu0 %v596
    %654 = vmatpush1.bf16.msra.mxu0 %v595
    %655 = vmatprep.subr.bf16.mxu0 %v594
    %656 = vmatpush1.bf16.msra.mxu0 %v593
    %657 = vmatprep.subr.bf16.mxu0 %v592
    %658 = vmatpush1.bf16.msra.mxu0 %v591
    %659 = vmatprep.subr.bf16.mxu0 %v590
    %660 = vmatpush1.bf16.msra.mxu0 %v589
    %661 = vmatprep.subr.bf16.mxu0 %v588
    %662 = vmatpush1.bf16.msra.mxu0 %v587
    %663 = vmatprep.subr.bf16.mxu0 %v586
    %664 = vmatpush1.bf16.msra.mxu0 %v585
    %665 = vmatprep.subr.bf16.mxu0 %v616
    %666 = vmatpush2.bf16.msra.mxu0 %v615
    %667 = vmatprep.subr.bf16.mxu0 %v614
    %668 = vmatpush2.bf16.msra.mxu0 %v613
    %669 = vmatprep.subr.bf16.mxu0 %v612
    %670 = vmatpush2.bf16.msra.mxu0 %v611
    %671 = vmatprep.subr.bf16.mxu0 %v610
    %672 = vmatpush2.bf16.msra.mxu0 %v609
    %673 = vmatprep.subr.bf16.mxu0 %v608
    %674 = vmatpush2.bf16.msra.mxu0 %v607
    %675 = vmatprep.subr.bf16.mxu0 %v606
    %676 = vmatpush2.bf16.msra.mxu0 %v605
    %677 = vmatprep.subr.bf16.mxu0 %v604
    %678 = vmatpush2.bf16.msra.mxu0 %v603
    %679 = vmatprep.subr.bf16.mxu0 %v602
    %680 = vmatpush2.bf16.msra.mxu0 %v601
    %681 = vmatprep.mubr.bf16.mxu0 %v444
    %682 = vmatmul.mubr.bf16.gmra.mxu0 %v443
    %v683 = vpop.f32.mrf.mxu0
    %v684 = vadd.f32 %v482, %v683
    %v685 = vpop.f32.mrf.mxu0
    %v686 = vadd.f32 %v486, %v685
    %v687 = vpop.f32.mrf.mxu0
    %v688 = vadd.f32 %v482, %v687
    %v689 = vpop.f32.mrf.mxu0
    %v690 = vadd.f32 %v486, %v689
    %691 = vdwg.mxu0
    %v692 = vmax.f32 %v684, 0.0
    %v693 = vmax.f32 %v686, 0.0
    %v694 = vmax.f32 %v688, 0.0
    %v695 = vmax.f32 %v690, 0.0
    %v696 = vpack.c.bf16 %v694, %v692
    %v697 = vpack.c.bf16 %v695, %v693
    %v698 = vld [vmem:[#allocation8] sm:$0xff]
    %v699 = vld [vmem:[#allocation8 + $0x8] sm:$0xff]
    %v700 = vld [vmem:[#allocation8 + $0x10] sm:$0xff]
    %v701 = vld [vmem:[#allocation8 + $0x18] sm:$0xff]
    %v702 = vld [vmem:[#allocation8 + $0x20] sm:$0xff]
    %v703 = vld [vmem:[#allocation8 + $0x28] sm:$0xff]
    %v704 = vld [vmem:[#allocation8 + $0x30] sm:$0xff]
    %v705 = vld [vmem:[#allocation8 + $0x38] sm:$0xff]
    %v706 = vld [vmem:[#allocation8 + $0x40] sm:$0xff]
    %v707 = vld [vmem:[#allocation8 + $0x48] sm:$0xff]
    %v708 = vld [vmem:[#allocation8 + $0x50] sm:$0xff]
    %v709 = vld [vmem:[#allocation8 + $0x58] sm:$0xff]
    %v710 = vld [vmem:[#allocation8 + $0x60] sm:$0xff]
    %v711 = vld [vmem:[#allocation8 + $0x68] sm:$0xff]
    %v712 = vld [vmem:[#allocation8 + $0x70] sm:$0xff]
    %v713 = vld [vmem:[#allocation8 + $0x78] sm:$0xff]
    %v714 = vld [vmem:[#allocation8 + $0x80] sm:$0xff]
    %v715 = vld [vmem:[#allocation8 + $0x88] sm:$0xff]
    %v716 = vld [vmem:[#allocation8 + $0x90] sm:$0xff]
    %v717 = vld [vmem:[#allocation8 + $0x98] sm:$0xff]
    %v718 = vld [vmem:[#allocation8 + $0xa0] sm:$0xff]
    %v719 = vld [vmem:[#allocation8 + $0xa8] sm:$0xff]
    %v720 = vld [vmem:[#allocation8 + $0xb0] sm:$0xff]
    %v721 = vld [vmem:[#allocation8 + $0xb8] sm:$0xff]
    %v722 = vld [vmem:[#allocation8 + $0xc0] sm:$0xff]
    %v723 = vld [vmem:[#allocation8 + $0xc8] sm:$0xff]
    %v724 = vld [vmem:[#allocation8 + $0xd0] sm:$0xff]
    %v725 = vld [vmem:[#allocation8 + $0xd8] sm:$0xff]
    %v726 = vld [vmem:[#allocation8 + $0xe0] sm:$0xff]
    %v727 = vld [vmem:[#allocation8 + $0xe8] sm:$0xff]
    %v728 = vld [vmem:[#allocation8 + $0xf0] sm:$0xff]
    %v729 = vld [vmem:[#allocation8 + $0xf8] sm:$0xff]
    %v730 = vld [vmem:[%s6] sm:$0x3]
    %v732 = vlaneseq
    %v733 = vshrl.u32 %v732, 7
    %v734 = vsub.s32 0, %v733
    %v735 = vrot.slane %v730, %v734
    %v736 = vlaneseq
    %v737 = vshrl.u32 %v736, 7
    %v738 = vsub.s32 1, %v737
    %v739 = vrot.slane %v730, %v738
    %v774 = vunpack.c.l.b16 %v698
    %v775 = vunpack.c.h.b16 %v698
    %v776 = vunpack.c.l.b16 %v699
    %v777 = vunpack.c.h.b16 %v699
    %v778 = vunpack.c.l.b16 %v700
    %v779 = vunpack.c.h.b16 %v700
    %v780 = vunpack.c.l.b16 %v701
    %v781 = vunpack.c.h.b16 %v701
    %v782 = vunpack.c.l.b16 %v702
    %v783 = vunpack.c.h.b16 %v702
    %v784 = vunpack.c.l.b16 %v703
    %v785 = vunpack.c.h.b16 %v703
    %v786 = vunpack.c.l.b16 %v704
    %v787 = vunpack.c.h.b16 %v704
    %v788 = vunpack.c.l.b16 %v705
    %v789 = vunpack.c.h.b16 %v705
    %v790 = vunpack.c.l.b16 %v706
    %v791 = vunpack.c.h.b16 %v706
    %v792 = vunpack.c.l.b16 %v707
    %v793 = vunpack.c.h.b16 %v707
    %v794 = vunpack.c.l.b16 %v708
    %v795 = vunpack.c.h.b16 %v708
    %v796 = vunpack.c.l.b16 %v709
    %v797 = vunpack.c.h.b16 %v709
    %v798 = vunpack.c.l.b16 %v710
    %v799 = vunpack.c.h.b16 %v710
    %v800 = vunpack.c.l.b16 %v711
    %v801 = vunpack.c.h.b16 %v711
    %v802 = vunpack.c.l.b16 %v712
    %v803 = vunpack.c.h.b16 %v712
    %v804 = vunpack.c.l.b16 %v713
    %v805 = vunpack.c.h.b16 %v713
    %v806 = vunpack.c.l.b16 %v714
    %v807 = vunpack.c.h.b16 %v714
    %v808 = vunpack.c.l.b16 %v715
    %v809 = vunpack.c.h.b16 %v715
    %v810 = vunpack.c.l.b16 %v716
    %v811 = vunpack.c.h.b16 %v716
    %v812 = vunpack.c.l.b16 %v717
    %v813 = vunpack.c.h.b16 %v717
    %v814 = vunpack.c.l.b16 %v718
    %v815 = vunpack.c.h.b16 %v718
    %v816 = vunpack.c.l.b16 %v719
    %v817 = vunpack.c.h.b16 %v719
    %v818 = vunpack.c.l.b16 %v720
    %v819 = vunpack.c.h.b16 %v720
    %v820 = vunpack.c.l.b16 %v721
    %v821 = vunpack.c.h.b16 %v721
    %v822 = vunpack.c.l.b16 %v722
    %v823 = vunpack.c.h.b16 %v722
    %v824 = vunpack.c.l.b16 %v723
    %v825 = vunpack.c.h.b16 %v723
    %v826 = vunpack.c.l.b16 %v724
    %v827 = vunpack.c.h.b16 %v724
    %v828 = vunpack.c.l.b16 %v725
    %v829 = vunpack.c.h.b16 %v725
    %v830 = vunpack.c.l.b16 %v726
    %v831 = vunpack.c.h.b16 %v726
    %v832 = vunpack.c.l.b16 %v727
    %v833 = vunpack.c.h.b16 %v727
    %v834 = vunpack.c.l.b16 %v728
    %v835 = vunpack.c.h.b16 %v728
    %v836 = vunpack.c.l.b16 %v729
    %v837 = vunpack.c.h.b16 %v729
    %v838 = vpack.c.b16 %v776, %v774
    %v839 = vpack.c.b16 %v777, %v775
    %v840 = vpack.c.b16 %v780, %v778
    %v841 = vpack.c.b16 %v781, %v779
    %v842 = vpack.c.b16 %v784, %v782
    %v843 = vpack.c.b16 %v785, %v783
    %v844 = vpack.c.b16 %v788, %v786
    %v845 = vpack.c.b16 %v789, %v787
    %v846 = vpack.c.b16 %v792, %v790
    %v847 = vpack.c.b16 %v793, %v791
    %v848 = vpack.c.b16 %v796, %v794
    %v849 = vpack.c.b16 %v797, %v795
    %v850 = vpack.c.b16 %v800, %v798
    %v851 = vpack.c.b16 %v801, %v799
    %v852 = vpack.c.b16 %v804, %v802
    %v853 = vpack.c.b16 %v805, %v803
    %v854 = vpack.c.b16 %v808, %v806
    %v855 = vpack.c.b16 %v809, %v807
    %v856 = vpack.c.b16 %v812, %v810
    %v857 = vpack.c.b16 %v813, %v811
    %v858 = vpack.c.b16 %v816, %v814
    %v859 = vpack.c.b16 %v817, %v815
    %v860 = vpack.c.b16 %v820, %v818
    %v861 = vpack.c.b16 %v821, %v819
    %v862 = vpack.c.b16 %v824, %v822
    %v863 = vpack.c.b16 %v825, %v823
    %v864 = vpack.c.b16 %v828, %v826
    %v865 = vpack.c.b16 %v829, %v827
    %v866 = vpack.c.b16 %v832, %v830
    %v867 = vpack.c.b16 %v833, %v831
    %v868 = vpack.c.b16 %v836, %v834
    %v869 = vpack.c.b16 %v837, %v835
    %902 = vmatprep.subr.bf16.mxu0 %v853
    %903 = vmatpush1.bf16.msra.mxu0 %v852
    %904 = vmatprep.subr.bf16.mxu0 %v851
    %905 = vmatpush1.bf16.msra.mxu0 %v850
    %906 = vmatprep.subr.bf16.mxu0 %v849
    %907 = vmatpush1.bf16.msra.mxu0 %v848
    %908 = vmatprep.subr.bf16.mxu0 %v847
    %909 = vmatpush1.bf16.msra.mxu0 %v846
    %910 = vmatprep.subr.bf16.mxu0 %v845
    %911 = vmatpush1.bf16.msra.mxu0 %v844
    %912 = vmatprep.subr.bf16.mxu0 %v843
    %913 = vmatpush1.bf16.msra.mxu0 %v842
    %914 = vmatprep.subr.bf16.mxu0 %v841
    %915 = vmatpush1.bf16.msra.mxu0 %v840
    %916 = vmatprep.subr.bf16.mxu0 %v839
    %917 = vmatpush1.bf16.msra.mxu0 %v838
    %918 = vmatprep.subr.bf16.mxu0 %v869
    %919 = vmatpush2.bf16.msra.mxu0 %v868
    %920 = vmatprep.subr.bf16.mxu0 %v867
    %921 = vmatpush2.bf16.msra.mxu0 %v866
    %922 = vmatprep.subr.bf16.mxu0 %v865
    %923 = vmatpush2.bf16.msra.mxu0 %v864
    %924 = vmatprep.subr.bf16.mxu0 %v863
    %925 = vmatpush2.bf16.msra.mxu0 %v862
    %926 = vmatprep.subr.bf16.mxu0 %v861
    %927 = vmatpush2.bf16.msra.mxu0 %v860
    %928 = vmatprep.subr.bf16.mxu0 %v859
    %929 = vmatpush2.bf16.msra.mxu0 %v858
    %930 = vmatprep.subr.bf16.mxu0 %v857
    %931 = vmatpush2.bf16.msra.mxu0 %v856
    %932 = vmatprep.subr.bf16.mxu0 %v855
    %933 = vmatpush2.bf16.msra.mxu0 %v854
    %934 = vmatprep.mubr.bf16.mxu0 %v697
    %935 = vmatmul.mubr.bf16.gmra.mxu0 %v696
    %v936 = vpop.f32.mrf.mxu0
    %v937 = vadd.f32 %v735, %v936
    %v938 = vpop.f32.mrf.mxu0
    %v939 = vadd.f32 %v739, %v938
    %v940 = vpop.f32.mrf.mxu0
    %v941 = vadd.f32 %v735, %v940
    %v942 = vpop.f32.mrf.mxu0
    %v943 = vadd.f32 %v739, %v942
    %944 = vdwg.mxu0
    %v945 = vmax.f32 %v937, 0.0
    %v946 = vmax.f32 %v939, 0.0
    %v947 = vmax.f32 %v941, 0.0
    %v948 = vmax.f32 %v943, 0.0
    %v949 = vpack.c.bf16 %v947, %v945
    %v950 = vpack.c.bf16 %v948, %v946
    %v951 = vld [vmem:[#allocation10] sm:$0xff]
    %v952 = vld [vmem:[#allocation10 + $0x8] sm:$0xff]
    %v953 = vld [vmem:[#allocation10 + $0x10] sm:$0xff]
    %v954 = vld [vmem:[#allocation10 + $0x18] sm:$0xff]
    %v955 = vld [vmem:[#allocation10 + $0x20] sm:$0xff]
    %v956 = vld [vmem:[#allocation10 + $0x28] sm:$0xff]
    %v957 = vld [vmem:[#allocation10 + $0x30] sm:$0xff]
    %v958 = vld [vmem:[#allocation10 + $0x38] sm:$0xff]
    %v959 = vld [vmem:[#allocation10 + $0x40] sm:$0xff]
    %v960 = vld [vmem:[#allocation10 + $0x48] sm:$0xff]
    %v961 = vld [vmem:[#allocation10 + $0x50] sm:$0xff]
    %v962 = vld [vmem:[#allocation10 + $0x58] sm:$0xff]
    %v963 = vld [vmem:[#allocation10 + $0x60] sm:$0xff]
    %v964 = vld [vmem:[#allocation10 + $0x68] sm:$0xff]
    %v965 = vld [vmem:[#allocation10 + $0x70] sm:$0xff]
    %v966 = vld [vmem:[#allocation10 + $0x78] sm:$0xff]
    %v967 = vld [vmem:[#allocation10 + $0x80] sm:$0xff]
    %v968 = vld [vmem:[#allocation10 + $0x88] sm:$0xff]
    %v969 = vld [vmem:[#allocation10 + $0x90] sm:$0xff]
    %v970 = vld [vmem:[#allocation10 + $0x98] sm:$0xff]
    %v971 = vld [vmem:[#allocation10 + $0xa0] sm:$0xff]
    %v972 = vld [vmem:[#allocation10 + $0xa8] sm:$0xff]
    %v973 = vld [vmem:[#allocation10 + $0xb0] sm:$0xff]
    %v974 = vld [vmem:[#allocation10 + $0xb8] sm:$0xff]
    %v975 = vld [vmem:[#allocation10 + $0xc0] sm:$0xff]
    %v976 = vld [vmem:[#allocation10 + $0xc8] sm:$0xff]
    %v977 = vld [vmem:[#allocation10 + $0xd0] sm:$0xff]
    %v978 = vld [vmem:[#allocation10 + $0xd8] sm:$0xff]
    %v979 = vld [vmem:[#allocation10 + $0xe0] sm:$0xff]
    %v980 = vld [vmem:[#allocation10 + $0xe8] sm:$0xff]
    %v981 = vld [vmem:[#allocation10 + $0xf0] sm:$0xff]
    %v982 = vld [vmem:[#allocation10 + $0xf8] sm:$0xff]
    %v983 = vld [vmem:[%s8] sm:$0x3]
    %v985 = vlaneseq
    %v986 = vshrl.u32 %v985, 7
    %v987 = vsub.s32 0, %v986
    %v988 = vrot.slane %v983, %v987
    %v989 = vlaneseq
    %v990 = vshrl.u32 %v989, 7
    %v991 = vsub.s32 1, %v990
    %v992 = vrot.slane %v983, %v991
    %v1027 = vunpack.c.l.b16 %v951
    %v1028 = vunpack.c.h.b16 %v951
    %v1029 = vunpack.c.l.b16 %v952
    %v1030 = vunpack.c.h.b16 %v952
    %v1031 = vunpack.c.l.b16 %v953
    %v1032 = vunpack.c.h.b16 %v953
    %v1033 = vunpack.c.l.b16 %v954
    %v1034 = vunpack.c.h.b16 %v954
    %v1035 = vunpack.c.l.b16 %v955
    %v1036 = vunpack.c.h.b16 %v955
    %v1037 = vunpack.c.l.b16 %v956
    %v1038 = vunpack.c.h.b16 %v956
    %v1039 = vunpack.c.l.b16 %v957
    %v1040 = vunpack.c.h.b16 %v957
    %v1041 = vunpack.c.l.b16 %v958
    %v1042 = vunpack.c.h.b16 %v958
    %v1043 = vunpack.c.l.b16 %v959
    %v1044 = vunpack.c.h.b16 %v959
    %v1045 = vunpack.c.l.b16 %v960
    %v1046 = vunpack.c.h.b16 %v960
    %v1047 = vunpack.c.l.b16 %v961
    %v1048 = vunpack.c.h.b16 %v961
    %v1049 = vunpack.c.l.b16 %v962
    %v1050 = vunpack.c.h.b16 %v962
    %v1051 = vunpack.c.l.b16 %v963
    %v1052 = vunpack.c.h.b16 %v963
    %v1053 = vunpack.c.l.b16 %v964
    %v1054 = vunpack.c.h.b16 %v964
    %v1055 = vunpack.c.l.b16 %v965
    %v1056 = vunpack.c.h.b16 %v965
    %v1057 = vunpack.c.l.b16 %v966
    %v1058 = vunpack.c.h.b16 %v966
    %v1059 = vunpack.c.l.b16 %v967
    %v1060 = vunpack.c.h.b16 %v967
    %v1061 = vunpack.c.l.b16 %v968
    %v1062 = vunpack.c.h.b16 %v968
    %v1063 = vunpack.c.l.b16 %v969
    %v1064 = vunpack.c.h.b16 %v969
    %v1065 = vunpack.c.l.b16 %v970
    %v1066 = vunpack.c.h.b16 %v970
    %v1067 = vunpack.c.l.b16 %v971
    %v1068 = vunpack.c.h.b16 %v971
    %v1069 = vunpack.c.l.b16 %v972
    %v1070 = vunpack.c.h.b16 %v972
    %v1071 = vunpack.c.l.b16 %v973
    %v1072 = vunpack.c.h.b16 %v973
    %v1073 = vunpack.c.l.b16 %v974
    %v1074 = vunpack.c.h.b16 %v974
    %v1075 = vunpack.c.l.b16 %v975
    %v1076 = vunpack.c.h.b16 %v975
    %v1077 = vunpack.c.l.b16 %v976
    %v1078 = vunpack.c.h.b16 %v976
    %v1079 = vunpack.c.l.b16 %v977
    %v1080 = vunpack.c.h.b16 %v977
    %v1081 = vunpack.c.l.b16 %v978
    %v1082 = vunpack.c.h.b16 %v978
    %v1083 = vunpack.c.l.b16 %v979
    %v1084 = vunpack.c.h.b16 %v979
    %v1085 = vunpack.c.l.b16 %v980
    %v1086 = vunpack.c.h.b16 %v980
    %v1087 = vunpack.c.l.b16 %v981
    %v1088 = vunpack.c.h.b16 %v981
    %v1089 = vunpack.c.l.b16 %v982
    %v1090 = vunpack.c.h.b16 %v982
    %v1091 = vpack.c.b16 %v1029, %v1027
    %v1092 = vpack.c.b16 %v1030, %v1028
    %v1093 = vpack.c.b16 %v1033, %v1031
    %v1094 = vpack.c.b16 %v1034, %v1032
    %v1095 = vpack.c.b16 %v1037, %v1035
    %v1096 = vpack.c.b16 %v1038, %v1036
    %v1097 = vpack.c.b16 %v1041, %v1039
    %v1098 = vpack.c.b16 %v1042, %v1040
    %v1099 = vpack.c.b16 %v1045, %v1043
    %v1100 = vpack.c.b16 %v1046, %v1044
    %v1101 = vpack.c.b16 %v1049, %v1047
    %v1102 = vpack.c.b16 %v1050, %v1048
    %v1103 = vpack.c.b16 %v1053, %v1051
    %v1104 = vpack.c.b16 %v1054, %v1052
    %v1105 = vpack.c.b16 %v1057, %v1055
    %v1106 = vpack.c.b16 %v1058, %v1056
    %v1107 = vpack.c.b16 %v1061, %v1059
    %v1108 = vpack.c.b16 %v1062, %v1060
    %v1109 = vpack.c.b16 %v1065, %v1063
    %v1110 = vpack.c.b16 %v1066, %v1064
    %v1111 = vpack.c.b16 %v1069, %v1067
    %v1112 = vpack.c.b16 %v1070, %v1068
    %v1113 = vpack.c.b16 %v1073, %v1071
    %v1114 = vpack.c.b16 %v1074, %v1072
    %v1115 = vpack.c.b16 %v1077, %v1075
    %v1116 = vpack.c.b16 %v1078, %v1076
    %v1117 = vpack.c.b16 %v1081, %v1079
    %v1118 = vpack.c.b16 %v1082, %v1080
    %v1119 = vpack.c.b16 %v1085, %v1083
    %v1120 = vpack.c.b16 %v1086, %v1084
    %v1121 = vpack.c.b16 %v1089, %v1087
    %v1122 = vpack.c.b16 %v1090, %v1088
    %1155 = vmatprep.subr.bf16.mxu0 %v1106
    %1156 = vmatpush1.bf16.msra.mxu0 %v1105
    %1157 = vmatprep.subr.bf16.mxu0 %v1104
    %1158 = vmatpush1.bf16.msra.mxu0 %v1103
    %1159 = vmatprep.subr.bf16.mxu0 %v1102
    %1160 = vmatpush1.bf16.msra.mxu0 %v1101
    %1161 = vmatprep.subr.bf16.mxu0 %v1100
    %1162 = vmatpush1.bf16.msra.mxu0 %v1099
    %1163 = vmatprep.subr.bf16.mxu0 %v1098
    %1164 = vmatpush1.bf16.msra.mxu0 %v1097
    %1165 = vmatprep.subr.bf16.mxu0 %v1096
    %1166 = vmatpush1.bf16.msra.mxu0 %v1095
    %1167 = vmatprep.subr.bf16.mxu0 %v1094
    %1168 = vmatpush1.bf16.msra.mxu0 %v1093
    %1169 = vmatprep.subr.bf16.mxu0 %v1092
    %1170 = vmatpush1.bf16.msra.mxu0 %v1091
    %1171 = vmatprep.subr.bf16.mxu0 %v1122
    %1172 = vmatpush2.bf16.msra.mxu0 %v1121
    %1173 = vmatprep.subr.bf16.mxu0 %v1120
    %1174 = vmatpush2.bf16.msra.mxu0 %v1119
    %1175 = vmatprep.subr.bf16.mxu0 %v1118
    %1176 = vmatpush2.bf16.msra.mxu0 %v1117
    %1177 = vmatprep.subr.bf16.mxu0 %v1116
    %1178 = vmatpush2.bf16.msra.mxu0 %v1115
    %1179 = vmatprep.subr.bf16.mxu0 %v1114
    %1180 = vmatpush2.bf16.msra.mxu0 %v1113
    %1181 = vmatprep.subr.bf16.mxu0 %v1112
    %1182 = vmatpush2.bf16.msra.mxu0 %v1111
    %1183 = vmatprep.subr.bf16.mxu0 %v1110
    %1184 = vmatpush2.bf16.msra.mxu0 %v1109
    %1185 = vmatprep.subr.bf16.mxu0 %v1108
    %1186 = vmatpush2.bf16.msra.mxu0 %v1107
    %1187 = vmatprep.mubr.bf16.mxu0 %v950
    %1188 = vmatmul.mubr.bf16.gmra.mxu0 %v949
    %v1189 = vpop.f32.mrf.mxu0
    %v1190 = vadd.f32 %v988, %v1189
    %v1191 = vpop.f32.mrf.mxu0
    %v1192 = vadd.f32 %v992, %v1191
    %v1193 = vpop.f32.mrf.mxu0
    %v1194 = vadd.f32 %v988, %v1193
    %v1195 = vpop.f32.mrf.mxu0
    %v1196 = vadd.f32 %v992, %v1195
    %1197 = vdwg.mxu0
    %v1198 = vmax.f32 %v1190, 0.0
    %v1199 = vmax.f32 %v1192, 0.0
    %v1200 = vmax.f32 %v1194, 0.0
    %v1201 = vmax.f32 %v1196, 0.0
    %v1202 = vpack.c.bf16 %v1200, %v1198
    %v1203 = vpack.c.bf16 %v1201, %v1199
    %v1204 = vunpack.c.l.bf16 %v180
    %v1205 = vunpack.c.h.bf16 %v180
    %v1206 = vunpack.c.l.bf16 %v181
    %v1207 = vunpack.c.h.bf16 %v181
    %v1208 = vunpack.c.l.bf16 %v1202
    %v1209 = vunpack.c.l.bf16 %v1203
    %v1210 = vunpack.c.h.bf16 %v1202
    %v1211 = vunpack.c.h.bf16 %v1203
    %v1212 = vadd.f32 %v1204, %v1208
    %v1213 = vadd.f32 %v1205, %v1209
    %v1214 = vadd.f32 %v1206, %v1210
    %v1215 = vadd.f32 %v1207, %v1211
    %v1216 = vpack.c.bf16 %v1214, %v1212
    %v1217 = vpack.c.bf16 %v1215, %v1213
    %v1218 = vld [vmem:[#allocation11] sm:$0xff]
    %v1219 = vld [vmem:[#allocation11 + $0x8] sm:$0xff]
    %v1220 = vld [vmem:[#allocation11 + $0x10] sm:$0xff]
    %v1221 = vld [vmem:[#allocation11 + $0x18] sm:$0xff]
    %v1222 = vld [vmem:[#allocation11 + $0x20] sm:$0xff]
    %v1223 = vld [vmem:[#allocation11 + $0x28] sm:$0xff]
    %v1224 = vld [vmem:[#allocation11 + $0x30] sm:$0xff]
    %v1225 = vld [vmem:[#allocation11 + $0x38] sm:$0xff]
    %v1226 = vld [vmem:[#allocation11 + $0x40] sm:$0xff]
    %v1227 = vld [vmem:[#allocation11 + $0x48] sm:$0xff]
    %v1228 = vld [vmem:[#allocation11 + $0x50] sm:$0xff]
    %v1229 = vld [vmem:[#allocation11 + $0x58] sm:$0xff]
    %v1230 = vld [vmem:[#allocation11 + $0x60] sm:$0xff]
    %v1231 = vld [vmem:[#allocation11 + $0x68] sm:$0xff]
    %v1232 = vld [vmem:[#allocation11 + $0x70] sm:$0xff]
    %v1233 = vld [vmem:[#allocation11 + $0x78] sm:$0xff]
    %v1234 = vld [vmem:[#allocation11 + $0x80] sm:$0xff]
    %v1235 = vld [vmem:[#allocation11 + $0x88] sm:$0xff]
    %v1236 = vld [vmem:[#allocation11 + $0x90] sm:$0xff]
    %v1237 = vld [vmem:[#allocation11 + $0x98] sm:$0xff]
    %v1238 = vld [vmem:[#allocation11 + $0xa0] sm:$0xff]
    %v1239 = vld [vmem:[#allocation11 + $0xa8] sm:$0xff]
    %v1240 = vld [vmem:[#allocation11 + $0xb0] sm:$0xff]
    %v1241 = vld [vmem:[#allocation11 + $0xb8] sm:$0xff]
    %v1242 = vld [vmem:[#allocation11 + $0xc0] sm:$0xff]
    %v1243 = vld [vmem:[#allocation11 + $0xc8] sm:$0xff]
    %v1244 = vld [vmem:[#allocation11 + $0xd0] sm:$0xff]
    %v1245 = vld [vmem:[#allocation11 + $0xd8] sm:$0xff]
    %v1246 = vld [vmem:[#allocation11 + $0xe0] sm:$0xff]
    %v1247 = vld [vmem:[#allocation11 + $0xe8] sm:$0xff]
    %v1248 = vld [vmem:[#allocation11 + $0xf0] sm:$0xff]
    %v1249 = vld [vmem:[#allocation11 + $0xf8] sm:$0xff]
    %v1250 = vld [vmem:[%s10] sm:$0x3]
    %v1252 = vlaneseq
    %v1253 = vshrl.u32 %v1252, 7
    %v1254 = vsub.s32 0, %v1253
    %v1255 = vrot.slane %v1250, %v1254
    %v1256 = vlaneseq
    %v1257 = vshrl.u32 %v1256, 7
    %v1258 = vsub.s32 1, %v1257
    %v1259 = vrot.slane %v1250, %v1258
    %v1294 = vunpack.c.l.b16 %v1218
    %v1295 = vunpack.c.h.b16 %v1218
    %v1296 = vunpack.c.l.b16 %v1219
    %v1297 = vunpack.c.h.b16 %v1219
    %v1298 = vunpack.c.l.b16 %v1220
    %v1299 = vunpack.c.h.b16 %v1220
    %v1300 = vunpack.c.l.b16 %v1221
    %v1301 = vunpack.c.h.b16 %v1221
    %v1302 = vunpack.c.l.b16 %v1222
    %v1303 = vunpack.c.h.b16 %v1222
    %v1304 = vunpack.c.l.b16 %v1223
    %v1305 = vunpack.c.h.b16 %v1223
    %v1306 = vunpack.c.l.b16 %v1224
    %v1307 = vunpack.c.h.b16 %v1224
    %v1308 = vunpack.c.l.b16 %v1225
    %v1309 = vunpack.c.h.b16 %v1225
    %v1310 = vunpack.c.l.b16 %v1226
    %v1311 = vunpack.c.h.b16 %v1226
    %v1312 = vunpack.c.l.b16 %v1227
    %v1313 = vunpack.c.h.b16 %v1227
    %v1314 = vunpack.c.l.b16 %v1228
    %v1315 = vunpack.c.h.b16 %v1228
    %v1316 = vunpack.c.l.b16 %v1229
    %v1317 = vunpack.c.h.b16 %v1229
    %v1318 = vunpack.c.l.b16 %v1230
    %v1319 = vunpack.c.h.b16 %v1230
    %v1320 = vunpack.c.l.b16 %v1231
    %v1321 = vunpack.c.h.b16 %v1231
    %v1322 = vunpack.c.l.b16 %v1232
    %v1323 = vunpack.c.h.b16 %v1232
    %v1324 = vunpack.c.l.b16 %v1233
    %v1325 = vunpack.c.h.b16 %v1233
    %v1326 = vunpack.c.l.b16 %v1234
    %v1327 = vunpack.c.h.b16 %v1234
    %v1328 = vunpack.c.l.b16 %v1235
    %v1329 = vunpack.c.h.b16 %v1235
    %v1330 = vunpack.c.l.b16 %v1236
    %v1331 = vunpack.c.h.b16 %v1236
    %v1332 = vunpack.c.l.b16 %v1237
    %v1333 = vunpack.c.h.b16 %v1237
    %v1334 = vunpack.c.l.b16 %v1238
    %v1335 = vunpack.c.h.b16 %v1238
    %v1336 = vunpack.c.l.b16 %v1239
    %v1337 = vunpack.c.h.b16 %v1239
    %v1338 = vunpack.c.l.b16 %v1240
    %v1339 = vunpack.c.h.b16 %v1240
    %v1340 = vunpack.c.l.b16 %v1241
    %v1341 = vunpack.c.h.b16 %v1241
    %v1342 = vunpack.c.l.b16 %v1242
    %v1343 = vunpack.c.h.b16 %v1242
    %v1344 = vunpack.c.l.b16 %v1243
    %v1345 = vunpack.c.h.b16 %v1243
    %v1346 = vunpack.c.l.b16 %v1244
    %v1347 = vunpack.c.h.b16 %v1244
    %v1348 = vunpack.c.l.b16 %v1245
    %v1349 = vunpack.c.h.b16 %v1245
    %v1350 = vunpack.c.l.b16 %v1246
    %v1351 = vunpack.c.h.b16 %v1246
    %v1352 = vunpack.c.l.b16 %v1247
    %v1353 = vunpack.c.h.b16 %v1247
    %v1354 = vunpack.c.l.b16 %v1248
    %v1355 = vunpack.c.h.b16 %v1248
    %v1356 = vunpack.c.l.b16 %v1249
    %v1357 = vunpack.c.h.b16 %v1249
    %v1358 = vpack.c.b16 %v1296, %v1294
    %v1359 = vpack.c.b16 %v1297, %v1295
    %v1360 = vpack.c.b16 %v1300, %v1298
    %v1361 = vpack.c.b16 %v1301, %v1299
    %v1362 = vpack.c.b16 %v1304, %v1302
    %v1363 = vpack.c.b16 %v1305, %v1303
    %v1364 = vpack.c.b16 %v1308, %v1306
    %v1365 = vpack.c.b16 %v1309, %v1307
    %v1366 = vpack.c.b16 %v1312, %v1310
    %v1367 = vpack.c.b16 %v1313, %v1311
    %v1368 = vpack.c.b16 %v1316, %v1314
    %v1369 = vpack.c.b16 %v1317, %v1315
    %v1370 = vpack.c.b16 %v1320, %v1318
    %v1371 = vpack.c.b16 %v1321, %v1319
    %v1372 = vpack.c.b16 %v1324, %v1322
    %v1373 = vpack.c.b16 %v1325, %v1323
    %v1374 = vpack.c.b16 %v1328, %v1326
    %v1375 = vpack.c.b16 %v1329, %v1327
    %v1376 = vpack.c.b16 %v1332, %v1330
    %v1377 = vpack.c.b16 %v1333, %v1331
    %v1378 = vpack.c.b16 %v1336, %v1334
    %v1379 = vpack.c.b16 %v1337, %v1335
    %v1380 = vpack.c.b16 %v1340, %v1338
    %v1381 = vpack.c.b16 %v1341, %v1339
    %v1382 = vpack.c.b16 %v1344, %v1342
    %v1383 = vpack.c.b16 %v1345, %v1343
    %v1384 = vpack.c.b16 %v1348, %v1346
    %v1385 = vpack.c.b16 %v1349, %v1347
    %v1386 = vpack.c.b16 %v1352, %v1350
    %v1387 = vpack.c.b16 %v1353, %v1351
    %v1388 = vpack.c.b16 %v1356, %v1354
    %v1389 = vpack.c.b16 %v1357, %v1355
    %1422 = vmatprep.subr.bf16.mxu0 %v1373
    %1423 = vmatpush1.bf16.msra.mxu0 %v1372
    %1424 = vmatprep.subr.bf16.mxu0 %v1371
    %1425 = vmatpush1.bf16.msra.mxu0 %v1370
    %1426 = vmatprep.subr.bf16.mxu0 %v1369
    %1427 = vmatpush1.bf16.msra.mxu0 %v1368
    %1428 = vmatprep.subr.bf16.mxu0 %v1367
    %1429 = vmatpush1.bf16.msra.mxu0 %v1366
    %1430 = vmatprep.subr.bf16.mxu0 %v1365
    %1431 = vmatpush1.bf16.msra.mxu0 %v1364
    %1432 = vmatprep.subr.bf16.mxu0 %v1363
    %1433 = vmatpush1.bf16.msra.mxu0 %v1362
    %1434 = vmatprep.subr.bf16.mxu0 %v1361
    %1435 = vmatpush1.bf16.msra.mxu0 %v1360
    %1436 = vmatprep.subr.bf16.mxu0 %v1359
    %1437 = vmatpush1.bf16.msra.mxu0 %v1358
    %1438 = vmatprep.subr.bf16.mxu0 %v1389
    %1439 = vmatpush2.bf16.msra.mxu0 %v1388
    %1440 = vmatprep.subr.bf16.mxu0 %v1387
    %1441 = vmatpush2.bf16.msra.mxu0 %v1386
    %1442 = vmatprep.subr.bf16.mxu0 %v1385
    %1443 = vmatpush2.bf16.msra.mxu0 %v1384
    %1444 = vmatprep.subr.bf16.mxu0 %v1383
    %1445 = vmatpush2.bf16.msra.mxu0 %v1382
    %1446 = vmatprep.subr.bf16.mxu0 %v1381
    %1447 = vmatpush2.bf16.msra.mxu0 %v1380
    %1448 = vmatprep.subr.bf16.mxu0 %v1379
    %1449 = vmatpush2.bf16.msra.mxu0 %v1378
    %1450 = vmatprep.subr.bf16.mxu0 %v1377
    %1451 = vmatpush2.bf16.msra.mxu0 %v1376
    %1452 = vmatprep.subr.bf16.mxu0 %v1375
    %1453 = vmatpush2.bf16.msra.mxu0 %v1374
    %1454 = vmatprep.mubr.bf16.mxu0 %v1217
    %1455 = vmatmul.mubr.bf16.gmra.mxu0 %v1216
    %v1456 = vpop.f32.mrf.mxu0
    %v1457 = vadd.f32 %v1255, %v1456
    %v1458 = vpop.f32.mrf.mxu0
    %v1459 = vadd.f32 %v1259, %v1458
    %v1460 = vpop.f32.mrf.mxu0
    %v1461 = vadd.f32 %v1255, %v1460
    %v1462 = vpop.f32.mrf.mxu0
    %v1463 = vadd.f32 %v1259, %v1462
    %1464 = vdwg.mxu0
    %v1465 = vmax.f32 %v1457, 0.0
    %v1466 = vmax.f32 %v1459, 0.0
    %v1467 = vmax.f32 %v1461, 0.0
    %v1468 = vmax.f32 %v1463, 0.0
    %v1469 = vpack.c.bf16 %v1467, %v1465
    %v1470 = vpack.c.bf16 %v1468, %v1466
    %v1471 = vld [vmem:[#allocation13] sm:$0xff]
    %v1472 = vld [vmem:[#allocation13 + $0x8] sm:$0xff]
    %v1473 = vld [vmem:[#allocation13 + $0x10] sm:$0xff]
    %v1474 = vld [vmem:[#allocation13 + $0x18] sm:$0xff]
    %v1475 = vld [vmem:[#allocation13 + $0x20] sm:$0xff]
    %v1476 = vld [vmem:[#allocation13 + $0x28] sm:$0xff]
    %v1477 = vld [vmem:[#allocation13 + $0x30] sm:$0xff]
    %v1478 = vld [vmem:[#allocation13 + $0x38] sm:$0xff]
    %v1479 = vld [vmem:[#allocation13 + $0x40] sm:$0xff]
    %v1480 = vld [vmem:[#allocation13 + $0x48] sm:$0xff]
    %v1481 = vld [vmem:[#allocation13 + $0x50] sm:$0xff]
    %v1482 = vld [vmem:[#allocation13 + $0x58] sm:$0xff]
    %v1483 = vld [vmem:[#allocation13 + $0x60] sm:$0xff]
    %v1484 = vld [vmem:[#allocation13 + $0x68] sm:$0xff]
    %v1485 = vld [vmem:[#allocation13 + $0x70] sm:$0xff]
    %v1486 = vld [vmem:[#allocation13 + $0x78] sm:$0xff]
    %v1487 = vld [vmem:[#allocation13 + $0x80] sm:$0xff]
    %v1488 = vld [vmem:[#allocation13 + $0x88] sm:$0xff]
    %v1489 = vld [vmem:[#allocation13 + $0x90] sm:$0xff]
    %v1490 = vld [vmem:[#allocation13 + $0x98] sm:$0xff]
    %v1491 = vld [vmem:[#allocation13 + $0xa0] sm:$0xff]
    %v1492 = vld [vmem:[#allocation13 + $0xa8] sm:$0xff]
    %v1493 = vld [vmem:[#allocation13 + $0xb0] sm:$0xff]
    %v1494 = vld [vmem:[#allocation13 + $0xb8] sm:$0xff]
    %v1495 = vld [vmem:[#allocation13 + $0xc0] sm:$0xff]
    %v1496 = vld [vmem:[#allocation13 + $0xc8] sm:$0xff]
    %v1497 = vld [vmem:[#allocation13 + $0xd0] sm:$0xff]
    %v1498 = vld [vmem:[#allocation13 + $0xd8] sm:$0xff]
    %v1499 = vld [vmem:[#allocation13 + $0xe0] sm:$0xff]
    %v1500 = vld [vmem:[#allocation13 + $0xe8] sm:$0xff]
    %v1501 = vld [vmem:[#allocation13 + $0xf0] sm:$0xff]
    %v1502 = vld [vmem:[#allocation13 + $0xf8] sm:$0xff]
    %v1503 = vld [vmem:[%s12] sm:$0x3]
    %v1505 = vlaneseq
    %v1506 = vshrl.u32 %v1505, 7
    %v1507 = vsub.s32 0, %v1506
    %v1508 = vrot.slane %v1503, %v1507
    %v1509 = vlaneseq
    %v1510 = vshrl.u32 %v1509, 7
    %v1511 = vsub.s32 1, %v1510
    %v1512 = vrot.slane %v1503, %v1511
    %v1547 = vunpack.c.l.b16 %v1471
    %v1548 = vunpack.c.h.b16 %v1471
    %v1549 = vunpack.c.l.b16 %v1472
    %v1550 = vunpack.c.h.b16 %v1472
    %v1551 = vunpack.c.l.b16 %v1473
    %v1552 = vunpack.c.h.b16 %v1473
    %v1553 = vunpack.c.l.b16 %v1474
    %v1554 = vunpack.c.h.b16 %v1474
    %v1555 = vunpack.c.l.b16 %v1475
    %v1556 = vunpack.c.h.b16 %v1475
    %v1557 = vunpack.c.l.b16 %v1476
    %v1558 = vunpack.c.h.b16 %v1476
    %v1559 = vunpack.c.l.b16 %v1477
    %v1560 = vunpack.c.h.b16 %v1477
    %v1561 = vunpack.c.l.b16 %v1478
    %v1562 = vunpack.c.h.b16 %v1478
    %v1563 = vunpack.c.l.b16 %v1479
    %v1564 = vunpack.c.h.b16 %v1479
    %v1565 = vunpack.c.l.b16 %v1480
    %v1566 = vunpack.c.h.b16 %v1480
    %v1567 = vunpack.c.l.b16 %v1481
    %v1568 = vunpack.c.h.b16 %v1481
    %v1569 = vunpack.c.l.b16 %v1482
    %v1570 = vunpack.c.h.b16 %v1482
    %v1571 = vunpack.c.l.b16 %v1483
    %v1572 = vunpack.c.h.b16 %v1483
    %v1573 = vunpack.c.l.b16 %v1484
    %v1574 = vunpack.c.h.b16 %v1484
    %v1575 = vunpack.c.l.b16 %v1485
    %v1576 = vunpack.c.h.b16 %v1485
    %v1577 = vunpack.c.l.b16 %v1486
    %v1578 = vunpack.c.h.b16 %v1486
    %v1579 = vunpack.c.l.b16 %v1487
    %v1580 = vunpack.c.h.b16 %v1487
    %v1581 = vunpack.c.l.b16 %v1488
    %v1582 = vunpack.c.h.b16 %v1488
    %v1583 = vunpack.c.l.b16 %v1489
    %v1584 = vunpack.c.h.b16 %v1489
    %v1585 = vunpack.c.l.b16 %v1490
    %v1586 = vunpack.c.h.b16 %v1490
    %v1587 = vunpack.c.l.b16 %v1491
    %v1588 = vunpack.c.h.b16 %v1491
    %v1589 = vunpack.c.l.b16 %v1492
    %v1590 = vunpack.c.h.b16 %v1492
    %v1591 = vunpack.c.l.b16 %v1493
    %v1592 = vunpack.c.h.b16 %v1493
    %v1593 = vunpack.c.l.b16 %v1494
    %v1594 = vunpack.c.h.b16 %v1494
    %v1595 = vunpack.c.l.b16 %v1495
    %v1596 = vunpack.c.h.b16 %v1495
    %v1597 = vunpack.c.l.b16 %v1496
    %v1598 = vunpack.c.h.b16 %v1496
    %v1599 = vunpack.c.l.b16 %v1497
    %v1600 = vunpack.c.h.b16 %v1497
    %v1601 = vunpack.c.l.b16 %v1498
    %v1602 = vunpack.c.h.b16 %v1498
    %v1603 = vunpack.c.l.b16 %v1499
    %v1604 = vunpack.c.h.b16 %v1499
    %v1605 = vunpack.c.l.b16 %v1500
    %v1606 = vunpack.c.h.b16 %v1500
    %v1607 = vunpack.c.l.b16 %v1501
    %v1608 = vunpack.c.h.b16 %v1501
    %v1609 = vunpack.c.l.b16 %v1502
    %v1610 = vunpack.c.h.b16 %v1502
    %v1611 = vpack.c.b16 %v1549, %v1547
    %v1612 = vpack.c.b16 %v1550, %v1548
    %v1613 = vpack.c.b16 %v1553, %v1551
    %v1614 = vpack.c.b16 %v1554, %v1552
    %v1615 = vpack.c.b16 %v1557, %v1555
    %v1616 = vpack.c.b16 %v1558, %v1556
    %v1617 = vpack.c.b16 %v1561, %v1559
    %v1618 = vpack.c.b16 %v1562, %v1560
    %v1619 = vpack.c.b16 %v1565, %v1563
    %v1620 = vpack.c.b16 %v1566, %v1564
    %v1621 = vpack.c.b16 %v1569, %v1567
    %v1622 = vpack.c.b16 %v1570, %v1568
    %v1623 = vpack.c.b16 %v1573, %v1571
    %v1624 = vpack.c.b16 %v1574, %v1572
    %v1625 = vpack.c.b16 %v1577, %v1575
    %v1626 = vpack.c.b16 %v1578, %v1576
    %v1627 = vpack.c.b16 %v1581, %v1579
    %v1628 = vpack.c.b16 %v1582, %v1580
    %v1629 = vpack.c.b16 %v1585, %v1583
    %v1630 = vpack.c.b16 %v1586, %v1584
    %v1631 = vpack.c.b16 %v1589, %v1587
    %v1632 = vpack.c.b16 %v1590, %v1588
    %v1633 = vpack.c.b16 %v1593, %v1591
    %v1634 = vpack.c.b16 %v1594, %v1592
    %v1635 = vpack.c.b16 %v1597, %v1595
    %v1636 = vpack.c.b16 %v1598, %v1596
    %v1637 = vpack.c.b16 %v1601, %v1599
    %v1638 = vpack.c.b16 %v1602, %v1600
    %v1639 = vpack.c.b16 %v1605, %v1603
    %v1640 = vpack.c.b16 %v1606, %v1604
    %v1641 = vpack.c.b16 %v1609, %v1607
    %v1642 = vpack.c.b16 %v1610, %v1608
    %1675 = vmatprep.subr.bf16.mxu0 %v1626
    %1676 = vmatpush1.bf16.msra.mxu0 %v1625
    %1677 = vmatprep.subr.bf16.mxu0 %v1624
    %1678 = vmatpush1.bf16.msra.mxu0 %v1623
    %1679 = vmatprep.subr.bf16.mxu0 %v1622
    %1680 = vmatpush1.bf16.msra.mxu0 %v1621
    %1681 = vmatprep.subr.bf16.mxu0 %v1620
    %1682 = vmatpush1.bf16.msra.mxu0 %v1619
    %1683 = vmatprep.subr.bf16.mxu0 %v1618
    %1684 = vmatpush1.bf16.msra.mxu0 %v1617
    %1685 = vmatprep.subr.bf16.mxu0 %v1616
    %1686 = vmatpush1.bf16.msra.mxu0 %v1615
    %1687 = vmatprep.subr.bf16.mxu0 %v1614
    %1688 = vmatpush1.bf16.msra.mxu0 %v1613
    %1689 = vmatprep.subr.bf16.mxu0 %v1612
    %1690 = vmatpush1.bf16.msra.mxu0 %v1611
    %1691 = vmatprep.subr.bf16.mxu0 %v1642
    %1692 = vmatpush2.bf16.msra.mxu0 %v1641
    %1693 = vmatprep.subr.bf16.mxu0 %v1640
    %1694 = vmatpush2.bf16.msra.mxu0 %v1639
    %1695 = vmatprep.subr.bf16.mxu0 %v1638
    %1696 = vmatpush2.bf16.msra.mxu0 %v1637
    %1697 = vmatprep.subr.bf16.mxu0 %v1636
    %1698 = vmatpush2.bf16.msra.mxu0 %v1635
    %1699 = vmatprep.subr.bf16.mxu0 %v1634
    %1700 = vmatpush2.bf16.msra.mxu0 %v1633
    %1701 = vmatprep.subr.bf16.mxu0 %v1632
    %1702 = vmatpush2.bf16.msra.mxu0 %v1631
    %1703 = vmatprep.subr.bf16.mxu0 %v1630
    %1704 = vmatpush2.bf16.msra.mxu0 %v1629
    %1705 = vmatprep.subr.bf16.mxu0 %v1628
    %1706 = vmatpush2.bf16.msra.mxu0 %v1627
    %1707 = vmatprep.mubr.bf16.mxu0 %v1470
    %1708 = vmatmul.mubr.bf16.gmra.mxu0 %v1469
    %v1709 = vpop.f32.mrf.mxu0
    %v1710 = vadd.f32 %v1508, %v1709
    %v1711 = vpop.f32.mrf.mxu0
    %v1712 = vadd.f32 %v1512, %v1711
    %v1713 = vpop.f32.mrf.mxu0
    %v1714 = vadd.f32 %v1508, %v1713
    %v1715 = vpop.f32.mrf.mxu0
    %v1716 = vadd.f32 %v1512, %v1715
    %1717 = vdwg.mxu0
    %v1718 = vmax.f32 %v1710, 0.0
    %v1719 = vmax.f32 %v1712, 0.0
    %v1720 = vmax.f32 %v1714, 0.0
    %v1721 = vmax.f32 %v1716, 0.0
    %v1722 = vpack.c.bf16 %v1720, %v1718
    %v1723 = vpack.c.bf16 %v1721, %v1719
    %v1724 = vld [vmem:[#allocation14] sm:$0xff]
    %v1725 = vld [vmem:[#allocation14 + $0x8] sm:$0xff]
    %v1726 = vld [vmem:[#allocation14 + $0x10] sm:$0xff]
    %v1727 = vld [vmem:[#allocation14 + $0x18] sm:$0xff]
    %v1728 = vld [vmem:[#allocation14 + $0x20] sm:$0xff]
    %v1729 = vld [vmem:[#allocation14 + $0x28] sm:$0xff]
    %v1730 = vld [vmem:[#allocation14 + $0x30] sm:$0xff]
    %v1731 = vld [vmem:[#allocation14 + $0x38] sm:$0xff]
    %v1732 = vld [vmem:[#allocation14 + $0x40] sm:$0xff]
    %v1733 = vld [vmem:[#allocation14 + $0x48] sm:$0xff]
    %v1734 = vld [vmem:[#allocation14 + $0x50] sm:$0xff]
    %v1735 = vld [vmem:[#allocation14 + $0x58] sm:$0xff]
    %v1736 = vld [vmem:[#allocation14 + $0x60] sm:$0xff]
    %v1737 = vld [vmem:[#allocation14 + $0x68] sm:$0xff]
    %v1738 = vld [vmem:[#allocation14 + $0x70] sm:$0xff]
    %v1739 = vld [vmem:[#allocation14 + $0x78] sm:$0xff]
    %v1740 = vld [vmem:[#allocation14 + $0x80] sm:$0xff]
    %v1741 = vld [vmem:[#allocation14 + $0x88] sm:$0xff]
    %v1742 = vld [vmem:[#allocation14 + $0x90] sm:$0xff]
    %v1743 = vld [vmem:[#allocation14 + $0x98] sm:$0xff]
    %v1744 = vld [vmem:[#allocation14 + $0xa0] sm:$0xff]
    %v1745 = vld [vmem:[#allocation14 + $0xa8] sm:$0xff]
    %v1746 = vld [vmem:[#allocation14 + $0xb0] sm:$0xff]
    %v1747 = vld [vmem:[#allocation14 + $0xb8] sm:$0xff]
    %v1748 = vld [vmem:[#allocation14 + $0xc0] sm:$0xff]
    %v1749 = vld [vmem:[#allocation14 + $0xc8] sm:$0xff]
    %v1750 = vld [vmem:[#allocation14 + $0xd0] sm:$0xff]
    %v1751 = vld [vmem:[#allocation14 + $0xd8] sm:$0xff]
    %v1752 = vld [vmem:[#allocation14 + $0xe0] sm:$0xff]
    %v1753 = vld [vmem:[#allocation14 + $0xe8] sm:$0xff]
    %v1754 = vld [vmem:[#allocation14 + $0xf0] sm:$0xff]
    %v1755 = vld [vmem:[#allocation14 + $0xf8] sm:$0xff]
    %v1756 = vld [vmem:[%s14] sm:$0x3]
    %v1758 = vlaneseq
    %v1759 = vshrl.u32 %v1758, 7
    %v1760 = vsub.s32 0, %v1759
    %v1761 = vrot.slane %v1756, %v1760
    %v1762 = vlaneseq
    %v1763 = vshrl.u32 %v1762, 7
    %v1764 = vsub.s32 1, %v1763
    %v1765 = vrot.slane %v1756, %v1764
    %v1800 = vunpack.c.l.b16 %v1724
    %v1801 = vunpack.c.h.b16 %v1724
    %v1802 = vunpack.c.l.b16 %v1725
    %v1803 = vunpack.c.h.b16 %v1725
    %v1804 = vunpack.c.l.b16 %v1726
    %v1805 = vunpack.c.h.b16 %v1726
    %v1806 = vunpack.c.l.b16 %v1727
    %v1807 = vunpack.c.h.b16 %v1727
    %v1808 = vunpack.c.l.b16 %v1728
    %v1809 = vunpack.c.h.b16 %v1728
    %v1810 = vunpack.c.l.b16 %v1729
    %v1811 = vunpack.c.h.b16 %v1729
    %v1812 = vunpack.c.l.b16 %v1730
    %v1813 = vunpack.c.h.b16 %v1730
    %v1814 = vunpack.c.l.b16 %v1731
    %v1815 = vunpack.c.h.b16 %v1731
    %v1816 = vunpack.c.l.b16 %v1732
    %v1817 = vunpack.c.h.b16 %v1732
    %v1818 = vunpack.c.l.b16 %v1733
    %v1819 = vunpack.c.h.b16 %v1733
    %v1820 = vunpack.c.l.b16 %v1734
    %v1821 = vunpack.c.h.b16 %v1734
    %v1822 = vunpack.c.l.b16 %v1735
    %v1823 = vunpack.c.h.b16 %v1735
    %v1824 = vunpack.c.l.b16 %v1736
    %v1825 = vunpack.c.h.b16 %v1736
    %v1826 = vunpack.c.l.b16 %v1737
    %v1827 = vunpack.c.h.b16 %v1737
    %v1828 = vunpack.c.l.b16 %v1738
    %v1829 = vunpack.c.h.b16 %v1738
    %v1830 = vunpack.c.l.b16 %v1739
    %v1831 = vunpack.c.h.b16 %v1739
    %v1832 = vunpack.c.l.b16 %v1740
    %v1833 = vunpack.c.h.b16 %v1740
    %v1834 = vunpack.c.l.b16 %v1741
    %v1835 = vunpack.c.h.b16 %v1741
    %v1836 = vunpack.c.l.b16 %v1742
    %v1837 = vunpack.c.h.b16 %v1742
    %v1838 = vunpack.c.l.b16 %v1743
    %v1839 = vunpack.c.h.b16 %v1743
    %v1840 = vunpack.c.l.b16 %v1744
    %v1841 = vunpack.c.h.b16 %v1744
    %v1842 = vunpack.c.l.b16 %v1745
    %v1843 = vunpack.c.h.b16 %v1745
    %v1844 = vunpack.c.l.b16 %v1746
    %v1845 = vunpack.c.h.b16 %v1746
    %v1846 = vunpack.c.l.b16 %v1747
    %v1847 = vunpack.c.h.b16 %v1747
    %v1848 = vunpack.c.l.b16 %v1748
    %v1849 = vunpack.c.h.b16 %v1748
    %v1850 = vunpack.c.l.b16 %v1749
    %v1851 = vunpack.c.h.b16 %v1749
    %v1852 = vunpack.c.l.b16 %v1750
    %v1853 = vunpack.c.h.b16 %v1750
    %v1854 = vunpack.c.l.b16 %v1751
    %v1855 = vunpack.c.h.b16 %v1751
    %v1856 = vunpack.c.l.b16 %v1752
    %v1857 = vunpack.c.h.b16 %v1752
    %v1858 = vunpack.c.l.b16 %v1753
    %v1859 = vunpack.c.h.b16 %v1753
    %v1860 = vunpack.c.l.b16 %v1754
    %v1861 = vunpack.c.h.b16 %v1754
    %v1862 = vunpack.c.l.b16 %v1755
    %v1863 = vunpack.c.h.b16 %v1755
    %v1864 = vpack.c.b16 %v1802, %v1800
    %v1865 = vpack.c.b16 %v1803, %v1801
    %v1866 = vpack.c.b16 %v1806, %v1804
    %v1867 = vpack.c.b16 %v1807, %v1805
    %v1868 = vpack.c.b16 %v1810, %v1808
    %v1869 = vpack.c.b16 %v1811, %v1809
    %v1870 = vpack.c.b16 %v1814, %v1812
    %v1871 = vpack.c.b16 %v1815, %v1813
    %v1872 = vpack.c.b16 %v1818, %v1816
    %v1873 = vpack.c.b16 %v1819, %v1817
    %v1874 = vpack.c.b16 %v1822, %v1820
    %v1875 = vpack.c.b16 %v1823, %v1821
    %v1876 = vpack.c.b16 %v1826, %v1824
    %v1877 = vpack.c.b16 %v1827, %v1825
    %v1878 = vpack.c.b16 %v1830, %v1828
    %v1879 = vpack.c.b16 %v1831, %v1829
    %v1880 = vpack.c.b16 %v1834, %v1832
    %v1881 = vpack.c.b16 %v1835, %v1833
    %v1882 = vpack.c.b16 %v1838, %v1836
    %v1883 = vpack.c.b16 %v1839, %v1837
    %v1884 = vpack.c.b16 %v1842, %v1840
    %v1885 = vpack.c.b16 %v1843, %v1841
    %v1886 = vpack.c.b16 %v1846, %v1844
    %v1887 = vpack.c.b16 %v1847, %v1845
    %v1888 = vpack.c.b16 %v1850, %v1848
    %v1889 = vpack.c.b16 %v1851, %v1849
    %v1890 = vpack.c.b16 %v1854, %v1852
    %v1891 = vpack.c.b16 %v1855, %v1853
    %v1892 = vpack.c.b16 %v1858, %v1856
    %v1893 = vpack.c.b16 %v1859, %v1857
    %v1894 = vpack.c.b16 %v1862, %v1860
    %v1895 = vpack.c.b16 %v1863, %v1861
    %1928 = vmatprep.subr.bf16.mxu0 %v1879
    %1929 = vmatpush1.bf16.msra.mxu0 %v1878
    %1930 = vmatprep.subr.bf16.mxu0 %v1877
    %1931 = vmatpush1.bf16.msra.mxu0 %v1876
    %1932 = vmatprep.subr.bf16.mxu0 %v1875
    %1933 = vmatpush1.bf16.msra.mxu0 %v1874
    %1934 = vmatprep.subr.bf16.mxu0 %v1873
    %1935 = vmatpush1.bf16.msra.mxu0 %v1872
    %1936 = vmatprep.subr.bf16.mxu0 %v1871
    %1937 = vmatpush1.bf16.msra.mxu0 %v1870
    %1938 = vmatprep.subr.bf16.mxu0 %v1869
    %1939 = vmatpush1.bf16.msra.mxu0 %v1868
    %1940 = vmatprep.subr.bf16.mxu0 %v1867
    %1941 = vmatpush1.bf16.msra.mxu0 %v1866
    %1942 = vmatprep.subr.bf16.mxu0 %v1865
    %1943 = vmatpush1.bf16.msra.mxu0 %v1864
    %1944 = vmatprep.subr.bf16.mxu0 %v1895
    %1945 = vmatpush2.bf16.msra.mxu0 %v1894
    %1946 = vmatprep.subr.bf16.mxu0 %v1893
    %1947 = vmatpush2.bf16.msra.mxu0 %v1892
    %1948 = vmatprep.subr.bf16.mxu0 %v1891
    %1949 = vmatpush2.bf16.msra.mxu0 %v1890
    %1950 = vmatprep.subr.bf16.mxu0 %v1889
    %1951 = vmatpush2.bf16.msra.mxu0 %v1888
    %1952 = vmatprep.subr.bf16.mxu0 %v1887
    %1953 = vmatpush2.bf16.msra.mxu0 %v1886
    %1954 = vmatprep.subr.bf16.mxu0 %v1885
    %1955 = vmatpush2.bf16.msra.mxu0 %v1884
    %1956 = vmatprep.subr.bf16.mxu0 %v1883
    %1957 = vmatpush2.bf16.msra.mxu0 %v1882
    %1958 = vmatprep.subr.bf16.mxu0 %v1881
    %1959 = vmatpush2.bf16.msra.mxu0 %v1880
    %1960 = vmatprep.mubr.bf16.mxu0 %v1723
    %1961 = vmatmul.mubr.bf16.gmra.mxu0 %v1722
    %v1962 = vpop.f32.mrf.mxu0
    %v1963 = vadd.f32 %v1761, %v1962
    %v1964 = vpop.f32.mrf.mxu0
    %v1965 = vadd.f32 %v1765, %v1964
    %v1966 = vpop.f32.mrf.mxu0
    %v1967 = vadd.f32 %v1761, %v1966
    %v1968 = vpop.f32.mrf.mxu0
    %v1969 = vadd.f32 %v1765, %v1968
    %1970 = vdwg.mxu0
    %v1971 = vmax.f32 %v1963, 0.0
    %v1972 = vmax.f32 %v1965, 0.0
    %v1973 = vmax.f32 %v1967, 0.0
    %v1974 = vmax.f32 %v1969, 0.0
    %v1975 = vpack.c.bf16 %v1973, %v1971
    %v1976 = vpack.c.bf16 %v1974, %v1972
    %v1977 = vld [vmem:[#allocation16] sm:$0xf]
    %v1978 = vld [vmem:[#allocation16 + $0x4] sm:$0xf]
    %v1979 = vld [vmem:[#allocation16 + $0x8] sm:$0xf]
    %v1980 = vld [vmem:[#allocation16 + $0xc] sm:$0xf]
    %v1981 = vld [vmem:[#allocation16 + $0x10] sm:$0xf]
    %v1982 = vld [vmem:[#allocation16 + $0x14] sm:$0xf]
    %v1983 = vld [vmem:[#allocation16 + $0x18] sm:$0xf]
    %v1984 = vld [vmem:[#allocation16 + $0x1c] sm:$0xf]
    %v1985 = vld [vmem:[#allocation16 + $0x20] sm:$0xf]
    %v1986 = vld [vmem:[#allocation16 + $0x24] sm:$0xf]
    %v1987 = vld [vmem:[#allocation16 + $0x28] sm:$0xf]
    %v1988 = vld [vmem:[#allocation16 + $0x2c] sm:$0xf]
    %v1989 = vld [vmem:[#allocation16 + $0x30] sm:$0xf]
    %v1990 = vld [vmem:[#allocation16 + $0x34] sm:$0xf]
    %v1991 = vld [vmem:[#allocation16 + $0x38] sm:$0xf]
    %v1992 = vld [vmem:[#allocation16 + $0x3c] sm:$0xf]
    %v1993 = vld [vmem:[#allocation16 + $0x40] sm:$0xf]
    %v1994 = vld [vmem:[#allocation16 + $0x44] sm:$0xf]
    %v1995 = vld [vmem:[#allocation16 + $0x48] sm:$0xf]
    %v1996 = vld [vmem:[#allocation16 + $0x4c] sm:$0xf]
    %v1997 = vld [vmem:[#allocation16 + $0x50] sm:$0xf]
    %v1998 = vld [vmem:[#allocation16 + $0x54] sm:$0xf]
    %v1999 = vld [vmem:[#allocation16 + $0x58] sm:$0xf]
    %v2000 = vld [vmem:[#allocation16 + $0x5c] sm:$0xf]
    %v2001 = vld [vmem:[#allocation16 + $0x60] sm:$0xf]
    %v2002 = vld [vmem:[#allocation16 + $0x64] sm:$0xf]
    %v2003 = vld [vmem:[#allocation16 + $0x68] sm:$0xf]
    %v2004 = vld [vmem:[#allocation16 + $0x6c] sm:$0xf]
    %v2005 = vld [vmem:[#allocation16 + $0x70] sm:$0xf]
    %v2006 = vld [vmem:[#allocation16 + $0x74] sm:$0xf]
    %v2007 = vld [vmem:[#allocation16 + $0x78] sm:$0xf]
    %v2008 = vld [vmem:[#allocation16 + $0x7c] sm:$0xf]
    %v2009 = vld [vmem:[%s16] sm:$0x1]
    %v2011 = vlaneseq
    %v2012 = vshrl.u32 %v2011, 7
    %v2013 = vsub.s32 0, %v2012
    %v2014 = vrot.slane %v2009, %v2013
    %v2048 = vunpack.c.l.b16 %v1977
    %v2049 = vunpack.c.l.b16 %v1978
    %v2050 = vunpack.c.l.b16 %v1979
    %v2051 = vunpack.c.l.b16 %v1980
    %v2052 = vunpack.c.l.b16 %v1981
    %v2053 = vunpack.c.l.b16 %v1982
    %v2054 = vunpack.c.l.b16 %v1983
    %v2055 = vunpack.c.l.b16 %v1984
    %v2056 = vunpack.c.l.b16 %v1985
    %v2057 = vunpack.c.l.b16 %v1986
    %v2058 = vunpack.c.l.b16 %v1987
    %v2059 = vunpack.c.l.b16 %v1988
    %v2060 = vunpack.c.l.b16 %v1989
    %v2061 = vunpack.c.l.b16 %v1990
    %v2062 = vunpack.c.l.b16 %v1991
    %v2063 = vunpack.c.l.b16 %v1992
    %v2064 = vunpack.c.l.b16 %v1993
    %v2065 = vunpack.c.l.b16 %v1994
    %v2066 = vunpack.c.l.b16 %v1995
    %v2067 = vunpack.c.l.b16 %v1996
    %v2068 = vunpack.c.l.b16 %v1997
    %v2069 = vunpack.c.l.b16 %v1998
    %v2070 = vunpack.c.l.b16 %v1999
    %v2071 = vunpack.c.l.b16 %v2000
    %v2072 = vunpack.c.l.b16 %v2001
    %v2073 = vunpack.c.l.b16 %v2002
    %v2074 = vunpack.c.l.b16 %v2003
    %v2075 = vunpack.c.l.b16 %v2004
    %v2076 = vunpack.c.l.b16 %v2005
    %v2077 = vunpack.c.l.b16 %v2006
    %v2078 = vunpack.c.l.b16 %v2007
    %v2079 = vunpack.c.l.b16 %v2008
    %v2080 = vpack.c.b16 %v2049, %v2048
    %v2081 = vpack.c.b16 %v2051, %v2050
    %v2082 = vpack.c.b16 %v2053, %v2052
    %v2083 = vpack.c.b16 %v2055, %v2054
    %v2084 = vpack.c.b16 %v2057, %v2056
    %v2085 = vpack.c.b16 %v2059, %v2058
    %v2086 = vpack.c.b16 %v2061, %v2060
    %v2087 = vpack.c.b16 %v2063, %v2062
    %v2088 = vpack.c.b16 %v2065, %v2064
    %v2089 = vpack.c.b16 %v2067, %v2066
    %v2090 = vpack.c.b16 %v2069, %v2068
    %v2091 = vpack.c.b16 %v2071, %v2070
    %v2092 = vpack.c.b16 %v2073, %v2072
    %v2093 = vpack.c.b16 %v2075, %v2074
    %v2094 = vpack.c.b16 %v2077, %v2076
    %v2095 = vpack.c.b16 %v2079, %v2078
    %2112 = vmatprep.subr.bf16.mxu0 0
    %2113 = vmatpush1.bf16.msra.mxu0 %v2087
    %2114 = vmatprep.subr.bf16.mxu0 0
    %2115 = vmatpush1.bf16.msra.mxu0 %v2086
    %2116 = vmatprep.subr.bf16.mxu0 0
    %2117 = vmatpush1.bf16.msra.mxu0 %v2085
    %2118 = vmatprep.subr.bf16.mxu0 0
    %2119 = vmatpush1.bf16.msra.mxu0 %v2084
    %2120 = vmatprep.subr.bf16.mxu0 0
    %2121 = vmatpush1.bf16.msra.mxu0 %v2083
    %2122 = vmatprep.subr.bf16.mxu0 0
    %2123 = vmatpush1.bf16.msra.mxu0 %v2082
    %2124 = vmatprep.subr.bf16.mxu0 0
    %2125 = vmatpush1.bf16.msra.mxu0 %v2081
    %2126 = vmatprep.subr.bf16.mxu0 0
    %2127 = vmatpush1.bf16.msra.mxu0 %v2080
    %2128 = vmatprep.subr.bf16.mxu0 0
    %2129 = vmatpush2.bf16.msra.mxu0 %v2095
    %2130 = vmatprep.subr.bf16.mxu0 0
    %2131 = vmatpush2.bf16.msra.mxu0 %v2094
    %2132 = vmatprep.subr.bf16.mxu0 0
    %2133 = vmatpush2.bf16.msra.mxu0 %v2093
    %2134 = vmatprep.subr.bf16.mxu0 0
    %2135 = vmatpush2.bf16.msra.mxu0 %v2092
    %2136 = vmatprep.subr.bf16.mxu0 0
    %2137 = vmatpush2.bf16.msra.mxu0 %v2091
    %2138 = vmatprep.subr.bf16.mxu0 0
    %2139 = vmatpush2.bf16.msra.mxu0 %v2090
    %2140 = vmatprep.subr.bf16.mxu0 0
    %2141 = vmatpush2.bf16.msra.mxu0 %v2089
    %2142 = vmatprep.subr.bf16.mxu0 0
    %2143 = vmatpush2.bf16.msra.mxu0 %v2088
    %2144 = vmatprep.mubr.bf16.mxu0 %v1976
    %2145 = vmatmul.mubr.bf16.gmra.mxu0 %v1975
    %v2146 = vpop.f32.mrf.mxu0
    %v2147 = vadd.f32 %v2014, %v2146
    %v2148 = vpop.f32.mrf.mxu0
    %v2149 = vpop.f32.mrf.mxu0
    %v2150 = vadd.f32 %v2014, %v2149
    %v2151 = vpop.f32.mrf.mxu0
    %2152 = vdwg.mxu0
    %v2153 = vmax.f32 %v2147, 0.0
    %v2154 = vmax.f32 %v2150, 0.0
    %2155 = vst [vmem:[#allocation17] sm:$0xff] %v2153
    %2156 = vst [vmem:[#allocation17 + $0x8] sm:$0xff] %v2154
    // Predicated region
    $region106: #{tpu_custom_call.1} parent=1 // pred_check
      _
    $region107: #{tpu_custom_call.1} parent=1 // pred_check_branch
      %2158 = sbr.rel (0) target = $region109
    $region108: #{tpu_custom_call.1} parent=1 // pred_region
      %s2160 = ssub.s32 256, 256
      %2161 = vsyncadd [#allocation4], %s2160
      %s2162 = sshll.u32 [#allocation17], 4
      %s2163 = int_to_ptr.vmem [resolvable:$true] %s2162
      %2168 = dma.vmem_to_hbm [thread:$0]  %s2163, 256, %s17, [#allocation4], 128, 128, 8
    $region109: #{tpu_custom_call.1} parent=1 // pred_fallthru
      _
    // Predicated region
    $region110: #{tpu_custom_call.1} parent=1 // pred_check
      _
    $region111: #{tpu_custom_call.1} parent=1 // pred_check_branch
      %2170 = sbr.rel (0) target = $region113
    $region112: #{tpu_custom_call.1} parent=1 // pred_region
      %2171 = dma.done [#allocation4], 256
    $region113: #{tpu_custom_call.1} parent=1 // pred_fallthru
      _
    %2172 = vsyncpa [#allocation3], 1
    %2173 = vsyncpa [#allocation6], 1
    %2174 = vsyncpa [#allocation9], 1
    %2175 = vsyncpa [#allocation12], 1
    %2176 = vsyncpa [#allocation15], 1
    %2177 = vsyncpa [#allocation4], 1

</llo_original>
